<compile_context>
chip_gen: v6e
topology: v6e:2x2x1
jax: 0.10.0
libtpu: 0.0.40
codegen_flags: <defaults>
</compile_context>

<pallas_src>
import math
import jax
import jax.numpy as jnp
from jax.experimental import pallas as pl
from jax.experimental.pallas import tpu as pltpu

# ----------------------------- problem sizes --------------------------------
B = 2              # batch
S = 8              # sequence length
BS = B * S         # batch folded into sublanes
H = 64             # transformer hidden size (roberta hidden_size, shrunk)
NUM_HEADS = 4
HEAD_DIM = H // NUM_HEADS
FFN = 128          # transformer feed-forward width
NUM_LAYERS = 2
VOCAB = 100
SHARED = 512       # shared_layer width   (exactly as in the PyTorch module)
BRANCH = 128       # per-branch width     (exactly as in the PyTorch module)
EPS = 1e-5         # nn.LayerNorm default eps
NEG = -1e9


# ----------------------------- in-kernel math --------------------------------
def _gelu(x):
    c = math.sqrt(2.0 / math.pi)
    return 0.5 * x * (1.0 + jnp.tanh(c * (x + 0.044715 * x * x * x)))


def _layernorm(x, gamma, beta):
    mean = jnp.mean(x, axis=-1, keepdims=True)
    var = jnp.mean((x - mean) ** 2, axis=-1, keepdims=True)
    return (x - mean) * jax.lax.rsqrt(var + EPS) * gamma + beta


def _encoder_layer(x, bias, wqkv, bqkv, wo, bo, ln1, w1, b1, w2, b2, ln2):
    """Post-LN transformer encoder layer on the batch-folded (BS, H) activation.

    x:    (BS, H) f32           bias: (BS, BS) block-diagonal additive mask
    wqkv: (H, 3H) bf16 (1/sqrt(HD) folded into the q columns)   bqkv: (1, 3H) f32
    wo:   (H, H)  bf16          bo:   (1, H) f32
    w1:   (H, FFN) bf16         w2:   (FFN, H) bf16
    """
    # Single lane-dense QKV projection (192 output lanes).
    qkv = jnp.dot(x.astype(jnp.bfloat16), wqkv,
                  preferred_element_type=jnp.float32) + bqkv          # (BS, 3H)

    # Per-head attention (HD=16 is inherent head structure; scores stay f32).
    parts = []
    for h in range(NUM_HEADS):
        qh = qkv[:, h * HEAD_DIM:(h + 1) * HEAD_DIM]                  # (BS, HD)
        kh = qkv[:, H + h * HEAD_DIM:H + (h + 1) * HEAD_DIM]
        vh = qkv[:, 2 * H + h * HEAD_DIM:2 * H + (h + 1) * HEAD_DIM]
        s = jnp.einsum("qd,kd->qk", qh, kh,
                       preferred_element_type=jnp.float32) + bias     # (BS, BS)
        s = s - jnp.max(s, axis=-1, keepdims=True)
        p = jnp.exp(s)
        p = p * pl.reciprocal(jnp.sum(p, axis=-1, keepdims=True), approx=True)
        parts.append(jnp.dot(p, vh, preferred_element_type=jnp.float32))
    ctx = jnp.concatenate(parts, axis=1)                              # (BS, H)

    # Output projection: one (H,H) matmul — MXU accumulates over heads.
    attn = jnp.dot(ctx.astype(jnp.bfloat16), wo,
                   preferred_element_type=jnp.float32) + bo

    h1 = _layernorm(x + attn, ln1[0:1, :], ln1[1:2, :])
    f = jnp.dot(h1.astype(jnp.bfloat16), w1, preferred_element_type=jnp.float32) + b1
    f = _gelu(f)
    f = jnp.dot(f.astype(jnp.bfloat16), w2, preferred_element_type=jnp.float32) + b2
    return _layernorm(h1 + f, ln2[0:1, :], ln2[1:2, :])


# ----------------------------- fused forward kernel --------------------------
def fused_forward_kernel(ids_ref,                      # scalar-prefetch (SMEM)
                         bias_ref, wemb_ref, pos_ref, embln_ref,
                         wqkv_ref, bqkv_ref, wo_ref, bo_ref, ln1_ref,
                         w1_ref, b1_ref, w2_ref, b2_ref, ln2_ref,
                         ws_ref, bs_ref, lns_ref,
                         wb1_ref, bb1_ref, g1_ref, be1_ref, w2b_ref, b2b_ref,
                         o_ref):
    # ---- embedding gather (token ids from SMEM), positional add ----
    rows = []
    for b in range(B):
        for s in range(S):
            tok = ids_ref[b, s]
            rows.append(wemb_ref[pl.ds(tok, 1), :])                   # (1, H)
    x = jnp.concatenate(rows, axis=0)                                 # (BS, H)
    pos = pos_ref[...]                                                # (S, H)
    x = x + jnp.concatenate([pos] * B, axis=0)

    embln = embln_ref[...]
    x = _layernorm(x, embln[0:1, :], embln[1:2, :])                   # embedding LN

    bias = bias_ref[...]                                              # (BS, BS)
    for l in range(NUM_LAYERS):                                       # static unroll
        x = _encoder_layer(x, bias,
                           wqkv_ref[l], bqkv_ref[l], wo_ref[l], bo_ref[l],
                           ln1_ref[l], w1_ref[l], b1_ref[l],
                           w2_ref[l], b2_ref[l], ln2_ref[l])

    # ---- VAD head (shared layer + 3 branches), fused ----
    # last_hidden_state[:, 0, :] -> rows 0, S, 2S, ...
    pooled = jnp.concatenate([x[b * S:b * S + 1, :] for b in range(B)], axis=0)  # (B, H)
    sh = jnp.dot(pooled.astype(jnp.bfloat16), ws_ref[...],
                 preferred_element_type=jnp.float32) + bs_ref[...]               # (B, 512)
    lns = lns_ref[...]
    sh = _gelu(_layernorm(sh, lns[0:1, :], lns[1:2, :]))

    # Single lane-dense (512, 3*128) matmul for all three branches.
    big = jnp.dot(sh.astype(jnp.bfloat16), wb1_ref[...],
                  preferred_element_type=jnp.float32)                            # (B, 384)
    # Stack (branch, batch) rows on sublanes: [v_b0, v_b1, a_b0, a_b1, d_b0, d_b1]
    hs = jnp.concatenate(
        [big[:, i * BRANCH:(i + 1) * BRANCH] for i in range(3)], axis=0)         # (3B, 128)
    hs = hs + bb1_ref[...]
    hs = _gelu(_layernorm(hs, g1_ref[...], be1_ref[...]))

    red = jnp.sum(hs * w2b_ref[...], axis=-1, keepdims=True)                     # (3B, 1)
    out = jnp.concatenate([red[i * B:(i + 1) * B, :] for i in range(3)],
                          axis=1) + b2b_ref[...]                                 # (B, 3)
    o_ref[...] = out


# ----------------------------- parameters ------------------------------------
def init_params(key):
    std = 0.02
    ks = iter(jax.random.split(key, 64))
    nrm = lambda shape: std * jax.random.normal(next(ks), shape, jnp.float32)
    ln = lambda d: jnp.stack([jnp.ones((d,), jnp.float32), jnp.zeros((d,), jnp.float32)])

    layers = []
    for _ in range(NUM_LAYERS):
        layers.append((
            nrm((3, H, H)),                     # wqkv (q,k,v) each (H,H)
            jnp.zeros((3, H), jnp.float32),     # bqkv
            nrm((H, H)),                        # wo
            jnp.zeros((1, H), jnp.float32),     # bo
            ln(H),                              # ln1 (gamma; beta)
            nrm((H, FFN)),                      # w1
            jnp.zeros((1, FFN), jnp.float32),   # b1
            nrm((FFN, H)),                      # w2
            jnp.zeros((1, H), jnp.float32),     # b2
            ln(H),                              # ln2
        ))
    tparams = dict(word_emb=nrm((VOCAB, H)), pos_emb=nrm((S, H)), emb_ln=ln(H),
                   layers=layers)
    hparams = (
        nrm((H, SHARED)),                       # shared Linear weight
        jnp.zeros((1, SHARED), jnp.float32),    # shared bias
        ln(SHARED),                             # shared LayerNorm (gamma; beta)
        nrm((3, SHARED, BRANCH)),               # branch Linear(512,128) weights
        jnp.zeros((3, BRANCH), jnp.float32),    # branch biases
        jnp.ones((3, BRANCH), jnp.float32),     # branch LN gamma
        jnp.zeros((3, BRANCH), jnp.float32),    # branch LN beta
        nrm((3, BRANCH)),                       # branch Linear(128,1) weights
        jnp.zeros((1, 3), jnp.float32),         # branch Linear(128,1) biases
    )
    return tparams, hparams


def pack_params(tparams, hparams):
    """Re-lay-out weights for the fused kernel (once, outside the kernel)."""
    scale = 1.0 / math.sqrt(HEAD_DIM)
    bf16 = lambda a: a.astype(jnp.bfloat16)

    def pack_layer(p):
        wqkv, bqkv, wo, bo, ln1, w1, b1, w2, b2, ln2 = p
        # Fold 1/sqrt(HD) into q; flatten q|k|v into one (H, 3H) lane-dense matrix.
        wqkv_flat = jnp.concatenate([wqkv[0] * scale, wqkv[1], wqkv[2]], axis=1)
        bqkv_flat = jnp.concatenate([bqkv[0] * scale, bqkv[1], bqkv[2]], axis=0)[None, :]
        return (bf16(wqkv_flat), bqkv_flat, bf16(wo), bo, ln1,
                bf16(w1), b1, bf16(w2), b2, ln2)

    per_layer = [pack_layer(p) for p in tparams["layers"]]
    stack = lambda i: jnp.stack([lp[i] for lp in per_layer], axis=0)

    ws, bs, lns, w1s, b1s, g1s, be1s, w2s, b2s = hparams
    wb1 = jnp.transpose(w1s, (1, 0, 2)).reshape(SHARED, 3 * BRANCH)   # (512, 384)
    rep = lambda a: jnp.repeat(a, B, axis=0)   # one row per (branch, batch) sublane

    return dict(
        word_emb=tparams["word_emb"], pos_emb=tparams["pos_emb"],
        emb_ln=tparams["emb_ln"],
        wqkv=stack(0), bqkv=stack(1), wo=stack(2), bo=stack(3), ln1=stack(4),
        w1=stack(5), b1=stack(6), w2=stack(7), b2=stack(8), ln2=stack(9),
        ws=bf16(ws), bs=bs, lns=lns,
        wb1=bf16(wb1), bb1=rep(b1s), g1=rep(g1s), be1=rep(be1s),
        w2b=rep(w2s), b2b=b2s,
    )


# ----------------------------- forward ----------------------------------------
def text_vad_forward(input_ids, attention_mask, packed):
    # Tiny block-diagonal additive attention bias (batch folded into sublanes),
    # built outside the kernel: key j is visible to query i iff they belong to
    # the same batch element and attention_mask at key j is 1.
    keym = attention_mask.astype(jnp.float32).reshape(1, BS)          # (1, BS)
    bid = jnp.arange(BS, dtype=jnp.int32) // S
    same = bid[:, None] == bid[None, :]                               # (BS, BS)
    bias = jnp.where(jnp.logical_and(same, keym > 0.5), 0.0, NEG).astype(jnp.float32)

    args = (bias, packed["word_emb"], packed["pos_emb"], packed["emb_ln"],
            packed["wqkv"], packed["bqkv"], packed["wo"], packed["bo"], packed["ln1"],
            packed["w1"], packed["b1"], packed["w2"], packed["b2"], packed["ln2"],
            packed["ws"], packed["bs"], packed["lns"],
            packed["wb1"], packed["bb1"], packed["g1"], packed["be1"],
            packed["w2b"], packed["b2b"])

    # Everything is full-block and VMEM-resident; index_maps take (grid_i, ids_ref).
    full = lambda a: pl.BlockSpec(a.shape, lambda i, ids, _n=a.ndim: (0,) * _n)
    grid_spec = pltpu.PrefetchScalarGridSpec(
        num_scalar_prefetch=1,                 # input_ids -> SMEM
        grid=(1,),                             # single step: batch folded into sublanes
        in_specs=[full(a) for a in args],
        out_specs=pl.BlockSpec((B, 3), lambda i, ids: (0, 0)),
    )

    out = pl.pallas_call(
        fused_forward_kernel,
        out_shape=jax.ShapeDtypeStruct((B, 3), jnp.float32),
        grid_spec=grid_spec,
        compiler_params=pltpu.CompilerParams(dimension_semantics=("arbitrary",)),
    )(input_ids.astype(jnp.int32), *args)
    return out                                                         # (B, 3) = [V, A, D]


# ----------------------------- main -------------------------------------------
if __name__ == "__main__":
    key = jax.random.PRNGKey(0)
    tparams, hparams = init_params(key)
    packed = pack_params(tparams, hparams)

    input_ids = jax.random.randint(jax.random.fold_in(key, 123), (B, S), 0, VOCAB)
    attention_mask = jnp.ones((B, S), jnp.int32).at[1, 6:].set(0)   # pad tail of sample 1

    vad = jax.jit(text_vad_forward)(input_ids, attention_mask, packed)
    vad = jax.block_until_ready(vad)

    assert vad.shape == (B, 3), vad.shape
    assert bool(jnp.all(jnp.isfinite(vad)))
    print("KERNEL_OK")
</pallas_src>

<mosaic_0001>
module attributes {stable_mosaic.version = 11 : i64} {
  func.func @fused_forward_kernel(%arg0: i32, %arg1: memref<2x8xi32, #tpu.memory_space<smem>>, %arg2: memref<16x16xf32, #tpu.memory_space<vmem>>, %arg3: memref<100x64xf32, #tpu.memory_space<vmem>>, %arg4: memref<8x64xf32, #tpu.memory_space<vmem>>, %arg5: memref<2x64xf32, #tpu.memory_space<vmem>>, %arg6: memref<2x64x192xbf16, #tpu.memory_space<vmem>>, %arg7: memref<2x1x192xf32, #tpu.memory_space<vmem>>, %arg8: memref<2x64x64xbf16, #tpu.memory_space<vmem>>, %arg9: memref<2x1x64xf32, #tpu.memory_space<vmem>>, %arg10: memref<2x2x64xf32, #tpu.memory_space<vmem>>, %arg11: memref<2x64x128xbf16, #tpu.memory_space<vmem>>, %arg12: memref<2x1x128xf32, #tpu.memory_space<vmem>>, %arg13: memref<2x128x64xbf16, #tpu.memory_space<vmem>>, %arg14: memref<2x1x64xf32, #tpu.memory_space<vmem>>, %arg15: memref<2x2x64xf32, #tpu.memory_space<vmem>>, %arg16: memref<64x512xbf16, #tpu.memory_space<vmem>>, %arg17: memref<1x512xf32, #tpu.memory_space<vmem>>, %arg18: memref<2x512xf32, #tpu.memory_space<vmem>>, %arg19: memref<512x384xbf16, #tpu.memory_space<vmem>>, %arg20: memref<6x128xf32, #tpu.memory_space<vmem>>, %arg21: memref<6x128xf32, #tpu.memory_space<vmem>>, %arg22: memref<6x128xf32, #tpu.memory_space<vmem>>, %arg23: memref<6x128xf32, #tpu.memory_space<vmem>>, %arg24: memref<1x3xf32, #tpu.memory_space<vmem>>, %arg25: memref<2x3xf32, #tpu.memory_space<vmem>>) attributes {dimension_semantics = [#tpu.dimension_semantics<arbitrary>], iteration_bounds = array<i64: 1>, scalar_prefetch = 1 : i64, scratch_operands = 0 : i64, tpu.core_type = #tpu.core_type<tc>, window_params = [{pipeline_mode = #tpu.pipeline_mode<synchronous>, transform_indices = @transform_0, window_bounds = array<i64: 16, 16>}, {pipeline_mode = #tpu.pipeline_mode<synchronous>, transform_indices = @transform_1, window_bounds = array<i64: 100, 64>}, {pipeline_mode = #tpu.pipeline_mode<synchronous>, transform_indices = @transform_2, window_bounds = array<i64: 8, 64>}, {pipeline_mode = #tpu.pipeline_mode<synchronous>, transform_indices = @transform_3, window_bounds = array<i64: 2, 64>}, {pipeline_mode = #tpu.pipeline_mode<synchronous>, transform_indices = @transform_4, window_bounds = array<i64: 2, 64, 192>}, {pipeline_mode = #tpu.pipeline_mode<synchronous>, transform_indices = @transform_5, window_bounds = array<i64: 2, 1, 192>}, {pipeline_mode = #tpu.pipeline_mode<synchronous>, transform_indices = @transform_6, window_bounds = array<i64: 2, 64, 64>}, {pipeline_mode = #tpu.pipeline_mode<synchronous>, transform_indices = @transform_7, window_bounds = array<i64: 2, 1, 64>}, {pipeline_mode = #tpu.pipeline_mode<synchronous>, transform_indices = @transform_8, window_bounds = array<i64: 2, 2, 64>}, {pipeline_mode = #tpu.pipeline_mode<synchronous>, transform_indices = @transform_9, window_bounds = array<i64: 2, 64, 128>}, {pipeline_mode = #tpu.pipeline_mode<synchronous>, transform_indices = @transform_10, window_bounds = array<i64: 2, 1, 128>}, {pipeline_mode = #tpu.pipeline_mode<synchronous>, transform_indices = @transform_11, window_bounds = array<i64: 2, 128, 64>}, {pipeline_mode = #tpu.pipeline_mode<synchronous>, transform_indices = @transform_12, window_bounds = array<i64: 2, 1, 64>}, {pipeline_mode = #tpu.pipeline_mode<synchronous>, transform_indices = @transform_13, window_bounds = array<i64: 2, 2, 64>}, {pipeline_mode = #tpu.pipeline_mode<synchronous>, transform_indices = @transform_14, window_bounds = array<i64: 64, 512>}, {pipeline_mode = #tpu.pipeline_mode<synchronous>, transform_indices = @transform_15, window_bounds = array<i64: 1, 512>}, {pipeline_mode = #tpu.pipeline_mode<synchronous>, transform_indices = @transform_16, window_bounds = array<i64: 2, 512>}, {pipeline_mode = #tpu.pipeline_mode<synchronous>, transform_indices = @transform_17, window_bounds = array<i64: 512, 384>}, {pipeline_mode = #tpu.pipeline_mode<synchronous>, transform_indices = @transform_18, window_bounds = array<i64: 6, 128>}, {pipeline_mode = #tpu.pipeline_mode<synchronous>, transform_indices = @transform_19, window_bounds = array<i64: 6, 128>}, {pipeline_mode = #tpu.pipeline_mode<synchronous>, transform_indices = @transform_20, window_bounds = array<i64: 6, 128>}, {pipeline_mode = #tpu.pipeline_mode<synchronous>, transform_indices = @transform_21, window_bounds = array<i64: 6, 128>}, {pipeline_mode = #tpu.pipeline_mode<synchronous>, transform_indices = @transform_22, window_bounds = array<i64: 1, 3>}, {pipeline_mode = #tpu.pipeline_mode<synchronous>, transform_indices = @transform_23, window_bounds = array<i64: 2, 3>}]} {
    %c0 = arith.constant 0 : index
    %c0_0 = arith.constant 0 : index
    %0 = memref.load %arg1[%c0, %c0_0] : memref<2x8xi32, #tpu.memory_space<smem>>
    %1 = arith.index_cast %0 : i32 to index
    %c0_1 = arith.constant 0 : index
    %2 = vector.load %arg3[%1, %c0_1] : memref<100x64xf32, #tpu.memory_space<vmem>>, vector<1x64xf32>
    %c0_2 = arith.constant 0 : index
    %c1 = arith.constant 1 : index
    %3 = memref.load %arg1[%c0_2, %c1] : memref<2x8xi32, #tpu.memory_space<smem>>
    %4 = arith.index_cast %3 : i32 to index
    %c0_3 = arith.constant 0 : index
    %5 = vector.load %arg3[%4, %c0_3] : memref<100x64xf32, #tpu.memory_space<vmem>>, vector<1x64xf32>
    %c0_4 = arith.constant 0 : index
    %c2 = arith.constant 2 : index
    %6 = memref.load %arg1[%c0_4, %c2] : memref<2x8xi32, #tpu.memory_space<smem>>
    %7 = arith.index_cast %6 : i32 to index
    %c0_5 = arith.constant 0 : index
    %8 = vector.load %arg3[%7, %c0_5] : memref<100x64xf32, #tpu.memory_space<vmem>>, vector<1x64xf32>
    %c0_6 = arith.constant 0 : index
    %c3 = arith.constant 3 : index
    %9 = memref.load %arg1[%c0_6, %c3] : memref<2x8xi32, #tpu.memory_space<smem>>
    %10 = arith.index_cast %9 : i32 to index
    %c0_7 = arith.constant 0 : index
    %11 = vector.load %arg3[%10, %c0_7] : memref<100x64xf32, #tpu.memory_space<vmem>>, vector<1x64xf32>
    %c0_8 = arith.constant 0 : index
    %c4 = arith.constant 4 : index
    %12 = memref.load %arg1[%c0_8, %c4] : memref<2x8xi32, #tpu.memory_space<smem>>
    %13 = arith.index_cast %12 : i32 to index
    %c0_9 = arith.constant 0 : index
    %14 = vector.load %arg3[%13, %c0_9] : memref<100x64xf32, #tpu.memory_space<vmem>>, vector<1x64xf32>
    %c0_10 = arith.constant 0 : index
    %c5 = arith.constant 5 : index
    %15 = memref.load %arg1[%c0_10, %c5] : memref<2x8xi32, #tpu.memory_space<smem>>
    %16 = arith.index_cast %15 : i32 to index
    %c0_11 = arith.constant 0 : index
    %17 = vector.load %arg3[%16, %c0_11] : memref<100x64xf32, #tpu.memory_space<vmem>>, vector<1x64xf32>
    %c0_12 = arith.constant 0 : index
    %c6 = arith.constant 6 : index
    %18 = memref.load %arg1[%c0_12, %c6] : memref<2x8xi32, #tpu.memory_space<smem>>
    %19 = arith.index_cast %18 : i32 to index
    %c0_13 = arith.constant 0 : index
    %20 = vector.load %arg3[%19, %c0_13] : memref<100x64xf32, #tpu.memory_space<vmem>>, vector<1x64xf32>
    %c0_14 = arith.constant 0 : index
    %c7 = arith.constant 7 : index
    %21 = memref.load %arg1[%c0_14, %c7] : memref<2x8xi32, #tpu.memory_space<smem>>
    %22 = arith.index_cast %21 : i32 to index
    %c0_15 = arith.constant 0 : index
    %23 = vector.load %arg3[%22, %c0_15] : memref<100x64xf32, #tpu.memory_space<vmem>>, vector<1x64xf32>
    %c1_16 = arith.constant 1 : index
    %c0_17 = arith.constant 0 : index
    %24 = memref.load %arg1[%c1_16, %c0_17] : memref<2x8xi32, #tpu.memory_space<smem>>
    %25 = arith.index_cast %24 : i32 to index
    %c0_18 = arith.constant 0 : index
    %26 = vector.load %arg3[%25, %c0_18] : memref<100x64xf32, #tpu.memory_space<vmem>>, vector<1x64xf32>
    %c1_19 = arith.constant 1 : index
    %c1_20 = arith.constant 1 : index
    %27 = memref.load %arg1[%c1_19, %c1_20] : memref<2x8xi32, #tpu.memory_space<smem>>
    %28 = arith.index_cast %27 : i32 to index
    %c0_21 = arith.constant 0 : index
    %29 = vector.load %arg3[%28, %c0_21] : memref<100x64xf32, #tpu.memory_space<vmem>>, vector<1x64xf32>
    %c1_22 = arith.constant 1 : index
    %c2_23 = arith.constant 2 : index
    %30 = memref.load %arg1[%c1_22, %c2_23] : memref<2x8xi32, #tpu.memory_space<smem>>
    %31 = arith.index_cast %30 : i32 to index
    %c0_24 = arith.constant 0 : index
    %32 = vector.load %arg3[%31, %c0_24] : memref<100x64xf32, #tpu.memory_space<vmem>>, vector<1x64xf32>
    %c1_25 = arith.constant 1 : index
    %c3_26 = arith.constant 3 : index
    %33 = memref.load %arg1[%c1_25, %c3_26] : memref<2x8xi32, #tpu.memory_space<smem>>
    %34 = arith.index_cast %33 : i32 to index
    %c0_27 = arith.constant 0 : index
    %35 = vector.load %arg3[%34, %c0_27] : memref<100x64xf32, #tpu.memory_space<vmem>>, vector<1x64xf32>
    %c1_28 = arith.constant 1 : index
    %c4_29 = arith.constant 4 : index
    %36 = memref.load %arg1[%c1_28, %c4_29] : memref<2x8xi32, #tpu.memory_space<smem>>
    %37 = arith.index_cast %36 : i32 to index
    %c0_30 = arith.constant 0 : index
    %38 = vector.load %arg3[%37, %c0_30] : memref<100x64xf32, #tpu.memory_space<vmem>>, vector<1x64xf32>
    %c1_31 = arith.constant 1 : index
    %c5_32 = arith.constant 5 : index
    %39 = memref.load %arg1[%c1_31, %c5_32] : memref<2x8xi32, #tpu.memory_space<smem>>
    %40 = arith.index_cast %39 : i32 to index
    %c0_33 = arith.constant 0 : index
    %41 = vector.load %arg3[%40, %c0_33] : memref<100x64xf32, #tpu.memory_space<vmem>>, vector<1x64xf32>
    %c1_34 = arith.constant 1 : index
    %c6_35 = arith.constant 6 : index
    %42 = memref.load %arg1[%c1_34, %c6_35] : memref<2x8xi32, #tpu.memory_space<smem>>
    %43 = arith.index_cast %42 : i32 to index
    %c0_36 = arith.constant 0 : index
    %44 = vector.load %arg3[%43, %c0_36] : memref<100x64xf32, #tpu.memory_space<vmem>>, vector<1x64xf32>
    %c1_37 = arith.constant 1 : index
    %c7_38 = arith.constant 7 : index
    %45 = memref.load %arg1[%c1_37, %c7_38] : memref<2x8xi32, #tpu.memory_space<smem>>
    %46 = arith.index_cast %45 : i32 to index
    %c0_39 = arith.constant 0 : index
    %47 = vector.load %arg3[%46, %c0_39] : memref<100x64xf32, #tpu.memory_space<vmem>>, vector<1x64xf32>
    %48 = tpu.concatenate %2, %5, %8, %11, %14, %17, %20, %23, %26, %29, %32, %35, %38, %41, %44, %47 in 0 : vector<1x64xf32>, vector<1x64xf32>, vector<1x64xf32>, vector<1x64xf32>, vector<1x64xf32>, vector<1x64xf32>, vector<1x64xf32>, vector<1x64xf32>, vector<1x64xf32>, vector<1x64xf32>, vector<1x64xf32>, vector<1x64xf32>, vector<1x64xf32>, vector<1x64xf32>, vector<1x64xf32>, vector<1x64xf32> -> vector<16x64xf32>
    %c0_40 = arith.constant 0 : index
    %c0_41 = arith.constant 0 : index
    %49 = vector.load %arg4[%c0_40, %c0_41] : memref<8x64xf32, #tpu.memory_space<vmem>>, vector<8x64xf32>
    %50 = tpu.concatenate %49, %49 in 0 : vector<8x64xf32>, vector<8x64xf32> -> vector<16x64xf32>
    %51 = arith.addf %48, %50 : vector<16x64xf32>
    %c0_42 = arith.constant 0 : index
    %c0_43 = arith.constant 0 : index
    %52 = vector.load %arg5[%c0_42, %c0_43] : memref<2x64xf32, #tpu.memory_space<vmem>>, vector<2x64xf32>
    %53 = vector.extract_strided_slice %52 {offsets = [0, 0], sizes = [1, 64], strides = [1, 1]} : vector<2x64xf32> to vector<1x64xf32>
    %54 = vector.extract_strided_slice %52 {offsets = [1, 0], sizes = [1, 64], strides = [1, 1]} : vector<2x64xf32> to vector<1x64xf32>
    %cst = arith.constant dense<0.000000e+00> : vector<16xf32>
    %55 = vector.multi_reduction <add>, %51, %cst [1] : vector<16x64xf32> to vector<16xf32>
    %56 = vector.shape_cast %55 : vector<16xf32> to vector<16x1xf32>
    %cst_44 = arith.constant 6.400000e+01 : f32
    %57 = vector.broadcast %cst_44 : f32 to vector<16x1xf32>
    %58 = arith.divf %56, %57 : vector<16x1xf32>
    %59 = vector.broadcast %58 : vector<16x1xf32> to vector<16x64xf32>
    %60 = arith.subf %51, %59 : vector<16x64xf32>
    %61 = arith.mulf %60, %60 : vector<16x64xf32>
    %cst_45 = arith.constant dense<0.000000e+00> : vector<16xf32>
    %62 = vector.multi_reduction <add>, %61, %cst_45 [1] : vector<16x64xf32> to vector<16xf32>
    %63 = vector.shape_cast %62 : vector<16xf32> to vector<16x1xf32>
    %cst_46 = arith.constant 6.400000e+01 : f32
    %64 = vector.broadcast %cst_46 : f32 to vector<16x1xf32>
    %65 = arith.divf %63, %64 : vector<16x1xf32>
    %66 = vector.broadcast %58 : vector<16x1xf32> to vector<16x64xf32>
    %67 = arith.subf %51, %66 : vector<16x64xf32>
    %cst_47 = arith.constant 9.99999974E-6 : f32
    %68 = vector.broadcast %cst_47 : f32 to vector<16x1xf32>
    %69 = arith.addf %65, %68 : vector<16x1xf32>
    %70 = math.rsqrt %69 : vector<16x1xf32>
    %71 = vector.broadcast %70 : vector<16x1xf32> to vector<16x64xf32>
    %72 = arith.mulf %67, %71 : vector<16x64xf32>
    %73 = vector.broadcast %53 : vector<1x64xf32> to vector<16x64xf32>
    %74 = arith.mulf %72, %73 : vector<16x64xf32>
    %75 = vector.broadcast %54 : vector<1x64xf32> to vector<16x64xf32>
    %76 = arith.addf %74, %75 : vector<16x64xf32>
    %c0_48 = arith.constant 0 : index
    %c0_49 = arith.constant 0 : index
    %77 = vector.load %arg2[%c0_48, %c0_49] : memref<16x16xf32, #tpu.memory_space<vmem>>, vector<16x16xf32>
    %c0_50 = arith.constant 0 : index
    %c0_51 = arith.constant 0 : index
    %c0_52 = arith.constant 0 : index
    %78 = vector.load %arg6[%c0_50, %c0_51, %c0_52] : memref<2x64x192xbf16, #tpu.memory_space<vmem>>, vector<1x64x192xbf16>
    %79 = vector.shape_cast %78 : vector<1x64x192xbf16> to vector<64x192xbf16>
    %c0_53 = arith.constant 0 : index
    %c0_54 = arith.constant 0 : index
    %c0_55 = arith.constant 0 : index
    %80 = vector.load %arg7[%c0_53, %c0_54, %c0_55] : memref<2x1x192xf32, #tpu.memory_space<vmem>>, vector<1x1x192xf32>
    %81 = vector.shape_cast %80 : vector<1x1x192xf32> to vector<1x192xf32>
    %c0_56 = arith.constant 0 : index
    %c0_57 = arith.constant 0 : index
    %c0_58 = arith.constant 0 : index
    %82 = vector.load %arg8[%c0_56, %c0_57, %c0_58] : memref<2x64x64xbf16, #tpu.memory_space<vmem>>, vector<1x64x64xbf16>
    %83 = vector.shape_cast %82 : vector<1x64x64xbf16> to vector<64x64xbf16>
    %c0_59 = arith.constant 0 : index
    %c0_60 = arith.constant 0 : index
    %c0_61 = arith.constant 0 : index
    %84 = vector.load %arg9[%c0_59, %c0_60, %c0_61] : memref<2x1x64xf32, #tpu.memory_space<vmem>>, vector<1x1x64xf32>
    %85 = vector.shape_cast %84 : vector<1x1x64xf32> to vector<1x64xf32>
    %c0_62 = arith.constant 0 : index
    %c0_63 = arith.constant 0 : index
    %c0_64 = arith.constant 0 : index
    %86 = vector.load %arg10[%c0_62, %c0_63, %c0_64] : memref<2x2x64xf32, #tpu.memory_space<vmem>>, vector<1x2x64xf32>
    %87 = vector.shape_cast %86 : vector<1x2x64xf32> to vector<2x64xf32>
    %c0_65 = arith.constant 0 : index
    %c0_66 = arith.constant 0 : index
    %c0_67 = arith.constant 0 : index
    %88 = vector.load %arg11[%c0_65, %c0_66, %c0_67] : memref<2x64x128xbf16, #tpu.memory_space<vmem>>, vector<1x64x128xbf16>
    %89 = vector.shape_cast %88 : vector<1x64x128xbf16> to vector<64x128xbf16>
    %c0_68 = arith.constant 0 : index
    %c0_69 = arith.constant 0 : index
    %c0_70 = arith.constant 0 : index
    %90 = vector.load %arg12[%c0_68, %c0_69, %c0_70] : memref<2x1x128xf32, #tpu.memory_space<vmem>>, vector<1x1x128xf32>
    %91 = vector.shape_cast %90 : vector<1x1x128xf32> to vector<1x128xf32>
    %c0_71 = arith.constant 0 : index
    %c0_72 = arith.constant 0 : index
    %c0_73 = arith.constant 0 : index
    %92 = vector.load %arg13[%c0_71, %c0_72, %c0_73] : memref<2x128x64xbf16, #tpu.memory_space<vmem>>, vector<1x128x64xbf16>
    %93 = vector.shape_cast %92 : vector<1x128x64xbf16> to vector<128x64xbf16>
    %c0_74 = arith.constant 0 : index
    %c0_75 = arith.constant 0 : index
    %c0_76 = arith.constant 0 : index
    %94 = vector.load %arg14[%c0_74, %c0_75, %c0_76] : memref<2x1x64xf32, #tpu.memory_space<vmem>>, vector<1x1x64xf32>
    %95 = vector.shape_cast %94 : vector<1x1x64xf32> to vector<1x64xf32>
    %c0_77 = arith.constant 0 : index
    %c0_78 = arith.constant 0 : index
    %c0_79 = arith.constant 0 : index
    %96 = vector.load %arg15[%c0_77, %c0_78, %c0_79] : memref<2x2x64xf32, #tpu.memory_space<vmem>>, vector<1x2x64xf32>
    %97 = vector.shape_cast %96 : vector<1x2x64xf32> to vector<2x64xf32>
    %98 = arith.truncf %76 : vector<16x64xf32> to vector<16x64xbf16>
    %cst_80 = arith.constant dense<0.000000e+00> : vector<16x192xf32>
    %99 = tpu.matmul %98, %79, %cst_80 {dimension_numbers = #tpu.dot_dimension_numbers<[1], [0], [0], [1], [0, 0, 1, 1], [], []>} : vector<16x64xbf16>, vector<64x192xbf16>, vector<16x192xf32> -> vector<16x192xf32>
    %100 = vector.broadcast %81 : vector<1x192xf32> to vector<16x192xf32>
    %101 = arith.addf %99, %100 : vector<16x192xf32>
    %102 = vector.extract_strided_slice %101 {offsets = [0, 0], sizes = [16, 16], strides = [1, 1]} : vector<16x192xf32> to vector<16x16xf32>
    %103 = vector.extract_strided_slice %101 {offsets = [0, 64], sizes = [16, 16], strides = [1, 1]} : vector<16x192xf32> to vector<16x16xf32>
    %104 = vector.extract_strided_slice %101 {offsets = [0, 128], sizes = [16, 16], strides = [1, 1]} : vector<16x192xf32> to vector<16x16xf32>
    "tpu.trace_start"() <{level = 10 : i32, message = "qd,kd->qk"}> : () -> ()
    %cst_81 = arith.constant dense<0.000000e+00> : vector<16x16xf32>
    %105 = tpu.matmul %102, %103, %cst_81 {dimension_numbers = #tpu.dot_dimension_numbers<[1], [1], [0], [0], [0, 0, 1, 0], [], []>} : vector<16x16xf32>, vector<16x16xf32>, vector<16x16xf32> -> vector<16x16xf32>
    "tpu.trace_stop"() : () -> ()
    %106 = arith.addf %105, %77 : vector<16x16xf32>
    %cst_82 = arith.constant dense<0xFF800000> : vector<16xf32>
    %107 = vector.multi_reduction <maximumf>, %106, %cst_82 [1] : vector<16x16xf32> to vector<16xf32>
    %108 = vector.shape_cast %107 : vector<16xf32> to vector<16x1xf32>
    %109 = vector.broadcast %108 : vector<16x1xf32> to vector<16x16xf32>
    %110 = arith.subf %106, %109 : vector<16x16xf32>
    %111 = math.exp %110 : vector<16x16xf32>
    %cst_83 = arith.constant dense<0.000000e+00> : vector<16xf32>
    %112 = vector.multi_reduction <add>, %111, %cst_83 [1] : vector<16x16xf32> to vector<16xf32>
    %113 = vector.shape_cast %112 : vector<16xf32> to vector<16x1xf32>
    %114 = tpu.reciprocal %113 {approx = true} : vector<16x1xf32> -> vector<16x1xf32>
    %115 = vector.broadcast %114 : vector<16x1xf32> to vector<16x16xf32>
    %116 = arith.mulf %111, %115 : vector<16x16xf32>
    %cst_84 = arith.constant dense<0.000000e+00> : vector<16x16xf32>
    %117 = tpu.matmul %116, %104, %cst_84 {dimension_numbers = #tpu.dot_dimension_numbers<[1], [0], [0], [1], [0, 0, 1, 1], [], []>} : vector<16x16xf32>, vector<16x16xf32>, vector<16x16xf32> -> vector<16x16xf32>
    %118 = vector.extract_strided_slice %101 {offsets = [0, 16], sizes = [16, 16], strides = [1, 1]} : vector<16x192xf32> to vector<16x16xf32>
    %119 = vector.extract_strided_slice %101 {offsets = [0, 80], sizes = [16, 16], strides = [1, 1]} : vector<16x192xf32> to vector<16x16xf32>
    %120 = vector.extract_strided_slice %101 {offsets = [0, 144], sizes = [16, 16], strides = [1, 1]} : vector<16x192xf32> to vector<16x16xf32>
    "tpu.trace_start"() <{level = 10 : i32, message = "qd,kd->qk"}> : () -> ()
    %cst_85 = arith.constant dense<0.000000e+00> : vector<16x16xf32>
    %121 = tpu.matmul %118, %119, %cst_85 {dimension_numbers = #tpu.dot_dimension_numbers<[1], [1], [0], [0], [0, 0, 1, 0], [], []>} : vector<16x16xf32>, vector<16x16xf32>, vector<16x16xf32> -> vector<16x16xf32>
    "tpu.trace_stop"() : () -> ()
    %122 = arith.addf %121, %77 : vector<16x16xf32>
    %cst_86 = arith.constant dense<0xFF800000> : vector<16xf32>
    %123 = vector.multi_reduction <maximumf>, %122, %cst_86 [1] : vector<16x16xf32> to vector<16xf32>
    %124 = vector.shape_cast %123 : vector<16xf32> to vector<16x1xf32>
    %125 = vector.broadcast %124 : vector<16x1xf32> to vector<16x16xf32>
    %126 = arith.subf %122, %125 : vector<16x16xf32>
    %127 = math.exp %126 : vector<16x16xf32>
    %cst_87 = arith.constant dense<0.000000e+00> : vector<16xf32>
    %128 = vector.multi_reduction <add>, %127, %cst_87 [1] : vector<16x16xf32> to vector<16xf32>
    %129 = vector.shape_cast %128 : vector<16xf32> to vector<16x1xf32>
    %130 = tpu.reciprocal %129 {approx = true} : vector<16x1xf32> -> vector<16x1xf32>
    %131 = vector.broadcast %130 : vector<16x1xf32> to vector<16x16xf32>
    %132 = arith.mulf %127, %131 : vector<16x16xf32>
    %cst_88 = arith.constant dense<0.000000e+00> : vector<16x16xf32>
    %133 = tpu.matmul %132, %120, %cst_88 {dimension_numbers = #tpu.dot_dimension_numbers<[1], [0], [0], [1], [0, 0, 1, 1], [], []>} : vector<16x16xf32>, vector<16x16xf32>, vector<16x16xf32> -> vector<16x16xf32>
    %134 = vector.extract_strided_slice %101 {offsets = [0, 32], sizes = [16, 16], strides = [1, 1]} : vector<16x192xf32> to vector<16x16xf32>
    %135 = vector.extract_strided_slice %101 {offsets = [0, 96], sizes = [16, 16], strides = [1, 1]} : vector<16x192xf32> to vector<16x16xf32>
    %136 = vector.extract_strided_slice %101 {offsets = [0, 160], sizes = [16, 16], strides = [1, 1]} : vector<16x192xf32> to vector<16x16xf32>
    "tpu.trace_start"() <{level = 10 : i32, message = "qd,kd->qk"}> : () -> ()
    %cst_89 = arith.constant dense<0.000000e+00> : vector<16x16xf32>
    %137 = tpu.matmul %134, %135, %cst_89 {dimension_numbers = #tpu.dot_dimension_numbers<[1], [1], [0], [0], [0, 0, 1, 0], [], []>} : vector<16x16xf32>, vector<16x16xf32>, vector<16x16xf32> -> vector<16x16xf32>
    "tpu.trace_stop"() : () -> ()
    %138 = arith.addf %137, %77 : vector<16x16xf32>
    %cst_90 = arith.constant dense<0xFF800000> : vector<16xf32>
    %139 = vector.multi_reduction <maximumf>, %138, %cst_90 [1] : vector<16x16xf32> to vector<16xf32>
    %140 = vector.shape_cast %139 : vector<16xf32> to vector<16x1xf32>
    %141 = vector.broadcast %140 : vector<16x1xf32> to vector<16x16xf32>
    %142 = arith.subf %138, %141 : vector<16x16xf32>
    %143 = math.exp %142 : vector<16x16xf32>
    %cst_91 = arith.constant dense<0.000000e+00> : vector<16xf32>
    %144 = vector.multi_reduction <add>, %143, %cst_91 [1] : vector<16x16xf32> to vector<16xf32>
    %145 = vector.shape_cast %144 : vector<16xf32> to vector<16x1xf32>
    %146 = tpu.reciprocal %145 {approx = true} : vector<16x1xf32> -> vector<16x1xf32>
    %147 = vector.broadcast %146 : vector<16x1xf32> to vector<16x16xf32>
    %148 = arith.mulf %143, %147 : vector<16x16xf32>
    %cst_92 = arith.constant dense<0.000000e+00> : vector<16x16xf32>
    %149 = tpu.matmul %148, %136, %cst_92 {dimension_numbers = #tpu.dot_dimension_numbers<[1], [0], [0], [1], [0, 0, 1, 1], [], []>} : vector<16x16xf32>, vector<16x16xf32>, vector<16x16xf32> -> vector<16x16xf32>
    %150 = vector.extract_strided_slice %101 {offsets = [0, 48], sizes = [16, 16], strides = [1, 1]} : vector<16x192xf32> to vector<16x16xf32>
    %151 = vector.extract_strided_slice %101 {offsets = [0, 112], sizes = [16, 16], strides = [1, 1]} : vector<16x192xf32> to vector<16x16xf32>
    %152 = vector.extract_strided_slice %101 {offsets = [0, 176], sizes = [16, 16], strides = [1, 1]} : vector<16x192xf32> to vector<16x16xf32>
    "tpu.trace_start"() <{level = 10 : i32, message = "qd,kd->qk"}> : () -> ()
    %cst_93 = arith.constant dense<0.000000e+00> : vector<16x16xf32>
    %153 = tpu.matmul %150, %151, %cst_93 {dimension_numbers = #tpu.dot_dimension_numbers<[1], [1], [0], [0], [0, 0, 1, 0], [], []>} : vector<16x16xf32>, vector<16x16xf32>, vector<16x16xf32> -> vector<16x16xf32>
    "tpu.trace_stop"() : () -> ()
    %154 = arith.addf %153, %77 : vector<16x16xf32>
    %cst_94 = arith.constant dense<0xFF800000> : vector<16xf32>
    %155 = vector.multi_reduction <maximumf>, %154, %cst_94 [1] : vector<16x16xf32> to vector<16xf32>
    %156 = vector.shape_cast %155 : vector<16xf32> to vector<16x1xf32>
    %157 = vector.broadcast %156 : vector<16x1xf32> to vector<16x16xf32>
    %158 = arith.subf %154, %157 : vector<16x16xf32>
    %159 = math.exp %158 : vector<16x16xf32>
    %cst_95 = arith.constant dense<0.000000e+00> : vector<16xf32>
    %160 = vector.multi_reduction <add>, %159, %cst_95 [1] : vector<16x16xf32> to vector<16xf32>
    %161 = vector.shape_cast %160 : vector<16xf32> to vector<16x1xf32>
    %162 = tpu.reciprocal %161 {approx = true} : vector<16x1xf32> -> vector<16x1xf32>
    %163 = vector.broadcast %162 : vector<16x1xf32> to vector<16x16xf32>
    %164 = arith.mulf %159, %163 : vector<16x16xf32>
    %cst_96 = arith.constant dense<0.000000e+00> : vector<16x16xf32>
    %165 = tpu.matmul %164, %152, %cst_96 {dimension_numbers = #tpu.dot_dimension_numbers<[1], [0], [0], [1], [0, 0, 1, 1], [], []>} : vector<16x16xf32>, vector<16x16xf32>, vector<16x16xf32> -> vector<16x16xf32>
    %166 = tpu.concatenate %117, %133, %149, %165 in 1 : vector<16x16xf32>, vector<16x16xf32>, vector<16x16xf32>, vector<16x16xf32> -> vector<16x64xf32>
    %167 = arith.truncf %166 : vector<16x64xf32> to vector<16x64xbf16>
    %cst_97 = arith.constant dense<0.000000e+00> : vector<16x64xf32>
    %168 = tpu.matmul %167, %83, %cst_97 {dimension_numbers = #tpu.dot_dimension_numbers<[1], [0], [0], [1], [0, 0, 1, 1], [], []>} : vector<16x64xbf16>, vector<64x64xbf16>, vector<16x64xf32> -> vector<16x64xf32>
    %169 = vector.broadcast %85 : vector<1x64xf32> to vector<16x64xf32>
    %170 = arith.addf %168, %169 : vector<16x64xf32>
    %171 = arith.addf %76, %170 : vector<16x64xf32>
    %172 = vector.extract_strided_slice %87 {offsets = [0, 0], sizes = [1, 64], strides = [1, 1]} : vector<2x64xf32> to vector<1x64xf32>
    %173 = vector.extract_strided_slice %87 {offsets = [1, 0], sizes = [1, 64], strides = [1, 1]} : vector<2x64xf32> to vector<1x64xf32>
    %cst_98 = arith.constant dense<0.000000e+00> : vector<16xf32>
    %174 = vector.multi_reduction <add>, %171, %cst_98 [1] : vector<16x64xf32> to vector<16xf32>
    %175 = vector.shape_cast %174 : vector<16xf32> to vector<16x1xf32>
    %cst_99 = arith.constant 6.400000e+01 : f32
    %176 = vector.broadcast %cst_99 : f32 to vector<16x1xf32>
    %177 = arith.divf %175, %176 : vector<16x1xf32>
    %178 = vector.broadcast %177 : vector<16x1xf32> to vector<16x64xf32>
    %179 = arith.subf %171, %178 : vector<16x64xf32>
    %180 = arith.mulf %179, %179 : vector<16x64xf32>
    %cst_100 = arith.constant dense<0.000000e+00> : vector<16xf32>
    %181 = vector.multi_reduction <add>, %180, %cst_100 [1] : vector<16x64xf32> to vector<16xf32>
    %182 = vector.shape_cast %181 : vector<16xf32> to vector<16x1xf32>
    %cst_101 = arith.constant 6.400000e+01 : f32
    %183 = vector.broadcast %cst_101 : f32 to vector<16x1xf32>
    %184 = arith.divf %182, %183 : vector<16x1xf32>
    %185 = vector.broadcast %177 : vector<16x1xf32> to vector<16x64xf32>
    %186 = arith.subf %171, %185 : vector<16x64xf32>
    %cst_102 = arith.constant 9.99999974E-6 : f32
    %187 = vector.broadcast %cst_102 : f32 to vector<16x1xf32>
    %188 = arith.addf %184, %187 : vector<16x1xf32>
    %189 = math.rsqrt %188 : vector<16x1xf32>
    %190 = vector.broadcast %189 : vector<16x1xf32> to vector<16x64xf32>
    %191 = arith.mulf %186, %190 : vector<16x64xf32>
    %192 = vector.broadcast %172 : vector<1x64xf32> to vector<16x64xf32>
    %193 = arith.mulf %191, %192 : vector<16x64xf32>
    %194 = vector.broadcast %173 : vector<1x64xf32> to vector<16x64xf32>
    %195 = arith.addf %193, %194 : vector<16x64xf32>
    %196 = arith.truncf %195 : vector<16x64xf32> to vector<16x64xbf16>
    %cst_103 = arith.constant dense<0.000000e+00> : vector<16x128xf32>
    %197 = tpu.matmul %196, %89, %cst_103 {dimension_numbers = #tpu.dot_dimension_numbers<[1], [0], [0], [1], [0, 0, 1, 1], [], []>} : vector<16x64xbf16>, vector<64x128xbf16>, vector<16x128xf32> -> vector<16x128xf32>
    %198 = vector.broadcast %91 : vector<1x128xf32> to vector<16x128xf32>
    %199 = arith.addf %197, %198 : vector<16x128xf32>
    %cst_104 = arith.constant 5.000000e-01 : f32
    %200 = vector.broadcast %cst_104 : f32 to vector<16x128xf32>
    %201 = arith.mulf %200, %199 : vector<16x128xf32>
    %cst_105 = arith.constant 4.471500e-02 : f32
    %202 = vector.broadcast %cst_105 : f32 to vector<16x128xf32>
    %203 = arith.mulf %202, %199 : vector<16x128xf32>
    %204 = arith.mulf %203, %199 : vector<16x128xf32>
    %205 = arith.mulf %204, %199 : vector<16x128xf32>
    %206 = arith.addf %199, %205 : vector<16x128xf32>
    %cst_106 = arith.constant 0.797884583 : f32
    %207 = vector.broadcast %cst_106 : f32 to vector<16x128xf32>
    %208 = arith.mulf %207, %206 : vector<16x128xf32>
    %209 = math.tanh %208 : vector<16x128xf32>
    %cst_107 = arith.constant 1.000000e+00 : f32
    %210 = vector.broadcast %cst_107 : f32 to vector<16x128xf32>
    %211 = arith.addf %210, %209 : vector<16x128xf32>
    %212 = arith.mulf %201, %211 : vector<16x128xf32>
    %213 = arith.truncf %212 : vector<16x128xf32> to vector<16x128xbf16>
    %cst_108 = arith.constant dense<0.000000e+00> : vector<16x64xf32>
    %214 = tpu.matmul %213, %93, %cst_108 {dimension_numbers = #tpu.dot_dimension_numbers<[1], [0], [0], [1], [0, 0, 1, 1], [], []>} : vector<16x128xbf16>, vector<128x64xbf16>, vector<16x64xf32> -> vector<16x64xf32>
    %215 = vector.broadcast %95 : vector<1x64xf32> to vector<16x64xf32>
    %216 = arith.addf %214, %215 : vector<16x64xf32>
    %217 = arith.addf %195, %216 : vector<16x64xf32>
    %218 = vector.extract_strided_slice %97 {offsets = [0, 0], sizes = [1, 64], strides = [1, 1]} : vector<2x64xf32> to vector<1x64xf32>
    %219 = vector.extract_strided_slice %97 {offsets = [1, 0], sizes = [1, 64], strides = [1, 1]} : vector<2x64xf32> to vector<1x64xf32>
    %cst_109 = arith.constant dense<0.000000e+00> : vector<16xf32>
    %220 = vector.multi_reduction <add>, %217, %cst_109 [1] : vector<16x64xf32> to vector<16xf32>
    %221 = vector.shape_cast %220 : vector<16xf32> to vector<16x1xf32>
    %cst_110 = arith.constant 6.400000e+01 : f32
    %222 = vector.broadcast %cst_110 : f32 to vector<16x1xf32>
    %223 = arith.divf %221, %222 : vector<16x1xf32>
    %224 = vector.broadcast %223 : vector<16x1xf32> to vector<16x64xf32>
    %225 = arith.subf %217, %224 : vector<16x64xf32>
    %226 = arith.mulf %225, %225 : vector<16x64xf32>
    %cst_111 = arith.constant dense<0.000000e+00> : vector<16xf32>
    %227 = vector.multi_reduction <add>, %226, %cst_111 [1] : vector<16x64xf32> to vector<16xf32>
    %228 = vector.shape_cast %227 : vector<16xf32> to vector<16x1xf32>
    %cst_112 = arith.constant 6.400000e+01 : f32
    %229 = vector.broadcast %cst_112 : f32 to vector<16x1xf32>
    %230 = arith.divf %228, %229 : vector<16x1xf32>
    %231 = vector.broadcast %223 : vector<16x1xf32> to vector<16x64xf32>
    %232 = arith.subf %217, %231 : vector<16x64xf32>
    %cst_113 = arith.constant 9.99999974E-6 : f32
    %233 = vector.broadcast %cst_113 : f32 to vector<16x1xf32>
    %234 = arith.addf %230, %233 : vector<16x1xf32>
    %235 = math.rsqrt %234 : vector<16x1xf32>
    %236 = vector.broadcast %235 : vector<16x1xf32> to vector<16x64xf32>
    %237 = arith.mulf %232, %236 : vector<16x64xf32>
    %238 = vector.broadcast %218 : vector<1x64xf32> to vector<16x64xf32>
    %239 = arith.mulf %237, %238 : vector<16x64xf32>
    %240 = vector.broadcast %219 : vector<1x64xf32> to vector<16x64xf32>
    %241 = arith.addf %239, %240 : vector<16x64xf32>
    %c1_114 = arith.constant 1 : index
    %c0_115 = arith.constant 0 : index
    %c0_116 = arith.constant 0 : index
    %242 = vector.load %arg6[%c1_114, %c0_115, %c0_116] : memref<2x64x192xbf16, #tpu.memory_space<vmem>>, vector<1x64x192xbf16>
    %243 = vector.shape_cast %242 : vector<1x64x192xbf16> to vector<64x192xbf16>
    %c1_117 = arith.constant 1 : index
    %c0_118 = arith.constant 0 : index
    %c0_119 = arith.constant 0 : index
    %244 = vector.load %arg7[%c1_117, %c0_118, %c0_119] : memref<2x1x192xf32, #tpu.memory_space<vmem>>, vector<1x1x192xf32>
    %245 = vector.shape_cast %244 : vector<1x1x192xf32> to vector<1x192xf32>
    %c1_120 = arith.constant 1 : index
    %c0_121 = arith.constant 0 : index
    %c0_122 = arith.constant 0 : index
    %246 = vector.load %arg8[%c1_120, %c0_121, %c0_122] : memref<2x64x64xbf16, #tpu.memory_space<vmem>>, vector<1x64x64xbf16>
    %247 = vector.shape_cast %246 : vector<1x64x64xbf16> to vector<64x64xbf16>
    %c1_123 = arith.constant 1 : index
    %c0_124 = arith.constant 0 : index
    %c0_125 = arith.constant 0 : index
    %248 = vector.load %arg9[%c1_123, %c0_124, %c0_125] : memref<2x1x64xf32, #tpu.memory_space<vmem>>, vector<1x1x64xf32>
    %249 = vector.shape_cast %248 : vector<1x1x64xf32> to vector<1x64xf32>
    %c1_126 = arith.constant 1 : index
    %c0_127 = arith.constant 0 : index
    %c0_128 = arith.constant 0 : index
    %250 = vector.load %arg10[%c1_126, %c0_127, %c0_128] : memref<2x2x64xf32, #tpu.memory_space<vmem>>, vector<1x2x64xf32>
    %251 = vector.shape_cast %250 : vector<1x2x64xf32> to vector<2x64xf32>
    %c1_129 = arith.constant 1 : index
    %c0_130 = arith.constant 0 : index
    %c0_131 = arith.constant 0 : index
    %252 = vector.load %arg11[%c1_129, %c0_130, %c0_131] : memref<2x64x128xbf16, #tpu.memory_space<vmem>>, vector<1x64x128xbf16>
    %253 = vector.shape_cast %252 : vector<1x64x128xbf16> to vector<64x128xbf16>
    %c1_132 = arith.constant 1 : index
    %c0_133 = arith.constant 0 : index
    %c0_134 = arith.constant 0 : index
    %254 = vector.load %arg12[%c1_132, %c0_133, %c0_134] : memref<2x1x128xf32, #tpu.memory_space<vmem>>, vector<1x1x128xf32>
    %255 = vector.shape_cast %254 : vector<1x1x128xf32> to vector<1x128xf32>
    %c1_135 = arith.constant 1 : index
    %c0_136 = arith.constant 0 : index
    %c0_137 = arith.constant 0 : index
    %256 = vector.load %arg13[%c1_135, %c0_136, %c0_137] : memref<2x128x64xbf16, #tpu.memory_space<vmem>>, vector<1x128x64xbf16>
    %257 = vector.shape_cast %256 : vector<1x128x64xbf16> to vector<128x64xbf16>
    %c1_138 = arith.constant 1 : index
    %c0_139 = arith.constant 0 : index
    %c0_140 = arith.constant 0 : index
    %258 = vector.load %arg14[%c1_138, %c0_139, %c0_140] : memref<2x1x64xf32, #tpu.memory_space<vmem>>, vector<1x1x64xf32>
    %259 = vector.shape_cast %258 : vector<1x1x64xf32> to vector<1x64xf32>
    %c1_141 = arith.constant 1 : index
    %c0_142 = arith.constant 0 : index
    %c0_143 = arith.constant 0 : index
    %260 = vector.load %arg15[%c1_141, %c0_142, %c0_143] : memref<2x2x64xf32, #tpu.memory_space<vmem>>, vector<1x2x64xf32>
    %261 = vector.shape_cast %260 : vector<1x2x64xf32> to vector<2x64xf32>
    %262 = arith.truncf %241 : vector<16x64xf32> to vector<16x64xbf16>
    %cst_144 = arith.constant dense<0.000000e+00> : vector<16x192xf32>
    %263 = tpu.matmul %262, %243, %cst_144 {dimension_numbers = #tpu.dot_dimension_numbers<[1], [0], [0], [1], [0, 0, 1, 1], [], []>} : vector<16x64xbf16>, vector<64x192xbf16>, vector<16x192xf32> -> vector<16x192xf32>
    %264 = vector.broadcast %245 : vector<1x192xf32> to vector<16x192xf32>
    %265 = arith.addf %263, %264 : vector<16x192xf32>
    %266 = vector.extract_strided_slice %265 {offsets = [0, 0], sizes = [16, 16], strides = [1, 1]} : vector<16x192xf32> to vector<16x16xf32>
    %267 = vector.extract_strided_slice %265 {offsets = [0, 64], sizes = [16, 16], strides = [1, 1]} : vector<16x192xf32> to vector<16x16xf32>
    %268 = vector.extract_strided_slice %265 {offsets = [0, 128], sizes = [16, 16], strides = [1, 1]} : vector<16x192xf32> to vector<16x16xf32>
    "tpu.trace_start"() <{level = 10 : i32, message = "qd,kd->qk"}> : () -> ()
    %cst_145 = arith.constant dense<0.000000e+00> : vector<16x16xf32>
    %269 = tpu.matmul %266, %267, %cst_145 {dimension_numbers = #tpu.dot_dimension_numbers<[1], [1], [0], [0], [0, 0, 1, 0], [], []>} : vector<16x16xf32>, vector<16x16xf32>, vector<16x16xf32> -> vector<16x16xf32>
    "tpu.trace_stop"() : () -> ()
    %270 = arith.addf %269, %77 : vector<16x16xf32>
    %cst_146 = arith.constant dense<0xFF800000> : vector<16xf32>
    %271 = vector.multi_reduction <maximumf>, %270, %cst_146 [1] : vector<16x16xf32> to vector<16xf32>
    %272 = vector.shape_cast %271 : vector<16xf32> to vector<16x1xf32>
    %273 = vector.broadcast %272 : vector<16x1xf32> to vector<16x16xf32>
    %274 = arith.subf %270, %273 : vector<16x16xf32>
    %275 = math.exp %274 : vector<16x16xf32>
    %cst_147 = arith.constant dense<0.000000e+00> : vector<16xf32>
    %276 = vector.multi_reduction <add>, %275, %cst_147 [1] : vector<16x16xf32> to vector<16xf32>
    %277 = vector.shape_cast %276 : vector<16xf32> to vector<16x1xf32>
    %278 = tpu.reciprocal %277 {approx = true} : vector<16x1xf32> -> vector<16x1xf32>
    %279 = vector.broadcast %278 : vector<16x1xf32> to vector<16x16xf32>
    %280 = arith.mulf %275, %279 : vector<16x16xf32>
    %cst_148 = arith.constant dense<0.000000e+00> : vector<16x16xf32>
    %281 = tpu.matmul %280, %268, %cst_148 {dimension_numbers = #tpu.dot_dimension_numbers<[1], [0], [0], [1], [0, 0, 1, 1], [], []>} : vector<16x16xf32>, vector<16x16xf32>, vector<16x16xf32> -> vector<16x16xf32>
    %282 = vector.extract_strided_slice %265 {offsets = [0, 16], sizes = [16, 16], strides = [1, 1]} : vector<16x192xf32> to vector<16x16xf32>
    %283 = vector.extract_strided_slice %265 {offsets = [0, 80], sizes = [16, 16], strides = [1, 1]} : vector<16x192xf32> to vector<16x16xf32>
    %284 = vector.extract_strided_slice %265 {offsets = [0, 144], sizes = [16, 16], strides = [1, 1]} : vector<16x192xf32> to vector<16x16xf32>
    "tpu.trace_start"() <{level = 10 : i32, message = "qd,kd->qk"}> : () -> ()
    %cst_149 = arith.constant dense<0.000000e+00> : vector<16x16xf32>
    %285 = tpu.matmul %282, %283, %cst_149 {dimension_numbers = #tpu.dot_dimension_numbers<[1], [1], [0], [0], [0, 0, 1, 0], [], []>} : vector<16x16xf32>, vector<16x16xf32>, vector<16x16xf32> -> vector<16x16xf32>
    "tpu.trace_stop"() : () -> ()
    %286 = arith.addf %285, %77 : vector<16x16xf32>
    %cst_150 = arith.constant dense<0xFF800000> : vector<16xf32>
    %287 = vector.multi_reduction <maximumf>, %286, %cst_150 [1] : vector<16x16xf32> to vector<16xf32>
    %288 = vector.shape_cast %287 : vector<16xf32> to vector<16x1xf32>
    %289 = vector.broadcast %288 : vector<16x1xf32> to vector<16x16xf32>
    %290 = arith.subf %286, %289 : vector<16x16xf32>
    %291 = math.exp %290 : vector<16x16xf32>
    %cst_151 = arith.constant dense<0.000000e+00> : vector<16xf32>
    %292 = vector.multi_reduction <add>, %291, %cst_151 [1] : vector<16x16xf32> to vector<16xf32>
    %293 = vector.shape_cast %292 : vector<16xf32> to vector<16x1xf32>
    %294 = tpu.reciprocal %293 {approx = true} : vector<16x1xf32> -> vector<16x1xf32>
    %295 = vector.broadcast %294 : vector<16x1xf32> to vector<16x16xf32>
    %296 = arith.mulf %291, %295 : vector<16x16xf32>
    %cst_152 = arith.constant dense<0.000000e+00> : vector<16x16xf32>
    %297 = tpu.matmul %296, %284, %cst_152 {dimension_numbers = #tpu.dot_dimension_numbers<[1], [0], [0], [1], [0, 0, 1, 1], [], []>} : vector<16x16xf32>, vector<16x16xf32>, vector<16x16xf32> -> vector<16x16xf32>
    %298 = vector.extract_strided_slice %265 {offsets = [0, 32], sizes = [16, 16], strides = [1, 1]} : vector<16x192xf32> to vector<16x16xf32>
    %299 = vector.extract_strided_slice %265 {offsets = [0, 96], sizes = [16, 16], strides = [1, 1]} : vector<16x192xf32> to vector<16x16xf32>
    %300 = vector.extract_strided_slice %265 {offsets = [0, 160], sizes = [16, 16], strides = [1, 1]} : vector<16x192xf32> to vector<16x16xf32>
    "tpu.trace_start"() <{level = 10 : i32, message = "qd,kd->qk"}> : () -> ()
    %cst_153 = arith.constant dense<0.000000e+00> : vector<16x16xf32>
    %301 = tpu.matmul %298, %299, %cst_153 {dimension_numbers = #tpu.dot_dimension_numbers<[1], [1], [0], [0], [0, 0, 1, 0], [], []>} : vector<16x16xf32>, vector<16x16xf32>, vector<16x16xf32> -> vector<16x16xf32>
    "tpu.trace_stop"() : () -> ()
    %302 = arith.addf %301, %77 : vector<16x16xf32>
    %cst_154 = arith.constant dense<0xFF800000> : vector<16xf32>
    %303 = vector.multi_reduction <maximumf>, %302, %cst_154 [1] : vector<16x16xf32> to vector<16xf32>
    %304 = vector.shape_cast %303 : vector<16xf32> to vector<16x1xf32>
    %305 = vector.broadcast %304 : vector<16x1xf32> to vector<16x16xf32>
    %306 = arith.subf %302, %305 : vector<16x16xf32>
    %307 = math.exp %306 : vector<16x16xf32>
    %cst_155 = arith.constant dense<0.000000e+00> : vector<16xf32>
    %308 = vector.multi_reduction <add>, %307, %cst_155 [1] : vector<16x16xf32> to vector<16xf32>
    %309 = vector.shape_cast %308 : vector<16xf32> to vector<16x1xf32>
    %310 = tpu.reciprocal %309 {approx = true} : vector<16x1xf32> -> vector<16x1xf32>
    %311 = vector.broadcast %310 : vector<16x1xf32> to vector<16x16xf32>
    %312 = arith.mulf %307, %311 : vector<16x16xf32>
    %cst_156 = arith.constant dense<0.000000e+00> : vector<16x16xf32>
    %313 = tpu.matmul %312, %300, %cst_156 {dimension_numbers = #tpu.dot_dimension_numbers<[1], [0], [0], [1], [0, 0, 1, 1], [], []>} : vector<16x16xf32>, vector<16x16xf32>, vector<16x16xf32> -> vector<16x16xf32>
    %314 = vector.extract_strided_slice %265 {offsets = [0, 48], sizes = [16, 16], strides = [1, 1]} : vector<16x192xf32> to vector<16x16xf32>
    %315 = vector.extract_strided_slice %265 {offsets = [0, 112], sizes = [16, 16], strides = [1, 1]} : vector<16x192xf32> to vector<16x16xf32>
    %316 = vector.extract_strided_slice %265 {offsets = [0, 176], sizes = [16, 16], strides = [1, 1]} : vector<16x192xf32> to vector<16x16xf32>
    "tpu.trace_start"() <{level = 10 : i32, message = "qd,kd->qk"}> : () -> ()
    %cst_157 = arith.constant dense<0.000000e+00> : vector<16x16xf32>
    %317 = tpu.matmul %314, %315, %cst_157 {dimension_numbers = #tpu.dot_dimension_numbers<[1], [1], [0], [0], [0, 0, 1, 0], [], []>} : vector<16x16xf32>, vector<16x16xf32>, vector<16x16xf32> -> vector<16x16xf32>
    "tpu.trace_stop"() : () -> ()
    %318 = arith.addf %317, %77 : vector<16x16xf32>
    %cst_158 = arith.constant dense<0xFF800000> : vector<16xf32>
    %319 = vector.multi_reduction <maximumf>, %318, %cst_158 [1] : vector<16x16xf32> to vector<16xf32>
    %320 = vector.shape_cast %319 : vector<16xf32> to vector<16x1xf32>
    %321 = vector.broadcast %320 : vector<16x1xf32> to vector<16x16xf32>
    %322 = arith.subf %318, %321 : vector<16x16xf32>
    %323 = math.exp %322 : vector<16x16xf32>
    %cst_159 = arith.constant dense<0.000000e+00> : vector<16xf32>
    %324 = vector.multi_reduction <add>, %323, %cst_159 [1] : vector<16x16xf32> to vector<16xf32>
    %325 = vector.shape_cast %324 : vector<16xf32> to vector<16x1xf32>
    %326 = tpu.reciprocal %325 {approx = true} : vector<16x1xf32> -> vector<16x1xf32>
    %327 = vector.broadcast %326 : vector<16x1xf32> to vector<16x16xf32>
    %328 = arith.mulf %323, %327 : vector<16x16xf32>
    %cst_160 = arith.constant dense<0.000000e+00> : vector<16x16xf32>
    %329 = tpu.matmul %328, %316, %cst_160 {dimension_numbers = #tpu.dot_dimension_numbers<[1], [0], [0], [1], [0, 0, 1, 1], [], []>} : vector<16x16xf32>, vector<16x16xf32>, vector<16x16xf32> -> vector<16x16xf32>
    %330 = tpu.concatenate %281, %297, %313, %329 in 1 : vector<16x16xf32>, vector<16x16xf32>, vector<16x16xf32>, vector<16x16xf32> -> vector<16x64xf32>
    %331 = arith.truncf %330 : vector<16x64xf32> to vector<16x64xbf16>
    %cst_161 = arith.constant dense<0.000000e+00> : vector<16x64xf32>
    %332 = tpu.matmul %331, %247, %cst_161 {dimension_numbers = #tpu.dot_dimension_numbers<[1], [0], [0], [1], [0, 0, 1, 1], [], []>} : vector<16x64xbf16>, vector<64x64xbf16>, vector<16x64xf32> -> vector<16x64xf32>
    %333 = vector.broadcast %249 : vector<1x64xf32> to vector<16x64xf32>
    %334 = arith.addf %332, %333 : vector<16x64xf32>
    %335 = arith.addf %241, %334 : vector<16x64xf32>
    %336 = vector.extract_strided_slice %251 {offsets = [0, 0], sizes = [1, 64], strides = [1, 1]} : vector<2x64xf32> to vector<1x64xf32>
    %337 = vector.extract_strided_slice %251 {offsets = [1, 0], sizes = [1, 64], strides = [1, 1]} : vector<2x64xf32> to vector<1x64xf32>
    %cst_162 = arith.constant dense<0.000000e+00> : vector<16xf32>
    %338 = vector.multi_reduction <add>, %335, %cst_162 [1] : vector<16x64xf32> to vector<16xf32>
    %339 = vector.shape_cast %338 : vector<16xf32> to vector<16x1xf32>
    %cst_163 = arith.constant 6.400000e+01 : f32
    %340 = vector.broadcast %cst_163 : f32 to vector<16x1xf32>
    %341 = arith.divf %339, %340 : vector<16x1xf32>
    %342 = vector.broadcast %341 : vector<16x1xf32> to vector<16x64xf32>
    %343 = arith.subf %335, %342 : vector<16x64xf32>
    %344 = arith.mulf %343, %343 : vector<16x64xf32>
    %cst_164 = arith.constant dense<0.000000e+00> : vector<16xf32>
    %345 = vector.multi_reduction <add>, %344, %cst_164 [1] : vector<16x64xf32> to vector<16xf32>
    %346 = vector.shape_cast %345 : vector<16xf32> to vector<16x1xf32>
    %cst_165 = arith.constant 6.400000e+01 : f32
    %347 = vector.broadcast %cst_165 : f32 to vector<16x1xf32>
    %348 = arith.divf %346, %347 : vector<16x1xf32>
    %349 = vector.broadcast %341 : vector<16x1xf32> to vector<16x64xf32>
    %350 = arith.subf %335, %349 : vector<16x64xf32>
    %cst_166 = arith.constant 9.99999974E-6 : f32
    %351 = vector.broadcast %cst_166 : f32 to vector<16x1xf32>
    %352 = arith.addf %348, %351 : vector<16x1xf32>
    %353 = math.rsqrt %352 : vector<16x1xf32>
    %354 = vector.broadcast %353 : vector<16x1xf32> to vector<16x64xf32>
    %355 = arith.mulf %350, %354 : vector<16x64xf32>
    %356 = vector.broadcast %336 : vector<1x64xf32> to vector<16x64xf32>
    %357 = arith.mulf %355, %356 : vector<16x64xf32>
    %358 = vector.broadcast %337 : vector<1x64xf32> to vector<16x64xf32>
    %359 = arith.addf %357, %358 : vector<16x64xf32>
    %360 = arith.truncf %359 : vector<16x64xf32> to vector<16x64xbf16>
    %cst_167 = arith.constant dense<0.000000e+00> : vector<16x128xf32>
    %361 = tpu.matmul %360, %253, %cst_167 {dimension_numbers = #tpu.dot_dimension_numbers<[1], [0], [0], [1], [0, 0, 1, 1], [], []>} : vector<16x64xbf16>, vector<64x128xbf16>, vector<16x128xf32> -> vector<16x128xf32>
    %362 = vector.broadcast %255 : vector<1x128xf32> to vector<16x128xf32>
    %363 = arith.addf %361, %362 : vector<16x128xf32>
    %cst_168 = arith.constant 5.000000e-01 : f32
    %364 = vector.broadcast %cst_168 : f32 to vector<16x128xf32>
    %365 = arith.mulf %364, %363 : vector<16x128xf32>
    %cst_169 = arith.constant 4.471500e-02 : f32
    %366 = vector.broadcast %cst_169 : f32 to vector<16x128xf32>
    %367 = arith.mulf %366, %363 : vector<16x128xf32>
    %368 = arith.mulf %367, %363 : vector<16x128xf32>
    %369 = arith.mulf %368, %363 : vector<16x128xf32>
    %370 = arith.addf %363, %369 : vector<16x128xf32>
    %cst_170 = arith.constant 0.797884583 : f32
    %371 = vector.broadcast %cst_170 : f32 to vector<16x128xf32>
    %372 = arith.mulf %371, %370 : vector<16x128xf32>
    %373 = math.tanh %372 : vector<16x128xf32>
    %cst_171 = arith.constant 1.000000e+00 : f32
    %374 = vector.broadcast %cst_171 : f32 to vector<16x128xf32>
    %375 = arith.addf %374, %373 : vector<16x128xf32>
    %376 = arith.mulf %365, %375 : vector<16x128xf32>
    %377 = arith.truncf %376 : vector<16x128xf32> to vector<16x128xbf16>
    %cst_172 = arith.constant dense<0.000000e+00> : vector<16x64xf32>
    %378 = tpu.matmul %377, %257, %cst_172 {dimension_numbers = #tpu.dot_dimension_numbers<[1], [0], [0], [1], [0, 0, 1, 1], [], []>} : vector<16x128xbf16>, vector<128x64xbf16>, vector<16x64xf32> -> vector<16x64xf32>
    %379 = vector.broadcast %259 : vector<1x64xf32> to vector<16x64xf32>
    %380 = arith.addf %378, %379 : vector<16x64xf32>
    %381 = arith.addf %359, %380 : vector<16x64xf32>
    %382 = vector.extract_strided_slice %261 {offsets = [0, 0], sizes = [1, 64], strides = [1, 1]} : vector<2x64xf32> to vector<1x64xf32>
    %383 = vector.extract_strided_slice %261 {offsets = [1, 0], sizes = [1, 64], strides = [1, 1]} : vector<2x64xf32> to vector<1x64xf32>
    %cst_173 = arith.constant dense<0.000000e+00> : vector<16xf32>
    %384 = vector.multi_reduction <add>, %381, %cst_173 [1] : vector<16x64xf32> to vector<16xf32>
    %385 = vector.shape_cast %384 : vector<16xf32> to vector<16x1xf32>
    %cst_174 = arith.constant 6.400000e+01 : f32
    %386 = vector.broadcast %cst_174 : f32 to vector<16x1xf32>
    %387 = arith.divf %385, %386 : vector<16x1xf32>
    %388 = vector.broadcast %387 : vector<16x1xf32> to vector<16x64xf32>
    %389 = arith.subf %381, %388 : vector<16x64xf32>
    %390 = arith.mulf %389, %389 : vector<16x64xf32>
    %cst_175 = arith.constant dense<0.000000e+00> : vector<16xf32>
    %391 = vector.multi_reduction <add>, %390, %cst_175 [1] : vector<16x64xf32> to vector<16xf32>
    %392 = vector.shape_cast %391 : vector<16xf32> to vector<16x1xf32>
    %cst_176 = arith.constant 6.400000e+01 : f32
    %393 = vector.broadcast %cst_176 : f32 to vector<16x1xf32>
    %394 = arith.divf %392, %393 : vector<16x1xf32>
    %395 = vector.broadcast %387 : vector<16x1xf32> to vector<16x64xf32>
    %396 = arith.subf %381, %395 : vector<16x64xf32>
    %cst_177 = arith.constant 9.99999974E-6 : f32
    %397 = vector.broadcast %cst_177 : f32 to vector<16x1xf32>
    %398 = arith.addf %394, %397 : vector<16x1xf32>
    %399 = math.rsqrt %398 : vector<16x1xf32>
    %400 = vector.broadcast %399 : vector<16x1xf32> to vector<16x64xf32>
    %401 = arith.mulf %396, %400 : vector<16x64xf32>
    %402 = vector.broadcast %382 : vector<1x64xf32> to vector<16x64xf32>
    %403 = arith.mulf %401, %402 : vector<16x64xf32>
    %404 = vector.broadcast %383 : vector<1x64xf32> to vector<16x64xf32>
    %405 = arith.addf %403, %404 : vector<16x64xf32>
    %406 = vector.extract_strided_slice %405 {offsets = [0, 0], sizes = [1, 64], strides = [1, 1]} : vector<16x64xf32> to vector<1x64xf32>
    %407 = vector.extract_strided_slice %405 {offsets = [8, 0], sizes = [1, 64], strides = [1, 1]} : vector<16x64xf32> to vector<1x64xf32>
    %408 = tpu.concatenate %406, %407 in 0 : vector<1x64xf32>, vector<1x64xf32> -> vector<2x64xf32>
    %409 = arith.truncf %408 : vector<2x64xf32> to vector<2x64xbf16>
    %c0_178 = arith.constant 0 : index
    %c0_179 = arith.constant 0 : index
    %410 = vector.load %arg16[%c0_178, %c0_179] : memref<64x512xbf16, #tpu.memory_space<vmem>>, vector<64x512xbf16>
    %cst_180 = arith.constant dense<0.000000e+00> : vector<2x512xf32>
    %411 = tpu.matmul %409, %410, %cst_180 {dimension_numbers = #tpu.dot_dimension_numbers<[1], [0], [0], [1], [0, 0, 1, 1], [], []>} : vector<2x64xbf16>, vector<64x512xbf16>, vector<2x512xf32> -> vector<2x512xf32>
    %c0_181 = arith.constant 0 : index
    %c0_182 = arith.constant 0 : index
    %412 = vector.load %arg17[%c0_181, %c0_182] : memref<1x512xf32, #tpu.memory_space<vmem>>, vector<1x512xf32>
    %413 = vector.broadcast %412 : vector<1x512xf32> to vector<2x512xf32>
    %414 = arith.addf %411, %413 : vector<2x512xf32>
    %c0_183 = arith.constant 0 : index
    %c0_184 = arith.constant 0 : index
    %415 = vector.load %arg18[%c0_183, %c0_184] : memref<2x512xf32, #tpu.memory_space<vmem>>, vector<2x512xf32>
    %416 = vector.extract_strided_slice %415 {offsets = [0, 0], sizes = [1, 512], strides = [1, 1]} : vector<2x512xf32> to vector<1x512xf32>
    %417 = vector.extract_strided_slice %415 {offsets = [1, 0], sizes = [1, 512], strides = [1, 1]} : vector<2x512xf32> to vector<1x512xf32>
    %cst_185 = arith.constant dense<0.000000e+00> : vector<2xf32>
    %418 = vector.multi_reduction <add>, %414, %cst_185 [1] : vector<2x512xf32> to vector<2xf32>
    %419 = vector.shape_cast %418 : vector<2xf32> to vector<2x1xf32>
    %cst_186 = arith.constant 5.120000e+02 : f32
    %420 = vector.broadcast %cst_186 : f32 to vector<2x1xf32>
    %421 = arith.divf %419, %420 : vector<2x1xf32>
    %422 = vector.broadcast %421 : vector<2x1xf32> to vector<2x512xf32>
    %423 = arith.subf %414, %422 : vector<2x512xf32>
    %424 = arith.mulf %423, %423 : vector<2x512xf32>
    %cst_187 = arith.constant dense<0.000000e+00> : vector<2xf32>
    %425 = vector.multi_reduction <add>, %424, %cst_187 [1] : vector<2x512xf32> to vector<2xf32>
    %426 = vector.shape_cast %425 : vector<2xf32> to vector<2x1xf32>
    %cst_188 = arith.constant 5.120000e+02 : f32
    %427 = vector.broadcast %cst_188 : f32 to vector<2x1xf32>
    %428 = arith.divf %426, %427 : vector<2x1xf32>
    %429 = vector.broadcast %421 : vector<2x1xf32> to vector<2x512xf32>
    %430 = arith.subf %414, %429 : vector<2x512xf32>
    %cst_189 = arith.constant 9.99999974E-6 : f32
    %431 = vector.broadcast %cst_189 : f32 to vector<2x1xf32>
    %432 = arith.addf %428, %431 : vector<2x1xf32>
    %433 = math.rsqrt %432 : vector<2x1xf32>
    %434 = vector.broadcast %433 : vector<2x1xf32> to vector<2x512xf32>
    %435 = arith.mulf %430, %434 : vector<2x512xf32>
    %436 = vector.broadcast %416 : vector<1x512xf32> to vector<2x512xf32>
    %437 = arith.mulf %435, %436 : vector<2x512xf32>
    %438 = vector.broadcast %417 : vector<1x512xf32> to vector<2x512xf32>
    %439 = arith.addf %437, %438 : vector<2x512xf32>
    %cst_190 = arith.constant 5.000000e-01 : f32
    %440 = vector.broadcast %cst_190 : f32 to vector<2x512xf32>
    %441 = arith.mulf %440, %439 : vector<2x512xf32>
    %cst_191 = arith.constant 4.471500e-02 : f32
    %442 = vector.broadcast %cst_191 : f32 to vector<2x512xf32>
    %443 = arith.mulf %442, %439 : vector<2x512xf32>
    %444 = arith.mulf %443, %439 : vector<2x512xf32>
    %445 = arith.mulf %444, %439 : vector<2x512xf32>
    %446 = arith.addf %439, %445 : vector<2x512xf32>
    %cst_192 = arith.constant 0.797884583 : f32
    %447 = vector.broadcast %cst_192 : f32 to vector<2x512xf32>
    %448 = arith.mulf %447, %446 : vector<2x512xf32>
    %449 = math.tanh %448 : vector<2x512xf32>
    %cst_193 = arith.constant 1.000000e+00 : f32
    %450 = vector.broadcast %cst_193 : f32 to vector<2x512xf32>
    %451 = arith.addf %450, %449 : vector<2x512xf32>
    %452 = arith.mulf %441, %451 : vector<2x512xf32>
    %453 = arith.truncf %452 : vector<2x512xf32> to vector<2x512xbf16>
    %c0_194 = arith.constant 0 : index
    %c0_195 = arith.constant 0 : index
    %454 = vector.load %arg19[%c0_194, %c0_195] : memref<512x384xbf16, #tpu.memory_space<vmem>>, vector<512x384xbf16>
    %cst_196 = arith.constant dense<0.000000e+00> : vector<2x384xf32>
    %455 = tpu.matmul %453, %454, %cst_196 {dimension_numbers = #tpu.dot_dimension_numbers<[1], [0], [0], [1], [0, 0, 1, 1], [], []>} : vector<2x512xbf16>, vector<512x384xbf16>, vector<2x384xf32> -> vector<2x384xf32>
    %456 = vector.extract_strided_slice %455 {offsets = [0, 0], sizes = [2, 128], strides = [1, 1]} : vector<2x384xf32> to vector<2x128xf32>
    %457 = vector.extract_strided_slice %455 {offsets = [0, 128], sizes = [2, 128], strides = [1, 1]} : vector<2x384xf32> to vector<2x128xf32>
    %458 = vector.extract_strided_slice %455 {offsets = [0, 256], sizes = [2, 128], strides = [1, 1]} : vector<2x384xf32> to vector<2x128xf32>
    %459 = tpu.concatenate %456, %457, %458 in 0 : vector<2x128xf32>, vector<2x128xf32>, vector<2x128xf32> -> vector<6x128xf32>
    %c0_197 = arith.constant 0 : index
    %c0_198 = arith.constant 0 : index
    %460 = vector.load %arg20[%c0_197, %c0_198] : memref<6x128xf32, #tpu.memory_space<vmem>>, vector<6x128xf32>
    %461 = arith.addf %459, %460 : vector<6x128xf32>
    %c0_199 = arith.constant 0 : index
    %c0_200 = arith.constant 0 : index
    %462 = vector.load %arg21[%c0_199, %c0_200] : memref<6x128xf32, #tpu.memory_space<vmem>>, vector<6x128xf32>
    %c0_201 = arith.constant 0 : index
    %c0_202 = arith.constant 0 : index
    %463 = vector.load %arg22[%c0_201, %c0_202] : memref<6x128xf32, #tpu.memory_space<vmem>>, vector<6x128xf32>
    %cst_203 = arith.constant dense<0.000000e+00> : vector<6xf32>
    %464 = vector.multi_reduction <add>, %461, %cst_203 [1] : vector<6x128xf32> to vector<6xf32>
    %465 = vector.shape_cast %464 : vector<6xf32> to vector<6x1xf32>
    %cst_204 = arith.constant 1.280000e+02 : f32
    %466 = vector.broadcast %cst_204 : f32 to vector<6x1xf32>
    %467 = arith.divf %465, %466 : vector<6x1xf32>
    %468 = vector.broadcast %467 : vector<6x1xf32> to vector<6x128xf32>
    %469 = arith.subf %461, %468 : vector<6x128xf32>
    %470 = arith.mulf %469, %469 : vector<6x128xf32>
    %cst_205 = arith.constant dense<0.000000e+00> : vector<6xf32>
    %471 = vector.multi_reduction <add>, %470, %cst_205 [1] : vector<6x128xf32> to vector<6xf32>
    %472 = vector.shape_cast %471 : vector<6xf32> to vector<6x1xf32>
    %cst_206 = arith.constant 1.280000e+02 : f32
    %473 = vector.broadcast %cst_206 : f32 to vector<6x1xf32>
    %474 = arith.divf %472, %473 : vector<6x1xf32>
    %475 = vector.broadcast %467 : vector<6x1xf32> to vector<6x128xf32>
    %476 = arith.subf %461, %475 : vector<6x128xf32>
    %cst_207 = arith.constant 9.99999974E-6 : f32
    %477 = vector.broadcast %cst_207 : f32 to vector<6x1xf32>
    %478 = arith.addf %474, %477 : vector<6x1xf32>
    %479 = math.rsqrt %478 : vector<6x1xf32>
    %480 = vector.broadcast %479 : vector<6x1xf32> to vector<6x128xf32>
    %481 = arith.mulf %476, %480 : vector<6x128xf32>
    %482 = arith.mulf %481, %462 : vector<6x128xf32>
    %483 = arith.addf %482, %463 : vector<6x128xf32>
    %cst_208 = arith.constant 5.000000e-01 : f32
    %484 = vector.broadcast %cst_208 : f32 to vector<6x128xf32>
    %485 = arith.mulf %484, %483 : vector<6x128xf32>
    %cst_209 = arith.constant 4.471500e-02 : f32
    %486 = vector.broadcast %cst_209 : f32 to vector<6x128xf32>
    %487 = arith.mulf %486, %483 : vector<6x128xf32>
    %488 = arith.mulf %487, %483 : vector<6x128xf32>
    %489 = arith.mulf %488, %483 : vector<6x128xf32>
    %490 = arith.addf %483, %489 : vector<6x128xf32>
    %cst_210 = arith.constant 0.797884583 : f32
    %491 = vector.broadcast %cst_210 : f32 to vector<6x128xf32>
    %492 = arith.mulf %491, %490 : vector<6x128xf32>
    %493 = math.tanh %492 : vector<6x128xf32>
    %cst_211 = arith.constant 1.000000e+00 : f32
    %494 = vector.broadcast %cst_211 : f32 to vector<6x128xf32>
    %495 = arith.addf %494, %493 : vector<6x128xf32>
    %496 = arith.mulf %485, %495 : vector<6x128xf32>
    %c0_212 = arith.constant 0 : index
    %c0_213 = arith.constant 0 : index
    %497 = vector.load %arg23[%c0_212, %c0_213] : memref<6x128xf32, #tpu.memory_space<vmem>>, vector<6x128xf32>
    %498 = arith.mulf %496, %497 : vector<6x128xf32>
    %cst_214 = arith.constant dense<0.000000e+00> : vector<6xf32>
    %499 = vector.multi_reduction <add>, %498, %cst_214 [1] : vector<6x128xf32> to vector<6xf32>
    %500 = vector.shape_cast %499 : vector<6xf32> to vector<6x1xf32>
    %501 = vector.extract_strided_slice %500 {offsets = [0, 0], sizes = [2, 1], strides = [1, 1]} : vector<6x1xf32> to vector<2x1xf32>
    %502 = vector.extract_strided_slice %500 {offsets = [2, 0], sizes = [2, 1], strides = [1, 1]} : vector<6x1xf32> to vector<2x1xf32>
    %503 = vector.extract_strided_slice %500 {offsets = [4, 0], sizes = [2, 1], strides = [1, 1]} : vector<6x1xf32> to vector<2x1xf32>
    %504 = tpu.concatenate %501, %502, %503 in 1 : vector<2x1xf32>, vector<2x1xf32>, vector<2x1xf32> -> vector<2x3xf32>
    %c0_215 = arith.constant 0 : index
    %c0_216 = arith.constant 0 : index
    %505 = vector.load %arg24[%c0_215, %c0_216] : memref<1x3xf32, #tpu.memory_space<vmem>>, vector<1x3xf32>
    %506 = vector.broadcast %505 : vector<1x3xf32> to vector<2x3xf32>
    %507 = arith.addf %504, %506 : vector<2x3xf32>
    %c0_217 = arith.constant 0 : index
    %c0_218 = arith.constant 0 : index
    %508 = vector.load %arg25[%c0_217, %c0_218] : memref<2x3xf32, #tpu.memory_space<vmem>>, vector<2x3xf32>
    tpu.vector_store %arg25[%c0_217, %c0_218], %507 {strides = array<i32>} : memref<2x3xf32, #tpu.memory_space<vmem>>, vector<2x3xf32>,
    return
  }
  func.func @transform_0(%arg0: i32, %arg1: memref<2x8xi32, #tpu.memory_space<smem>>) -> (i32, i32) {
    %c0_i32 = arith.constant 0 : i32
    %c0_i32_0 = arith.constant 0 : i32
    %c0_i32_1 = arith.constant 0 : i32
    return %c0_i32, %c0_i32_0 : i32, i32
  }
  func.func @transform_1(%arg0: i32, %arg1: memref<2x8xi32, #tpu.memory_space<smem>>) -> (i32, i32) {
    %c0_i32 = arith.constant 0 : i32
    %c0_i32_0 = arith.constant 0 : i32
    %c0_i32_1 = arith.constant 0 : i32
    return %c0_i32, %c0_i32_0 : i32, i32
  }
  func.func @transform_2(%arg0: i32, %arg1: memref<2x8xi32, #tpu.memory_space<smem>>) -> (i32, i32) {
    %c0_i32 = arith.constant 0 : i32
    %c0_i32_0 = arith.constant 0 : i32
    %c0_i32_1 = arith.constant 0 : i32
    return %c0_i32, %c0_i32_0 : i32, i32
  }
  func.func @transform_3(%arg0: i32, %arg1: memref<2x8xi32, #tpu.memory_space<smem>>) -> (i32, i32) {
    %c0_i32 = arith.constant 0 : i32
    %c0_i32_0 = arith.constant 0 : i32
    %c0_i32_1 = arith.constant 0 : i32
    return %c0_i32, %c0_i32_0 : i32, i32
  }
  func.func @transform_4(%arg0: i32, %arg1: memref<2x8xi32, #tpu.memory_space<smem>>) -> (i32, i32, i32) {
    %c0_i32 = arith.constant 0 : i32
    %c0_i32_0 = arith.constant 0 : i32
    %c0_i32_1 = arith.constant 0 : i32
    %c0_i32_2 = arith.constant 0 : i32
    return %c0_i32, %c0_i32_0, %c0_i32_1 : i32, i32, i32
  }
  func.func @transform_5(%arg0: i32, %arg1: memref<2x8xi32, #tpu.memory_space<smem>>) -> (i32, i32, i32) {
    %c0_i32 = arith.constant 0 : i32
    %c0_i32_0 = arith.constant 0 : i32
    %c0_i32_1 = arith.constant 0 : i32
    %c0_i32_2 = arith.constant 0 : i32
    return %c0_i32, %c0_i32_0, %c0_i32_1 : i32, i32, i32
  }
  func.func @transform_6(%arg0: i32, %arg1: memref<2x8xi32, #tpu.memory_space<smem>>) -> (i32, i32, i32) {
    %c0_i32 = arith.constant 0 : i32
    %c0_i32_0 = arith.constant 0 : i32
    %c0_i32_1 = arith.constant 0 : i32
    %c0_i32_2 = arith.constant 0 : i32
    return %c0_i32, %c0_i32_0, %c0_i32_1 : i32, i32, i32
  }
  func.func @transform_7(%arg0: i32, %arg1: memref<2x8xi32, #tpu.memory_space<smem>>) -> (i32, i32, i32) {
    %c0_i32 = arith.constant 0 : i32
    %c0_i32_0 = arith.constant 0 : i32
    %c0_i32_1 = arith.constant 0 : i32
    %c0_i32_2 = arith.constant 0 : i32
    return %c0_i32, %c0_i32_0, %c0_i32_1 : i32, i32, i32
  }
  func.func @transform_8(%arg0: i32, %arg1: memref<2x8xi32, #tpu.memory_space<smem>>) -> (i32, i32, i32) {
    %c0_i32 = arith.constant 0 : i32
    %c0_i32_0 = arith.constant 0 : i32
    %c0_i32_1 = arith.constant 0 : i32
    %c0_i32_2 = arith.constant 0 : i32
    return %c0_i32, %c0_i32_0, %c0_i32_1 : i32, i32, i32
  }
  func.func @transform_9(%arg0: i32, %arg1: memref<2x8xi32, #tpu.memory_space<smem>>) -> (i32, i32, i32) {
    %c0_i32 = arith.constant 0 : i32
    %c0_i32_0 = arith.constant 0 : i32
    %c0_i32_1 = arith.constant 0 : i32
    %c0_i32_2 = arith.constant 0 : i32
    return %c0_i32, %c0_i32_0, %c0_i32_1 : i32, i32, i32
  }
  func.func @transform_10(%arg0: i32, %arg1: memref<2x8xi32, #tpu.memory_space<smem>>) -> (i32, i32, i32) {
    %c0_i32 = arith.constant 0 : i32
    %c0_i32_0 = arith.constant 0 : i32
    %c0_i32_1 = arith.constant 0 : i32
    %c0_i32_2 = arith.constant 0 : i32
    return %c0_i32, %c0_i32_0, %c0_i32_1 : i32, i32, i32
  }
  func.func @transform_11(%arg0: i32, %arg1: memref<2x8xi32, #tpu.memory_space<smem>>) -> (i32, i32, i32) {
    %c0_i32 = arith.constant 0 : i32
    %c0_i32_0 = arith.constant 0 : i32
    %c0_i32_1 = arith.constant 0 : i32
    %c0_i32_2 = arith.constant 0 : i32
    return %c0_i32, %c0_i32_0, %c0_i32_1 : i32, i32, i32
  }
  func.func @transform_12(%arg0: i32, %arg1: memref<2x8xi32, #tpu.memory_space<smem>>) -> (i32, i32, i32) {
    %c0_i32 = arith.constant 0 : i32
    %c0_i32_0 = arith.constant 0 : i32
    %c0_i32_1 = arith.constant 0 : i32
    %c0_i32_2 = arith.constant 0 : i32
    return %c0_i32, %c0_i32_0, %c0_i32_1 : i32, i32, i32
  }
  func.func @transform_13(%arg0: i32, %arg1: memref<2x8xi32, #tpu.memory_space<smem>>) -> (i32, i32, i32) {
    %c0_i32 = arith.constant 0 : i32
    %c0_i32_0 = arith.constant 0 : i32
    %c0_i32_1 = arith.constant 0 : i32
    %c0_i32_2 = arith.constant 0 : i32
    return %c0_i32, %c0_i32_0, %c0_i32_1 : i32, i32, i32
  }
  func.func @transform_14(%arg0: i32, %arg1: memref<2x8xi32, #tpu.memory_space<smem>>) -> (i32, i32) {
    %c0_i32 = arith.constant 0 : i32
    %c0_i32_0 = arith.constant 0 : i32
    %c0_i32_1 = arith.constant 0 : i32
    return %c0_i32, %c0_i32_0 : i32, i32
  }
  func.func @transform_15(%arg0: i32, %arg1: memref<2x8xi32, #tpu.memory_space<smem>>) -> (i32, i32) {
    %c0_i32 = arith.constant 0 : i32
    %c0_i32_0 = arith.constant 0 : i32
    %c0_i32_1 = arith.constant 0 : i32
    return %c0_i32, %c0_i32_0 : i32, i32
  }
  func.func @transform_16(%arg0: i32, %arg1: memref<2x8xi32, #tpu.memory_space<smem>>) -> (i32, i32) {
    %c0_i32 = arith.constant 0 : i32
    %c0_i32_0 = arith.constant 0 : i32
    %c0_i32_1 = arith.constant 0 : i32
    return %c0_i32, %c0_i32_0 : i32, i32
  }
  func.func @transform_17(%arg0: i32, %arg1: memref<2x8xi32, #tpu.memory_space<smem>>) -> (i32, i32) {
    %c0_i32 = arith.constant 0 : i32
    %c0_i32_0 = arith.constant 0 : i32
    %c0_i32_1 = arith.constant 0 : i32
    return %c0_i32, %c0_i32_0 : i32, i32
  }
  func.func @transform_18(%arg0: i32, %arg1: memref<2x8xi32, #tpu.memory_space<smem>>) -> (i32, i32) {
    %c0_i32 = arith.constant 0 : i32
    %c0_i32_0 = arith.constant 0 : i32
    %c0_i32_1 = arith.constant 0 : i32
    return %c0_i32, %c0_i32_0 : i32, i32
  }
  func.func @transform_19(%arg0: i32, %arg1: memref<2x8xi32, #tpu.memory_space<smem>>) -> (i32, i32) {
    %c0_i32 = arith.constant 0 : i32
    %c0_i32_0 = arith.constant 0 : i32
    %c0_i32_1 = arith.constant 0 : i32
    return %c0_i32, %c0_i32_0 : i32, i32
  }
  func.func @transform_20(%arg0: i32, %arg1: memref<2x8xi32, #tpu.memory_space<smem>>) -> (i32, i32) {
    %c0_i32 = arith.constant 0 : i32
    %c0_i32_0 = arith.constant 0 : i32
    %c0_i32_1 = arith.constant 0 : i32
    return %c0_i32, %c0_i32_0 : i32, i32
  }
  func.func @transform_21(%arg0: i32, %arg1: memref<2x8xi32, #tpu.memory_space<smem>>) -> (i32, i32) {
    %c0_i32 = arith.constant 0 : i32
    %c0_i32_0 = arith.constant 0 : i32
    %c0_i32_1 = arith.constant 0 : i32
    return %c0_i32, %c0_i32_0 : i32, i32
  }
  func.func @transform_22(%arg0: i32, %arg1: memref<2x8xi32, #tpu.memory_space<smem>>) -> (i32, i32) {
    %c0_i32 = arith.constant 0 : i32
    %c0_i32_0 = arith.constant 0 : i32
    %c0_i32_1 = arith.constant 0 : i32
    return %c0_i32, %c0_i32_0 : i32, i32
  }
  func.func @transform_23(%arg0: i32, %arg1: memref<2x8xi32, #tpu.memory_space<smem>>) -> (i32, i32) {
    %c0_i32 = arith.constant 0 : i32
    %c0_i32_0 = arith.constant 0 : i32
    %c0_i32_1 = arith.constant 0 : i32
    return %c0_i32, %c0_i32_0 : i32, i32
  }
}

</mosaic_0001>

<llo_original>
// kernel: text_vad_forward.1
$region0: #{text_vad_forward.1}
  #allocation0 [shape = 'u32[]', space=smem, size = 0x4, offset = 0x4, fixed_abs, tag = 'smem constant byte address 0x4 - core index']
  #allocation1 [shape = 'u32[144,128]{1,0:T(1,128)}', space=vmem, size = 0x12000, scoped, tag = 'internal scratch']
  #allocation2 [shape = 's32[1]{0}', space=sflag, size = 0x4, scoped, tag = 'scoped memory for text_vad_forward.1']
  #allocation3 [shape = 'u8[1024]{0}', space=smem, size = 0x400, scoped, tag = 'prefetched SMEM operand 0']
  %s0 = inlined_call_operand.hbm [shape: s32[2,8], index: 0, kind: input, shape index: {}]
  %s1 = inlined_call_operand.vmem [shape: f32[16,16], index: 1, kind: input, shape index: {}]
  %s2 = inlined_call_operand.vmem [shape: f32[100,64], index: 2, kind: input, shape index: {}]
  %s3 = inlined_call_operand.vmem [shape: f32[8,64], index: 3, kind: input, shape index: {}]
  %s4 = inlined_call_operand.hbm [shape: f32[2,64], index: 4, kind: input, shape index: {}]
  %s5 = inlined_call_operand.vmem [shape: bf16[2,64,192], index: 5, kind: input, shape index: {}]
  %s6 = inlined_call_operand.hbm [shape: f32[2,1,192], index: 6, kind: input, shape index: {}]
  %s7 = inlined_call_operand.vmem [shape: bf16[2,64,64], index: 7, kind: input, shape index: {}]
  %s8 = inlined_call_operand.hbm [shape: f32[2,1,64], index: 8, kind: input, shape index: {}]
  %s9 = inlined_call_operand.vmem [shape: f32[2,2,64], index: 9, kind: input, shape index: {}]
  %s10 = inlined_call_operand.vmem [shape: bf16[2,64,128], index: 10, kind: input, shape index: {}]
  %s11 = inlined_call_operand.hbm [shape: f32[2,1,128], index: 11, kind: input, shape index: {}]
  %s12 = inlined_call_operand.vmem [shape: bf16[2,128,64], index: 12, kind: input, shape index: {}]
  %s13 = inlined_call_operand.hbm [shape: f32[2,1,64], index: 13, kind: input, shape index: {}]
  %s14 = inlined_call_operand.hbm [shape: f32[2,2,64], index: 14, kind: input, shape index: {}]
  %s15 = inlined_call_operand.vmem [shape: bf16[64,512], index: 15, kind: input, shape index: {}]
  %s16 = inlined_call_operand.hbm [shape: f32[1,512], index: 16, kind: input, shape index: {}]
  %s17 = inlined_call_operand.vmem [shape: f32[2,512], index: 17, kind: input, shape index: {}]
  %s18 = inlined_call_operand.hbm [shape: bf16[512,384], index: 18, kind: input, shape index: {}]
  %s19 = inlined_call_operand.hbm [shape: f32[6,128], index: 19, kind: input, shape index: {}]
  %s20 = inlined_call_operand.hbm [shape: f32[6,128], index: 20, kind: input, shape index: {}]
  %s21 = inlined_call_operand.hbm [shape: f32[6,128], index: 21, kind: input, shape index: {}]
  %s22 = inlined_call_operand.vmem [shape: f32[6,128], index: 22, kind: input, shape index: {}]
  %s23 = inlined_call_operand.vmem [shape: f32[1,3], index: 23, kind: input, shape index: {}]
  %s24 = inlined_call_operand.hbm [shape: f32[2,3], index: 24, kind: output, shape index: {}]
  %s25 = sld [smem:[#allocation0]]
  $region146: #{text_vad_forward.1} parent=0
    _
  %s27 = ssub.s32 1, %s25
  %s28 = scalar_select 0, %s27, %s25
  %30 = dma.hbm_to_smem %s0, 32, [#allocation3], [#allocation2]
  %31 = dma.done [#allocation2], 32
  %32 = sfence
  $region1: #{text_vad_forward.1} parent=0
    #allocation4 [shape = 'u8[1024]{0}', space=vmem, size = 0x400, scoped, tag = 'input window, operand 4, single buffered']
    #allocation5 [shape = 's32[1]{0}', space=sflag, size = 0x4, scoped, tag = 'scoped memory for text_vad_forward.1']
    #allocation6 [shape = 's32[1]{0}', space=sflag, size = 0x4, scoped, tag = 'scoped memory for text_vad_forward.1']
    #allocation7 [shape = 'u8[2048]{0}', space=vmem, size = 0x800, scoped, tag = 'input window, operand 6, single buffered']
    #allocation8 [shape = 's32[1]{0}', space=sflag, size = 0x4, scoped, tag = 'scoped memory for text_vad_forward.1']
    #allocation9 [shape = 'u8[1024]{0}', space=vmem, size = 0x400, scoped, tag = 'input window, operand 8, single buffered']
    #allocation10 [shape = 'u8[1024]{0}', space=vmem, size = 0x400, scoped, tag = 'input window, operand 11, single buffered']
    #allocation11 [shape = 's32[1]{0}', space=sflag, size = 0x4, scoped, tag = 'scoped memory for text_vad_forward.1']
    #allocation12 [shape = 'u8[1024]{0}', space=vmem, size = 0x400, scoped, tag = 'input window, operand 13, single buffered']
    #allocation13 [shape = 'u8[2048]{0}', space=vmem, size = 0x800, scoped, tag = 'input window, operand 14, single buffered']
    #allocation14 [shape = 's32[1]{0}', space=sflag, size = 0x4, scoped, tag = 'scoped memory for text_vad_forward.1']
    #allocation15 [shape = 'u8[2048]{0}', space=vmem, size = 0x800, scoped, tag = 'input window, operand 16, single buffered']
    #allocation16 [shape = 'u8[393216]{0}', space=vmem, size = 0x60000, scoped, tag = 'input window, operand 18, single buffered']
    #allocation17 [shape = 's32[1]{0}', space=sflag, size = 0x4, scoped, tag = 'scoped memory for text_vad_forward.1']
    #allocation18 [shape = 'u8[4096]{0}', space=vmem, size = 0x1000, scoped, tag = 'input window, operand 19, single buffered']
    #allocation19 [shape = 'u8[4096]{0}', space=vmem, size = 0x1000, scoped, tag = 'input window, operand 20, single buffered']
    #allocation20 [shape = 's32[1]{0}', space=sflag, size = 0x4, scoped, tag = 'scoped memory for text_vad_forward.1']
    #allocation21 [shape = 'u8[4096]{0}', space=vmem, size = 0x1000, scoped, tag = 'input window, operand 21, single buffered']
    #allocation22 [shape = 'u8[1024]{0}', space=vmem, size = 0x400, scoped, tag = 'output window, operand 0, single buffered']
    %33 = vsyncpa [#allocation5], 0
    %34 = vsyncpa [#allocation8], 0
    %35 = vsyncpa [#allocation11], 0
    %36 = vsyncpa [#allocation14], 0
    %37 = vsyncpa [#allocation17], 0
    %38 = vsyncpa [#allocation20], 0
    %39 = vsyncpa [#allocation6], 0
    // Predicated region
    $region2: #{text_vad_forward.1} parent=1 // pred_check
      _
    $region3: #{text_vad_forward.1} parent=1 // pred_check_branch
      %41 = sbr.rel (0) target = $region5
    $region4: #{text_vad_forward.1} parent=1 // pred_region
      _
    $region5: #{text_vad_forward.1} parent=1 // pred_fallthru
      _
    // Predicated region
    $region6: #{text_vad_forward.1} parent=1 // pred_check
      _
    $region7: #{text_vad_forward.1} parent=1 // pred_check_branch
      %43 = sbr.rel (0) target = $region9
    $region8: #{text_vad_forward.1} parent=1 // pred_region
      _
    $region9: #{text_vad_forward.1} parent=1 // pred_fallthru
      _
    // Predicated region
    $region10: #{text_vad_forward.1} parent=1 // pred_check
      _
    $region11: #{text_vad_forward.1} parent=1 // pred_check_branch
      %45 = sbr.rel (0) target = $region13
    $region12: #{text_vad_forward.1} parent=1 // pred_region
      _
    $region13: #{text_vad_forward.1} parent=1 // pred_fallthru
      _
    // Predicated region
    $region14: #{text_vad_forward.1} parent=1 // pred_check
      _
    $region15: #{text_vad_forward.1} parent=1 // pred_check_branch
      %47 = sbr.rel (0) target = $region17
    $region16: #{text_vad_forward.1} parent=1 // pred_region
      %s49 = ssub.s32 32, 32
      %50 = vsyncadd [#allocation5], %s49
      %s52 = sshll.u32 [#allocation4], 4
      %s53 = int_to_ptr.vmem [resolvable:$true] %s52
      %55 = dma.hbm_to_vmem [thread:$0]  %s4, 32, %s53, [#allocation5]
    $region17: #{text_vad_forward.1} parent=1 // pred_fallthru
      _
    // Predicated region
    $region18: #{text_vad_forward.1} parent=1 // pred_check
      _
    $region19: #{text_vad_forward.1} parent=1 // pred_check_branch
      %57 = sbr.rel (0) target = $region21
    $region20: #{text_vad_forward.1} parent=1 // pred_region
      _
    $region21: #{text_vad_forward.1} parent=1 // pred_fallthru
      _
    // Predicated region
    $region22: #{text_vad_forward.1} parent=1 // pred_check
      _
    $region23: #{text_vad_forward.1} parent=1 // pred_check_branch
      %59 = sbr.rel (0) target = $region25
    $region24: #{text_vad_forward.1} parent=1 // pred_region
      %s61 = ssub.s32 64, 64
      %62 = vsyncadd [#allocation8], %s61
      %s63 = sshll.u32 [#allocation7], 4
      %s64 = int_to_ptr.vmem [resolvable:$true] %s63
      %69 = dma.hbm_to_vmem [thread:$0]  %s6, 64, %s64, [#allocation8], 32, 32, 2
    $region25: #{text_vad_forward.1} parent=1 // pred_fallthru
      _
    // Predicated region
    $region26: #{text_vad_forward.1} parent=1 // pred_check
      _
    $region27: #{text_vad_forward.1} parent=1 // pred_check_branch
      %71 = sbr.rel (0) target = $region29
    $region28: #{text_vad_forward.1} parent=1 // pred_region
      _
    $region29: #{text_vad_forward.1} parent=1 // pred_fallthru
      _
    // Predicated region
    $region30: #{text_vad_forward.1} parent=1 // pred_check
      _
    $region31: #{text_vad_forward.1} parent=1 // pred_check_branch
      %73 = sbr.rel (0) target = $region33
    $region32: #{text_vad_forward.1} parent=1 // pred_region
      %s75 = ssub.s32 32, 32
      %76 = vsyncadd [#allocation8], %s75
      %s77 = sshll.u32 [#allocation9], 4
      %s78 = int_to_ptr.vmem [resolvable:$true] %s77
      %83 = dma.hbm_to_vmem [thread:$0]  %s8, 32, %s78, [#allocation8], 16, 16, 1
    $region33: #{text_vad_forward.1} parent=1 // pred_fallthru
      _
    // Predicated region
    $region34: #{text_vad_forward.1} parent=1 // pred_check
      _
    $region35: #{text_vad_forward.1} parent=1 // pred_check_branch
      %85 = sbr.rel (0) target = $region37
    $region36: #{text_vad_forward.1} parent=1 // pred_region
      _
    $region37: #{text_vad_forward.1} parent=1 // pred_fallthru
      _
    // Predicated region
    $region38: #{text_vad_forward.1} parent=1 // pred_check
      _
    $region39: #{text_vad_forward.1} parent=1 // pred_check_branch
      %87 = sbr.rel (0) target = $region41
    $region40: #{text_vad_forward.1} parent=1 // pred_region
      _
    $region41: #{text_vad_forward.1} parent=1 // pred_fallthru
      _
    // Predicated region
    $region42: #{text_vad_forward.1} parent=1 // pred_check
      _
    $region43: #{text_vad_forward.1} parent=1 // pred_check_branch
      %89 = sbr.rel (0) target = $region45
    $region44: #{text_vad_forward.1} parent=1 // pred_region
      %s91 = ssub.s32 32, 32
      %92 = vsyncadd [#allocation11], %s91
      %s93 = sshll.u32 [#allocation10], 4
      %s94 = int_to_ptr.vmem [resolvable:$true] %s93
      %99 = dma.hbm_to_vmem [thread:$0]  %s11, 32, %s94, [#allocation11], 16, 16, 1
    $region45: #{text_vad_forward.1} parent=1 // pred_fallthru
      _
    // Predicated region
    $region46: #{text_vad_forward.1} parent=1 // pred_check
      _
    $region47: #{text_vad_forward.1} parent=1 // pred_check_branch
      %101 = sbr.rel (0) target = $region49
    $region48: #{text_vad_forward.1} parent=1 // pred_region
      _
    $region49: #{text_vad_forward.1} parent=1 // pred_fallthru
      _
    // Predicated region
    $region50: #{text_vad_forward.1} parent=1 // pred_check
      _
    $region51: #{text_vad_forward.1} parent=1 // pred_check_branch
      %103 = sbr.rel (0) target = $region53
    $region52: #{text_vad_forward.1} parent=1 // pred_region
      %s105 = ssub.s32 32, 32
      %106 = vsyncadd [#allocation11], %s105
      %s107 = sshll.u32 [#allocation12], 4
      %s108 = int_to_ptr.vmem [resolvable:$true] %s107
      %113 = dma.hbm_to_vmem [thread:$0]  %s13, 32, %s108, [#allocation11], 16, 16, 1
    $region53: #{text_vad_forward.1} parent=1 // pred_fallthru
      _
    // Predicated region
    $region54: #{text_vad_forward.1} parent=1 // pred_check
      _
    $region55: #{text_vad_forward.1} parent=1 // pred_check_branch
      %115 = sbr.rel (0) target = $region57
    $region56: #{text_vad_forward.1} parent=1 // pred_region
      %s117 = ssub.s32 64, 64
      %118 = vsyncadd [#allocation14], %s117
      %s119 = sshll.u32 [#allocation13], 4
      %s120 = int_to_ptr.vmem [resolvable:$true] %s119
      %125 = dma.hbm_to_vmem [thread:$0]  %s14, 64, %s120, [#allocation14], 32, 32, 2
    $region57: #{text_vad_forward.1} parent=1 // pred_fallthru
      _
    // Predicated region
    $region58: #{text_vad_forward.1} parent=1 // pred_check
      _
    $region59: #{text_vad_forward.1} parent=1 // pred_check_branch
      %127 = sbr.rel (0) target = $region61
    $region60: #{text_vad_forward.1} parent=1 // pred_region
      _
    $region61: #{text_vad_forward.1} parent=1 // pred_fallthru
      _
    // Predicated region
    $region62: #{text_vad_forward.1} parent=1 // pred_check
      _
    $region63: #{text_vad_forward.1} parent=1 // pred_check_branch
      %129 = sbr.rel (0) target = $region65
    $region64: #{text_vad_forward.1} parent=1 // pred_region
      %s131 = ssub.s32 64, 64
      %132 = vsyncadd [#allocation14], %s131
      %s134 = sshll.u32 [#allocation15], 4
      %s135 = int_to_ptr.vmem [resolvable:$true] %s134
      %137 = dma.hbm_to_vmem [thread:$0]  %s16, 64, %s135, [#allocation14]
    $region65: #{text_vad_forward.1} parent=1 // pred_fallthru
      _
    // Predicated region
    $region66: #{text_vad_forward.1} parent=1 // pred_check
      _
    $region67: #{text_vad_forward.1} parent=1 // pred_check_branch
      %139 = sbr.rel (0) target = $region69
    $region68: #{text_vad_forward.1} parent=1 // pred_region
      _
    $region69: #{text_vad_forward.1} parent=1 // pred_fallthru
      _
    // Predicated region
    $region70: #{text_vad_forward.1} parent=1 // pred_check
      _
    $region71: #{text_vad_forward.1} parent=1 // pred_check_branch
      %141 = sbr.rel (0) target = $region73
    $region72: #{text_vad_forward.1} parent=1 // pred_region
      %s143 = ssub.s32 12288, 12288
      %144 = vsyncadd [#allocation17], %s143
      %s145 = sshll.u32 [#allocation16], 4
      %s146 = int_to_ptr.vmem [resolvable:$true] %s145
      %151 = dma.hbm_to_vmem [thread:$0]  %s18, 12288, %s146, [#allocation17], 192, 192, 12
    $region73: #{text_vad_forward.1} parent=1 // pred_fallthru
      _
    // Predicated region
    $region74: #{text_vad_forward.1} parent=1 // pred_check
      _
    $region75: #{text_vad_forward.1} parent=1 // pred_check_branch
      %153 = sbr.rel (0) target = $region77
    $region76: #{text_vad_forward.1} parent=1 // pred_region
      %s155 = ssub.s32 128, 128
      %156 = vsyncadd [#allocation17], %s155
      %s158 = sshll.u32 [#allocation18], 4
      %s159 = int_to_ptr.vmem [resolvable:$true] %s158
      %161 = dma.hbm_to_vmem [thread:$0]  %s19, 128, %s159, [#allocation17]
    $region77: #{text_vad_forward.1} parent=1 // pred_fallthru
      _
    // Predicated region
    $region78: #{text_vad_forward.1} parent=1 // pred_check
      _
    $region79: #{text_vad_forward.1} parent=1 // pred_check_branch
      %163 = sbr.rel (0) target = $region81
    $region80: #{text_vad_forward.1} parent=1 // pred_region
      %s165 = ssub.s32 128, 128
      %166 = vsyncadd [#allocation20], %s165
      %s168 = sshll.u32 [#allocation19], 4
      %s169 = int_to_ptr.vmem [resolvable:$true] %s168
      %171 = dma.hbm_to_vmem [thread:$0]  %s20, 128, %s169, [#allocation20]
    $region81: #{text_vad_forward.1} parent=1 // pred_fallthru
      _
    // Predicated region
    $region82: #{text_vad_forward.1} parent=1 // pred_check
      _
    $region83: #{text_vad_forward.1} parent=1 // pred_check_branch
      %173 = sbr.rel (0) target = $region85
    $region84: #{text_vad_forward.1} parent=1 // pred_region
      %s175 = ssub.s32 128, 128
      %176 = vsyncadd [#allocation20], %s175
      %s178 = sshll.u32 [#allocation21], 4
      %s179 = int_to_ptr.vmem [resolvable:$true] %s178
      %181 = dma.hbm_to_vmem [thread:$0]  %s21, 128, %s179, [#allocation20]
    $region85: #{text_vad_forward.1} parent=1 // pred_fallthru
      _
    // Predicated region
    $region86: #{text_vad_forward.1} parent=1 // pred_check
      _
    $region87: #{text_vad_forward.1} parent=1 // pred_check_branch
      %183 = sbr.rel (0) target = $region89
    $region88: #{text_vad_forward.1} parent=1 // pred_region
      _
    $region89: #{text_vad_forward.1} parent=1 // pred_fallthru
      _
    // Predicated region
    $region90: #{text_vad_forward.1} parent=1 // pred_check
      _
    $region91: #{text_vad_forward.1} parent=1 // pred_check_branch
      %185 = sbr.rel (0) target = $region93
    $region92: #{text_vad_forward.1} parent=1 // pred_region
      _
    $region93: #{text_vad_forward.1} parent=1 // pred_fallthru
      _
    // Predicated region
    $region94: #{text_vad_forward.1} parent=1 // pred_check
      _
    $region95: #{text_vad_forward.1} parent=1 // pred_check_branch
      %187 = sbr.rel (0) target = $region97
    $region96: #{text_vad_forward.1} parent=1 // pred_region
      %188 = dma.done [#allocation5], 32
    $region97: #{text_vad_forward.1} parent=1 // pred_fallthru
      _
    // Predicated region
    $region98: #{text_vad_forward.1} parent=1 // pred_check
      _
    $region99: #{text_vad_forward.1} parent=1 // pred_check_branch
      %190 = sbr.rel (0) target = $region101
    $region100: #{text_vad_forward.1} parent=1 // pred_region
      %191 = dma.done [#allocation8], 64
    $region101: #{text_vad_forward.1} parent=1 // pred_fallthru
      _
    // Predicated region
    $region102: #{text_vad_forward.1} parent=1 // pred_check
      _
    $region103: #{text_vad_forward.1} parent=1 // pred_check_branch
      %193 = sbr.rel (0) target = $region105
    $region104: #{text_vad_forward.1} parent=1 // pred_region
      %194 = dma.done [#allocation8], 32
    $region105: #{text_vad_forward.1} parent=1 // pred_fallthru
      _
    // Predicated region
    $region106: #{text_vad_forward.1} parent=1 // pred_check
      _
    $region107: #{text_vad_forward.1} parent=1 // pred_check_branch
      %196 = sbr.rel (0) target = $region109
    $region108: #{text_vad_forward.1} parent=1 // pred_region
      %197 = dma.done [#allocation11], 32
    $region109: #{text_vad_forward.1} parent=1 // pred_fallthru
      _
    // Predicated region
    $region110: #{text_vad_forward.1} parent=1 // pred_check
      _
    $region111: #{text_vad_forward.1} parent=1 // pred_check_branch
      %199 = sbr.rel (0) target = $region113
    $region112: #{text_vad_forward.1} parent=1 // pred_region
      %200 = dma.done [#allocation11], 32
    $region113: #{text_vad_forward.1} parent=1 // pred_fallthru
      _
    // Predicated region
    $region114: #{text_vad_forward.1} parent=1 // pred_check
      _
    $region115: #{text_vad_forward.1} parent=1 // pred_check_branch
      %202 = sbr.rel (0) target = $region117
    $region116: #{text_vad_forward.1} parent=1 // pred_region
      %203 = dma.done [#allocation14], 64
    $region117: #{text_vad_forward.1} parent=1 // pred_fallthru
      _
    // Predicated region
    $region118: #{text_vad_forward.1} parent=1 // pred_check
      _
    $region119: #{text_vad_forward.1} parent=1 // pred_check_branch
      %205 = sbr.rel (0) target = $region121
    $region120: #{text_vad_forward.1} parent=1 // pred_region
      %206 = dma.done [#allocation14], 64
    $region121: #{text_vad_forward.1} parent=1 // pred_fallthru
      _
    // Predicated region
    $region122: #{text_vad_forward.1} parent=1 // pred_check
      _
    $region123: #{text_vad_forward.1} parent=1 // pred_check_branch
      %208 = sbr.rel (0) target = $region125
    $region124: #{text_vad_forward.1} parent=1 // pred_region
      %209 = dma.done [#allocation17], 12288
    $region125: #{text_vad_forward.1} parent=1 // pred_fallthru
      _
    // Predicated region
    $region126: #{text_vad_forward.1} parent=1 // pred_check
      _
    $region127: #{text_vad_forward.1} parent=1 // pred_check_branch
      %211 = sbr.rel (0) target = $region129
    $region128: #{text_vad_forward.1} parent=1 // pred_region
      %212 = dma.done [#allocation17], 128
    $region129: #{text_vad_forward.1} parent=1 // pred_fallthru
      _
    // Predicated region
    $region130: #{text_vad_forward.1} parent=1 // pred_check
      _
    $region131: #{text_vad_forward.1} parent=1 // pred_check_branch
      %214 = sbr.rel (0) target = $region133
    $region132: #{text_vad_forward.1} parent=1 // pred_region
      %215 = dma.done [#allocation20], 128
    $region133: #{text_vad_forward.1} parent=1 // pred_fallthru
      _
    // Predicated region
    $region134: #{text_vad_forward.1} parent=1 // pred_check
      _
    $region135: #{text_vad_forward.1} parent=1 // pred_check_branch
      %217 = sbr.rel (0) target = $region137
    $region136: #{text_vad_forward.1} parent=1 // pred_region
      %218 = dma.done [#allocation20], 128
    $region137: #{text_vad_forward.1} parent=1 // pred_fallthru
      _
    %s220 = sld [smem:[#allocation3]]
    %s221 = scalar_lea.vmem %s2, %s220
    %v222 = vld [vmem:[%s221] sm:$0x1]
    %s223 = sld [smem:[#allocation3 + $0x1]]
    %s224 = scalar_lea.vmem %s2, %s223
    %v225 = vld [vmem:[%s224] sm:$0x1]
    %s226 = sld [smem:[#allocation3 + $0x2]]
    %s227 = scalar_lea.vmem %s2, %s226
    %v228 = vld [vmem:[%s227] sm:$0x1]
    %s229 = sld [smem:[#allocation3 + $0x3]]
    %s230 = scalar_lea.vmem %s2, %s229
    %v231 = vld [vmem:[%s230] sm:$0x1]
    %s232 = sld [smem:[#allocation3 + $0x4]]
    %s233 = scalar_lea.vmem %s2, %s232
    %v234 = vld [vmem:[%s233] sm:$0x1]
    %s235 = sld [smem:[#allocation3 + $0x5]]
    %s236 = scalar_lea.vmem %s2, %s235
    %v237 = vld [vmem:[%s236] sm:$0x1]
    %s238 = sld [smem:[#allocation3 + $0x6]]
    %s239 = scalar_lea.vmem %s2, %s238
    %v240 = vld [vmem:[%s239] sm:$0x1]
    %s241 = sld [smem:[#allocation3 + $0x7]]
    %s242 = scalar_lea.vmem %s2, %s241
    %v243 = vld [vmem:[%s242] sm:$0x1]
    %s244 = sld [smem:[#allocation3 + $0x80]]
    %s245 = scalar_lea.vmem %s2, %s244
    %v246 = vld [vmem:[%s245] sm:$0x1]
    %s247 = sld [smem:[#allocation3 + $0x81]]
    %s248 = scalar_lea.vmem %s2, %s247
    %v249 = vld [vmem:[%s248] sm:$0x1]
    %s250 = sld [smem:[#allocation3 + $0x82]]
    %s251 = scalar_lea.vmem %s2, %s250
    %v252 = vld [vmem:[%s251] sm:$0x1]
    %s253 = sld [smem:[#allocation3 + $0x83]]
    %s254 = scalar_lea.vmem %s2, %s253
    %v255 = vld [vmem:[%s254] sm:$0x1]
    %s256 = sld [smem:[#allocation3 + $0x84]]
    %s257 = scalar_lea.vmem %s2, %s256
    %v258 = vld [vmem:[%s257] sm:$0x1]
    %s259 = sld [smem:[#allocation3 + $0x85]]
    %s260 = scalar_lea.vmem %s2, %s259
    %v261 = vld [vmem:[%s260] sm:$0x1]
    %s262 = sld [smem:[#allocation3 + $0x86]]
    %s263 = scalar_lea.vmem %s2, %s262
    %v264 = vld [vmem:[%s263] sm:$0x1]
    %s265 = sld [smem:[#allocation3 + $0x87]]
    %s266 = scalar_lea.vmem %s2, %s265
    %v267 = vld [vmem:[%s266] sm:$0x1]
    %v269 = vrot.slane %v225, 7
    %v272 = vrot.slane %v228, 6
    %v275 = vrot.slane %v231, 5
    %v278 = vrot.slane %v234, 4
    %v281 = vrot.slane %v237, 3
    %v284 = vrot.slane %v240, 2
    %v287 = vrot.slane %v243, 1
    %v290 = vrot.slane %v249, 7
    %v293 = vrot.slane %v252, 6
    %v296 = vrot.slane %v255, 5
    %v299 = vrot.slane %v258, 4
    %v302 = vrot.slane %v261, 3
    %v305 = vrot.slane %v264, 2
    %v308 = vrot.slane %v267, 1
    %vm310 = vcmask 1040384
    %v311 = vsel %vm310, %v222, %v269
    %vm312 = vcmask 1041408
    %v313 = vsel %vm312, %v311, %v272
    %vm314 = vcmask 1042432
    %v315 = vsel %vm314, %v313, %v275
    %vm316 = vcmask 1043456
    %v317 = vsel %vm316, %v315, %v278
    %vm318 = vcmask 1044480
    %v319 = vsel %vm318, %v317, %v281
    %vm320 = vcmask 1045504
    %v321 = vsel %vm320, %v319, %v284
    %vm322 = vcmask 1046528
    %v323 = vsel %vm322, %v321, %v287
    %v324 = vsel %vm310, %v246, %v290
    %v325 = vsel %vm312, %v324, %v293
    %v326 = vsel %vm314, %v325, %v296
    %v327 = vsel %vm316, %v326, %v299
    %v328 = vsel %vm318, %v327, %v302
    %v329 = vsel %vm320, %v328, %v305
    %v330 = vsel %vm322, %v329, %v308
    %v331 = vld [vmem:[%s3] sm:$0xff]
    %v332 = vadd.f32 %v323, %v331
    %v333 = vadd.f32 %v330, %v331
    %v334 = vld [vmem:[#allocation4] sm:$0x3]
    %vm335 = vcmask 523264
    %v336 = vsel %vm335, %v332, 0.0
    %337 = vadd.xlane.f32.xlu0 %v336
    %v338 = vpop.xlane.xlu0 %337
    %v339 = vsel %vm335, %v333, 0.0
    %340 = vadd.xlane.f32.xlu0 %v339
    %v341 = vpop.xlane.xlu0 %340
    %v342 = vrcp.pop 64.0
    %v343 = vmul.f32 %v338, %v342
    %v344 = vmul.f32 %v341, %v342
    %v345 = vsub.f32 %v332, %v343
    %v346 = vsub.f32 %v333, %v344
    %v347 = vmul.f32 %v345, %v345
    %v348 = vmul.f32 %v346, %v346
    %v349 = vsel %vm335, %v347, 0.0
    %350 = vadd.xlane.f32.xlu0 %v349
    %v351 = vpop.xlane.xlu0 %350
    %v352 = vsel %vm335, %v348, 0.0
    %353 = vadd.xlane.f32.xlu0 %v352
    %v354 = vpop.xlane.xlu0 %353
    %v355 = vmul.f32 %v351, %v342
    %v356 = vmul.f32 %v354, %v342
    %v357 = vadd.f32 %v355, 1e-05
    %v358 = vadd.f32 %v356, 1e-05
    %v359 = vrsqrt.pop %v357
    %v360 = vrsqrt.pop %v358
    %v361 = vmul.f32 %v345, %v359
    %v362 = vmul.f32 %v346, %v360
    %v363 = vlaneseq
    %v364 = vshrl.u32 %v363, 7
    %v365 = vsub.s32 0, %v364
    %v366 = vrot.slane %v334, %v365
    %v367 = vmul.f32 %v361, %v366
    %v368 = vmul.f32 %v362, %v366
    %v369 = vlaneseq
    %v370 = vshrl.u32 %v369, 7
    %v371 = vsub.s32 1, %v370
    %v372 = vrot.slane %v334, %v371
    %v373 = vadd.f32 %v367, %v372
    %v374 = vadd.f32 %v368, %v372
    %v375 = vld [vmem:[%s1] sm:$0xff]
    %v376 = vld [vmem:[%s1 + $0x8] sm:$0xff]
    %v377 = vld [vmem:[%s5] sm:$0xff]
    %v378 = vld [vmem:[%s5 + $0x8] sm:$0xff]
    %v379 = vld [vmem:[%s5 + $0x10] sm:$0xff]
    %v380 = vld [vmem:[%s5 + $0x18] sm:$0xff]
    %v381 = vld [vmem:[%s5 + $0x20] sm:$0xff]
    %v382 = vld [vmem:[%s5 + $0x28] sm:$0xff]
    %v383 = vld [vmem:[%s5 + $0x30] sm:$0xff]
    %v384 = vld [vmem:[%s5 + $0x38] sm:$0xff]
    %v385 = vld [vmem:[#allocation7] sm:$0x3]
    %v386 = vld [vmem:[%s7] sm:$0xf]
    %v387 = vld [vmem:[%s7 + $0x4] sm:$0xf]
    %v388 = vld [vmem:[%s7 + $0x8] sm:$0xf]
    %v389 = vld [vmem:[%s7 + $0xc] sm:$0xf]
    %v390 = vld [vmem:[%s7 + $0x10] sm:$0xf]
    %v391 = vld [vmem:[%s7 + $0x14] sm:$0xf]
    %v392 = vld [vmem:[%s7 + $0x18] sm:$0xf]
    %v393 = vld [vmem:[%s7 + $0x1c] sm:$0xf]
    %v394 = vld [vmem:[#allocation9] sm:$0x1]
    %v395 = vld [vmem:[%s9] sm:$0x3]
    %v396 = vld [vmem:[%s10] sm:$0xf]
    %v397 = vld [vmem:[%s10 + $0x4] sm:$0xf]
    %v398 = vld [vmem:[%s10 + $0x8] sm:$0xf]
    %v399 = vld [vmem:[%s10 + $0xc] sm:$0xf]
    %v400 = vld [vmem:[%s10 + $0x10] sm:$0xf]
    %v401 = vld [vmem:[%s10 + $0x14] sm:$0xf]
    %v402 = vld [vmem:[%s10 + $0x18] sm:$0xf]
    %v403 = vld [vmem:[%s10 + $0x1c] sm:$0xf]
    %v404 = vld [vmem:[#allocation10] sm:$0x1]
    %v405 = vld [vmem:[%s12] sm:$0xf]
    %v406 = vld [vmem:[%s12 + $0x4] sm:$0xf]
    %v407 = vld [vmem:[%s12 + $0x8] sm:$0xf]
    %v408 = vld [vmem:[%s12 + $0xc] sm:$0xf]
    %v409 = vld [vmem:[%s12 + $0x10] sm:$0xf]
    %v410 = vld [vmem:[%s12 + $0x14] sm:$0xf]
    %v411 = vld [vmem:[%s12 + $0x18] sm:$0xf]
    %v412 = vld [vmem:[%s12 + $0x1c] sm:$0xf]
    %v413 = vld [vmem:[%s12 + $0x20] sm:$0xf]
    %v414 = vld [vmem:[%s12 + $0x24] sm:$0xf]
    %v415 = vld [vmem:[%s12 + $0x28] sm:$0xf]
    %v416 = vld [vmem:[%s12 + $0x2c] sm:$0xf]
    %v417 = vld [vmem:[%s12 + $0x30] sm:$0xf]
    %v418 = vld [vmem:[%s12 + $0x34] sm:$0xf]
    %v419 = vld [vmem:[%s12 + $0x38] sm:$0xf]
    %v420 = vld [vmem:[%s12 + $0x3c] sm:$0xf]
    %v421 = vld [vmem:[#allocation12] sm:$0x1]
    %v422 = vld [vmem:[#allocation13] sm:$0x3]
    %v423 = vpack.c.bf16 %v374, %v373
    %v425 = vlaneseq
    %v426 = vshrl.u32 %v425, 7
    %v427 = vsub.s32 0, %v426
    %v428 = vrot.slane %v385, %v427
    %v429 = vlaneseq
    %v430 = vshrl.u32 %v429, 7
    %v431 = vsub.s32 1, %v430
    %v432 = vrot.slane %v385, %v431
    %v443 = vunpack.c.l.b16 %v377
    %v444 = vunpack.c.h.b16 %v377
    %v445 = vunpack.c.l.b16 %v378
    %v446 = vunpack.c.h.b16 %v378
    %v447 = vunpack.c.l.b16 %v379
    %v448 = vunpack.c.h.b16 %v379
    %v449 = vunpack.c.l.b16 %v380
    %v450 = vunpack.c.h.b16 %v380
    %v451 = vunpack.c.l.b16 %v381
    %v452 = vunpack.c.h.b16 %v381
    %v453 = vunpack.c.l.b16 %v382
    %v454 = vunpack.c.h.b16 %v382
    %v455 = vunpack.c.l.b16 %v383
    %v456 = vunpack.c.h.b16 %v383
    %v457 = vunpack.c.l.b16 %v384
    %v458 = vunpack.c.h.b16 %v384
    %v459 = vpack.c.b16 %v445, %v443
    %v460 = vpack.c.b16 %v446, %v444
    %v461 = vpack.c.b16 %v449, %v447
    %v462 = vpack.c.b16 %v450, %v448
    %v463 = vpack.c.b16 %v453, %v451
    %v464 = vpack.c.b16 %v454, %v452
    %v465 = vpack.c.b16 %v457, %v455
    %v466 = vpack.c.b16 %v458, %v456
    %v476 = vsel %vm335, %v423, 0
    %478 = vmatprep.subr.bf16.mxu0 0
    %479 = vmatpush1.bf16.msra.mxu0 0
    %480 = vmatprep.subr.bf16.mxu0 0
    %481 = vmatpush1.bf16.msra.mxu0 0
    %482 = vmatprep.subr.bf16.mxu0 0
    %483 = vmatpush1.bf16.msra.mxu0 0
    %484 = vmatprep.subr.bf16.mxu0 0
    %485 = vmatpush1.bf16.msra.mxu0 0
    %486 = vmatprep.subr.bf16.mxu0 %v466
    %487 = vmatpush1.bf16.msra.mxu0 %v465
    %488 = vmatprep.subr.bf16.mxu0 %v464
    %489 = vmatpush1.bf16.msra.mxu0 %v463
    %490 = vmatprep.subr.bf16.mxu0 %v462
    %491 = vmatpush1.bf16.msra.mxu0 %v461
    %492 = vmatprep.subr.bf16.mxu0 %v460
    %493 = vmatpush1.bf16.msra.mxu0 %v459
    %494 = vmatprep.subr.bf16.mxu0 0
    %495 = vmatpush2.bf16.msra.mxu0 0
    %496 = vmatprep.subr.bf16.mxu0 0
    %497 = vmatpush2.bf16.msra.mxu0 0
    %498 = vmatprep.subr.bf16.mxu0 0
    %499 = vmatpush2.bf16.msra.mxu0 0
    %500 = vmatprep.subr.bf16.mxu0 0
    %501 = vmatpush2.bf16.msra.mxu0 0
    %502 = vmatprep.subr.bf16.mxu0 0
    %503 = vmatpush2.bf16.msra.mxu0 0
    %504 = vmatprep.subr.bf16.mxu0 0
    %505 = vmatpush2.bf16.msra.mxu0 0
    %506 = vmatprep.subr.bf16.mxu0 0
    %507 = vmatpush2.bf16.msra.mxu0 0
    %508 = vmatprep.subr.bf16.mxu0 0
    %509 = vmatpush2.bf16.msra.mxu0 0
    %510 = vmatprep.mubr.bf16.mxu0 0
    %511 = vmatmul.mubr.bf16.gmra.mxu0 %v476
    %v512 = vpop.f32.mrf.mxu0
    %v513 = vadd.f32 %v428, %v512
    %v514 = vpop.f32.mrf.mxu0
    %v515 = vadd.f32 %v432, %v514
    %v516 = vpop.f32.mrf.mxu0
    %v517 = vadd.f32 %v428, %v516
    %v518 = vpop.f32.mrf.mxu0
    %v519 = vadd.f32 %v432, %v518
    %520 = vdwg.mxu0
    %523 = vrot.lane.b32.xlu0 %v513, 64
    %v524 = vpop.permute.xlu0 %523
    %525 = vrot.lane.b32.xlu0 %v517, 64
    %v526 = vpop.permute.xlu0 %525
    %vm527 = vcmask 130048
    %v528 = vsel %vm527, %v513, 0
    %v530 = vsel %vm527, %v517, 0
    %v532 = vsel %vm527, %v524, 0
    %v534 = vsel %vm527, %v526, 0
    %536 = vmatprep.subr.mxu0 0.0
    %537 = vmatpush1.xpose.msra.mxu0 0.0
    %538 = vmatprep.subr.mxu0 0.0
    %539 = vmatpush1.xpose.msra.mxu0 0.0
    %540 = vmatprep.subr.mxu0 0.0
    %541 = vmatpush1.xpose.msra.mxu0 0.0
    %542 = vmatprep.subr.mxu0 0.0
    %543 = vmatpush1.xpose.msra.mxu0 0.0
    %544 = vmatprep.subr.mxu0 0.0
    %545 = vmatpush1.xpose.msra.mxu0 0.0
    %546 = vmatprep.subr.mxu0 0.0
    %547 = vmatpush1.xpose.msra.mxu0 0.0
    %548 = vmatprep.subr.mxu0 0.0
    %549 = vmatpush1.xpose.msra.mxu0 0.0
    %550 = vmatprep.subr.mxu0 0.0
    %551 = vmatpush1.xpose.msra.mxu0 0.0
    %552 = vmatprep.subr.mxu0 0.0
    %553 = vmatpush1.xpose.msra.mxu0 0.0
    %554 = vmatprep.subr.mxu0 0.0
    %555 = vmatpush1.xpose.msra.mxu0 0.0
    %556 = vmatprep.subr.mxu0 0.0
    %557 = vmatpush1.xpose.msra.mxu0 0.0
    %558 = vmatprep.subr.mxu0 0.0
    %559 = vmatpush1.xpose.msra.mxu0 0.0
    %560 = vmatprep.subr.mxu0 0.0
    %561 = vmatpush1.xpose.msra.mxu0 0.0
    %562 = vmatprep.subr.mxu0 0.0
    %563 = vmatpush1.xpose.msra.mxu0 0.0
    %564 = vmatprep.subr.mxu0 0.0
    %565 = vmatpush1.xpose.msra.mxu0 %v534
    %566 = vmatprep.subr.mxu0 0.0
    %567 = vmatpush1.xpose.msra.mxu0 %v532
    %568 = vmatprep.subr.mxu0 0.0
    %569 = vmatpush2.xpose.msra.mxu0 0.0
    %570 = vmatprep.subr.mxu0 0.0
    %571 = vmatpush2.xpose.msra.mxu0 0.0
    %572 = vmatprep.subr.mxu0 0.0
    %573 = vmatpush2.xpose.msra.mxu0 0.0
    %574 = vmatprep.subr.mxu0 0.0
    %575 = vmatpush2.xpose.msra.mxu0 0.0
    %576 = vmatprep.subr.mxu0 0.0
    %577 = vmatpush2.xpose.msra.mxu0 0.0
    %578 = vmatprep.subr.mxu0 0.0
    %579 = vmatpush2.xpose.msra.mxu0 0.0
    %580 = vmatprep.subr.mxu0 0.0
    %581 = vmatpush2.xpose.msra.mxu0 0.0
    %582 = vmatprep.subr.mxu0 0.0
    %583 = vmatpush2.xpose.msra.mxu0 0.0
    %584 = vmatprep.subr.mxu0 0.0
    %585 = vmatpush2.xpose.msra.mxu0 0.0
    %586 = vmatprep.subr.mxu0 0.0
    %587 = vmatpush2.xpose.msra.mxu0 0.0
    %588 = vmatprep.subr.mxu0 0.0
    %589 = vmatpush2.xpose.msra.mxu0 0.0
    %590 = vmatprep.subr.mxu0 0.0
    %591 = vmatpush2.xpose.msra.mxu0 0.0
    %592 = vmatprep.subr.mxu0 0.0
    %593 = vmatpush2.xpose.msra.mxu0 0.0
    %594 = vmatprep.subr.mxu0 0.0
    %595 = vmatpush2.xpose.msra.mxu0 0.0
    %596 = vmatprep.subr.mxu0 0.0
    %597 = vmatpush2.xpose.msra.mxu0 0.0
    %598 = vmatprep.subr.mxu0 0.0
    %599 = vmatpush2.xpose.msra.mxu0 0.0
    %600 = vmatprep.mubr.f32.mxu0 0.0
    %601 = vmatmul.mubr.f32.gmra.mxu0 %v528
    %v602 = vpop.f32.mrf.mxu0
    %v603 = vadd.f32 %v375, %v602
    %v604 = vpop.f32.mrf.mxu0
    %605 = vmatprep.mubr.f32.mxu0 0.0
    %606 = vmatmul.mubr.f32.gmra.mxu0 %v530
    %v607 = vpop.f32.mrf.mxu0
    %v608 = vadd.f32 %v376, %v607
    %v609 = vpop.f32.mrf.mxu0
    %610 = vdwg.mxu0
    %v611 = vsel %vm527, %v603, -inf
    %612 = vmax.xlane.f32.xlu0 %v611
    %v613 = vpop.xlane.xlu0 %612
    %v614 = vsel %vm527, %v608, -inf
    %615 = vmax.xlane.f32.xlu0 %v614
    %v616 = vpop.xlane.xlu0 %615
    %v617 = vsub.f32 %v603, %v613
    %v618 = vsub.f32 %v608, %v616
    %v619 = vmul.f32 %v617, 1.442695
    %v620 = vpow.pop %v619
    %v621 = vmul.f32 %v618, 1.442695
    %v622 = vpow.pop %v621
    %v623 = vsel %vm527, %v620, 0.0
    %624 = vadd.xlane.f32.xlu0 %v623
    %v625 = vpop.xlane.xlu0 %624
    %v626 = vsel %vm527, %v622, 0.0
    %627 = vadd.xlane.f32.xlu0 %v626
    %v628 = vpop.xlane.xlu0 %627
    %v629 = vrcp.pop %v625
    %v630 = vrcp.pop %v628
    %v631 = vmul.f32 %v620, %v629
    %v632 = vmul.f32 %v622, %v630
    %v634 = vsel %vm527, %v631, 0
    %v637 = vsel %vm527, %v632, 0
    %639 = vmatprep.subr.mxu0 0.0
    %640 = vmatpush1.msra.mxu0 0.0
    %641 = vmatprep.subr.mxu0 0.0
    %642 = vmatpush1.msra.mxu0 0.0
    %643 = vmatprep.subr.mxu0 0.0
    %644 = vmatpush1.msra.mxu0 0.0
    %645 = vmatprep.subr.mxu0 0.0
    %646 = vmatpush1.msra.mxu0 0.0
    %647 = vmatprep.subr.mxu0 0.0
    %648 = vmatpush1.msra.mxu0 0.0
    %649 = vmatprep.subr.mxu0 0.0
    %650 = vmatpush1.msra.mxu0 0.0
    %651 = vmatprep.subr.mxu0 0.0
    %652 = vmatpush1.msra.mxu0 0.0
    %653 = vmatprep.subr.mxu0 0.0
    %654 = vmatpush1.msra.mxu0 0.0
    %655 = vmatprep.subr.mxu0 0.0
    %656 = vmatpush1.msra.mxu0 0.0
    %657 = vmatprep.subr.mxu0 0.0
    %658 = vmatpush1.msra.mxu0 0.0
    %659 = vmatprep.subr.mxu0 0.0
    %660 = vmatpush1.msra.mxu0 0.0
    %661 = vmatprep.subr.mxu0 0.0
    %662 = vmatpush1.msra.mxu0 0.0
    %663 = vmatprep.subr.mxu0 0.0
    %664 = vmatpush1.msra.mxu0 0.0
    %665 = vmatprep.subr.mxu0 0.0
    %666 = vmatpush1.msra.mxu0 0.0
    %667 = vmatprep.subr.mxu0 0.0
    %668 = vmatpush1.msra.mxu0 %v519
    %669 = vmatprep.subr.mxu0 0.0
    %670 = vmatpush1.msra.mxu0 %v515
    %671 = vmatprep.subr.mxu0 0.0
    %672 = vmatpush2.msra.mxu0 0.0
    %673 = vmatprep.subr.mxu0 0.0
    %674 = vmatpush2.msra.mxu0 0.0
    %675 = vmatprep.subr.mxu0 0.0
    %676 = vmatpush2.msra.mxu0 0.0
    %677 = vmatprep.subr.mxu0 0.0
    %678 = vmatpush2.msra.mxu0 0.0
    %679 = vmatprep.subr.mxu0 0.0
    %680 = vmatpush2.msra.mxu0 0.0
    %681 = vmatprep.subr.mxu0 0.0
    %682 = vmatpush2.msra.mxu0 0.0
    %683 = vmatprep.subr.mxu0 0.0
    %684 = vmatpush2.msra.mxu0 0.0
    %685 = vmatprep.subr.mxu0 0.0
    %686 = vmatpush2.msra.mxu0 0.0
    %687 = vmatprep.subr.mxu0 0.0
    %688 = vmatpush2.msra.mxu0 0.0
    %689 = vmatprep.subr.mxu0 0.0
    %690 = vmatpush2.msra.mxu0 0.0
    %691 = vmatprep.subr.mxu0 0.0
    %692 = vmatpush2.msra.mxu0 0.0
    %693 = vmatprep.subr.mxu0 0.0
    %694 = vmatpush2.msra.mxu0 0.0
    %695 = vmatprep.subr.mxu0 0.0
    %696 = vmatpush2.msra.mxu0 0.0
    %697 = vmatprep.subr.mxu0 0.0
    %698 = vmatpush2.msra.mxu0 0.0
    %699 = vmatprep.subr.mxu0 0.0
    %700 = vmatpush2.msra.mxu0 0.0
    %701 = vmatprep.subr.mxu0 0.0
    %702 = vmatpush2.msra.mxu0 0.0
    %703 = vmatprep.mubr.f32.mxu0 0.0
    %704 = vmatmul.mubr.f32.gmra.mxu0 %v634
    %v705 = vpop.f32.mrf.mxu0
    %v706 = vadd.f32 0.0, %v705
    %v707 = vpop.f32.mrf.mxu0
    %708 = vmatprep.mubr.f32.mxu0 0.0
    %709 = vmatmul.mubr.f32.gmra.mxu0 %v637
    %v710 = vpop.f32.mrf.mxu0
    %v711 = vadd.f32 0.0, %v710
    %v712 = vpop.f32.mrf.mxu0
    %713 = vdwg.mxu0
    %714 = vrot.lane.b32.xlu0 %v513, 112
    %v715 = vpop.permute.xlu0 %714
    %716 = vrot.lane.b32.xlu0 %v517, 112
    %v717 = vpop.permute.xlu0 %716
    %718 = vrot.lane.b32.xlu0 %v513, 48
    %v719 = vpop.permute.xlu0 %718
    %720 = vrot.lane.b32.xlu0 %v517, 48
    %v721 = vpop.permute.xlu0 %720
    %v722 = vsel %vm527, %v715, 0
    %v724 = vsel %vm527, %v717, 0
    %v726 = vsel %vm527, %v719, 0
    %v728 = vsel %vm527, %v721, 0
    %730 = vmatprep.subr.mxu0 0.0
    %731 = vmatpush1.xpose.msra.mxu0 0.0
    %732 = vmatprep.subr.mxu0 0.0
    %733 = vmatpush1.xpose.msra.mxu0 0.0
    %734 = vmatprep.subr.mxu0 0.0
    %735 = vmatpush1.xpose.msra.mxu0 0.0
    %736 = vmatprep.subr.mxu0 0.0
    %737 = vmatpush1.xpose.msra.mxu0 0.0
    %738 = vmatprep.subr.mxu0 0.0
    %739 = vmatpush1.xpose.msra.mxu0 0.0
    %740 = vmatprep.subr.mxu0 0.0
    %741 = vmatpush1.xpose.msra.mxu0 0.0
    %742 = vmatprep.subr.mxu0 0.0
    %743 = vmatpush1.xpose.msra.mxu0 0.0
    %744 = vmatprep.subr.mxu0 0.0
    %745 = vmatpush1.xpose.msra.mxu0 0.0
    %746 = vmatprep.subr.mxu0 0.0
    %747 = vmatpush1.xpose.msra.mxu0 0.0
    %748 = vmatprep.subr.mxu0 0.0
    %749 = vmatpush1.xpose.msra.mxu0 0.0
    %750 = vmatprep.subr.mxu0 0.0
    %751 = vmatpush1.xpose.msra.mxu0 0.0
    %752 = vmatprep.subr.mxu0 0.0
    %753 = vmatpush1.xpose.msra.mxu0 0.0
    %754 = vmatprep.subr.mxu0 0.0
    %755 = vmatpush1.xpose.msra.mxu0 0.0
    %756 = vmatprep.subr.mxu0 0.0
    %757 = vmatpush1.xpose.msra.mxu0 0.0
    %758 = vmatprep.subr.mxu0 0.0
    %759 = vmatpush1.xpose.msra.mxu0 %v728
    %760 = vmatprep.subr.mxu0 0.0
    %761 = vmatpush1.xpose.msra.mxu0 %v726
    %762 = vmatprep.subr.mxu0 0.0
    %763 = vmatpush2.xpose.msra.mxu0 0.0
    %764 = vmatprep.subr.mxu0 0.0
    %765 = vmatpush2.xpose.msra.mxu0 0.0
    %766 = vmatprep.subr.mxu0 0.0
    %767 = vmatpush2.xpose.msra.mxu0 0.0
    %768 = vmatprep.subr.mxu0 0.0
    %769 = vmatpush2.xpose.msra.mxu0 0.0
    %770 = vmatprep.subr.mxu0 0.0
    %771 = vmatpush2.xpose.msra.mxu0 0.0
    %772 = vmatprep.subr.mxu0 0.0
    %773 = vmatpush2.xpose.msra.mxu0 0.0
    %774 = vmatprep.subr.mxu0 0.0
    %775 = vmatpush2.xpose.msra.mxu0 0.0
    %776 = vmatprep.subr.mxu0 0.0
    %777 = vmatpush2.xpose.msra.mxu0 0.0
    %778 = vmatprep.subr.mxu0 0.0
    %779 = vmatpush2.xpose.msra.mxu0 0.0
    %780 = vmatprep.subr.mxu0 0.0
    %781 = vmatpush2.xpose.msra.mxu0 0.0
    %782 = vmatprep.subr.mxu0 0.0
    %783 = vmatpush2.xpose.msra.mxu0 0.0
    %784 = vmatprep.subr.mxu0 0.0
    %785 = vmatpush2.xpose.msra.mxu0 0.0
    %786 = vmatprep.subr.mxu0 0.0
    %787 = vmatpush2.xpose.msra.mxu0 0.0
    %788 = vmatprep.subr.mxu0 0.0
    %789 = vmatpush2.xpose.msra.mxu0 0.0
    %790 = vmatprep.subr.mxu0 0.0
    %791 = vmatpush2.xpose.msra.mxu0 0.0
    %792 = vmatprep.subr.mxu0 0.0
    %793 = vmatpush2.xpose.msra.mxu0 0.0
    %794 = vmatprep.mubr.f32.mxu0 0.0
    %795 = vmatmul.mubr.f32.gmra.mxu0 %v722
    %v796 = vpop.f32.mrf.mxu0
    %v797 = vadd.f32 %v375, %v796
    %v798 = vpop.f32.mrf.mxu0
    %799 = vmatprep.mubr.f32.mxu0 0.0
    %800 = vmatmul.mubr.f32.gmra.mxu0 %v724
    %v801 = vpop.f32.mrf.mxu0
    %v802 = vadd.f32 %v376, %v801
    %v803 = vpop.f32.mrf.mxu0
    %804 = vdwg.mxu0
    %v805 = vsel %vm527, %v797, -inf
    %806 = vmax.xlane.f32.xlu0 %v805
    %v807 = vpop.xlane.xlu0 %806
    %v808 = vsel %vm527, %v802, -inf
    %809 = vmax.xlane.f32.xlu0 %v808
    %v810 = vpop.xlane.xlu0 %809
    %v811 = vsub.f32 %v797, %v807
    %v812 = vsub.f32 %v802, %v810
    %v813 = vmul.f32 %v811, 1.442695
    %v814 = vpow.pop %v813
    %v815 = vmul.f32 %v812, 1.442695
    %v816 = vpow.pop %v815
    %v817 = vsel %vm527, %v814, 0.0
    %818 = vadd.xlane.f32.xlu0 %v817
    %v819 = vpop.xlane.xlu0 %818
    %v820 = vsel %vm527, %v816, 0.0
    %821 = vadd.xlane.f32.xlu0 %v820
    %v822 = vpop.xlane.xlu0 %821
    %v823 = vrcp.pop %v819
    %v824 = vrcp.pop %v822
    %v825 = vmul.f32 %v814, %v823
    %v826 = vmul.f32 %v816, %v824
    %829 = vrot.lane.b32.xlu0 %v515, 112
    %v830 = vpop.permute.xlu0 %829
    %831 = vrot.lane.b32.xlu0 %v519, 112
    %v832 = vpop.permute.xlu0 %831
    %v836 = vsel %vm527, %v825, 0
    %v839 = vsel %vm527, %v826, 0
    %841 = vmatprep.subr.mxu0 0.0
    %842 = vmatpush1.msra.mxu0 0.0
    %843 = vmatprep.subr.mxu0 0.0
    %844 = vmatpush1.msra.mxu0 0.0
    %845 = vmatprep.subr.mxu0 0.0
    %846 = vmatpush1.msra.mxu0 0.0
    %847 = vmatprep.subr.mxu0 0.0
    %848 = vmatpush1.msra.mxu0 0.0
    %849 = vmatprep.subr.mxu0 0.0
    %850 = vmatpush1.msra.mxu0 0.0
    %851 = vmatprep.subr.mxu0 0.0
    %852 = vmatpush1.msra.mxu0 0.0
    %853 = vmatprep.subr.mxu0 0.0
    %854 = vmatpush1.msra.mxu0 0.0
    %855 = vmatprep.subr.mxu0 0.0
    %856 = vmatpush1.msra.mxu0 0.0
    %857 = vmatprep.subr.mxu0 0.0
    %858 = vmatpush1.msra.mxu0 0.0
    %859 = vmatprep.subr.mxu0 0.0
    %860 = vmatpush1.msra.mxu0 0.0
    %861 = vmatprep.subr.mxu0 0.0
    %862 = vmatpush1.msra.mxu0 0.0
    %863 = vmatprep.subr.mxu0 0.0
    %864 = vmatpush1.msra.mxu0 0.0
    %865 = vmatprep.subr.mxu0 0.0
    %866 = vmatpush1.msra.mxu0 0.0
    %867 = vmatprep.subr.mxu0 0.0
    %868 = vmatpush1.msra.mxu0 0.0
    %869 = vmatprep.subr.mxu0 0.0
    %870 = vmatpush1.msra.mxu0 %v832
    %871 = vmatprep.subr.mxu0 0.0
    %872 = vmatpush1.msra.mxu0 %v830
    %873 = vmatprep.subr.mxu0 0.0
    %874 = vmatpush2.msra.mxu0 0.0
    %875 = vmatprep.subr.mxu0 0.0
    %876 = vmatpush2.msra.mxu0 0.0
    %877 = vmatprep.subr.mxu0 0.0
    %878 = vmatpush2.msra.mxu0 0.0
    %879 = vmatprep.subr.mxu0 0.0
    %880 = vmatpush2.msra.mxu0 0.0
    %881 = vmatprep.subr.mxu0 0.0
    %882 = vmatpush2.msra.mxu0 0.0
    %883 = vmatprep.subr.mxu0 0.0
    %884 = vmatpush2.msra.mxu0 0.0
    %885 = vmatprep.subr.mxu0 0.0
    %886 = vmatpush2.msra.mxu0 0.0
    %887 = vmatprep.subr.mxu0 0.0
    %888 = vmatpush2.msra.mxu0 0.0
    %889 = vmatprep.subr.mxu0 0.0
    %890 = vmatpush2.msra.mxu0 0.0
    %891 = vmatprep.subr.mxu0 0.0
    %892 = vmatpush2.msra.mxu0 0.0
    %893 = vmatprep.subr.mxu0 0.0
    %894 = vmatpush2.msra.mxu0 0.0
    %895 = vmatprep.subr.mxu0 0.0
    %896 = vmatpush2.msra.mxu0 0.0
    %897 = vmatprep.subr.mxu0 0.0
    %898 = vmatpush2.msra.mxu0 0.0
    %899 = vmatprep.subr.mxu0 0.0
    %900 = vmatpush2.msra.mxu0 0.0
    %901 = vmatprep.subr.mxu0 0.0
    %902 = vmatpush2.msra.mxu0 0.0
    %903 = vmatprep.subr.mxu0 0.0
    %904 = vmatpush2.msra.mxu0 0.0
    %905 = vmatprep.mubr.f32.mxu0 0.0
    %906 = vmatmul.mubr.f32.gmra.mxu0 %v836
    %v907 = vpop.f32.mrf.mxu0
    %v908 = vadd.f32 0.0, %v907
    %v909 = vpop.f32.mrf.mxu0
    %910 = vmatprep.mubr.f32.mxu0 0.0
    %911 = vmatmul.mubr.f32.gmra.mxu0 %v839
    %v912 = vpop.f32.mrf.mxu0
    %v913 = vadd.f32 0.0, %v912
    %v914 = vpop.f32.mrf.mxu0
    %915 = vdwg.mxu0
    %916 = vrot.lane.b32.xlu0 %v513, 96
    %v917 = vpop.permute.xlu0 %916
    %918 = vrot.lane.b32.xlu0 %v517, 96
    %v919 = vpop.permute.xlu0 %918
    %920 = vrot.lane.b32.xlu0 %v513, 32
    %v921 = vpop.permute.xlu0 %920
    %922 = vrot.lane.b32.xlu0 %v517, 32
    %v923 = vpop.permute.xlu0 %922
    %v924 = vsel %vm527, %v917, 0
    %v926 = vsel %vm527, %v919, 0
    %v928 = vsel %vm527, %v921, 0
    %v930 = vsel %vm527, %v923, 0
    %932 = vmatprep.subr.mxu0 0.0
    %933 = vmatpush1.xpose.msra.mxu0 0.0
    %934 = vmatprep.subr.mxu0 0.0
    %935 = vmatpush1.xpose.msra.mxu0 0.0
    %936 = vmatprep.subr.mxu0 0.0
    %937 = vmatpush1.xpose.msra.mxu0 0.0
    %938 = vmatprep.subr.mxu0 0.0
    %939 = vmatpush1.xpose.msra.mxu0 0.0
    %940 = vmatprep.subr.mxu0 0.0
    %941 = vmatpush1.xpose.msra.mxu0 0.0
    %942 = vmatprep.subr.mxu0 0.0
    %943 = vmatpush1.xpose.msra.mxu0 0.0
    %944 = vmatprep.subr.mxu0 0.0
    %945 = vmatpush1.xpose.msra.mxu0 0.0
    %946 = vmatprep.subr.mxu0 0.0
    %947 = vmatpush1.xpose.msra.mxu0 0.0
    %948 = vmatprep.subr.mxu0 0.0
    %949 = vmatpush1.xpose.msra.mxu0 0.0
    %950 = vmatprep.subr.mxu0 0.0
    %951 = vmatpush1.xpose.msra.mxu0 0.0
    %952 = vmatprep.subr.mxu0 0.0
    %953 = vmatpush1.xpose.msra.mxu0 0.0
    %954 = vmatprep.subr.mxu0 0.0
    %955 = vmatpush1.xpose.msra.mxu0 0.0
    %956 = vmatprep.subr.mxu0 0.0
    %957 = vmatpush1.xpose.msra.mxu0 0.0
    %958 = vmatprep.subr.mxu0 0.0
    %959 = vmatpush1.xpose.msra.mxu0 0.0
    %960 = vmatprep.subr.mxu0 0.0
    %961 = vmatpush1.xpose.msra.mxu0 %v930
    %962 = vmatprep.subr.mxu0 0.0
    %963 = vmatpush1.xpose.msra.mxu0 %v928
    %964 = vmatprep.subr.mxu0 0.0
    %965 = vmatpush2.xpose.msra.mxu0 0.0
    %966 = vmatprep.subr.mxu0 0.0
    %967 = vmatpush2.xpose.msra.mxu0 0.0
    %968 = vmatprep.subr.mxu0 0.0
    %969 = vmatpush2.xpose.msra.mxu0 0.0
    %970 = vmatprep.subr.mxu0 0.0
    %971 = vmatpush2.xpose.msra.mxu0 0.0
    %972 = vmatprep.subr.mxu0 0.0
    %973 = vmatpush2.xpose.msra.mxu0 0.0
    %974 = vmatprep.subr.mxu0 0.0
    %975 = vmatpush2.xpose.msra.mxu0 0.0
    %976 = vmatprep.subr.mxu0 0.0
    %977 = vmatpush2.xpose.msra.mxu0 0.0
    %978 = vmatprep.subr.mxu0 0.0
    %979 = vmatpush2.xpose.msra.mxu0 0.0
    %980 = vmatprep.subr.mxu0 0.0
    %981 = vmatpush2.xpose.msra.mxu0 0.0
    %982 = vmatprep.subr.mxu0 0.0
    %983 = vmatpush2.xpose.msra.mxu0 0.0
    %984 = vmatprep.subr.mxu0 0.0
    %985 = vmatpush2.xpose.msra.mxu0 0.0
    %986 = vmatprep.subr.mxu0 0.0
    %987 = vmatpush2.xpose.msra.mxu0 0.0
    %988 = vmatprep.subr.mxu0 0.0
    %989 = vmatpush2.xpose.msra.mxu0 0.0
    %990 = vmatprep.subr.mxu0 0.0
    %991 = vmatpush2.xpose.msra.mxu0 0.0
    %992 = vmatprep.subr.mxu0 0.0
    %993 = vmatpush2.xpose.msra.mxu0 0.0
    %994 = vmatprep.subr.mxu0 0.0
    %995 = vmatpush2.xpose.msra.mxu0 0.0
    %996 = vmatprep.mubr.f32.mxu0 0.0
    %997 = vmatmul.mubr.f32.gmra.mxu0 %v924
    %v998 = vpop.f32.mrf.mxu0
    %v999 = vadd.f32 %v375, %v998
    %v1000 = vpop.f32.mrf.mxu0
    %1001 = vmatprep.mubr.f32.mxu0 0.0
    %1002 = vmatmul.mubr.f32.gmra.mxu0 %v926
    %v1003 = vpop.f32.mrf.mxu0
    %v1004 = vadd.f32 %v376, %v1003
    %v1005 = vpop.f32.mrf.mxu0
    %1006 = vdwg.mxu0
    %v1007 = vsel %vm527, %v999, -inf
    %1008 = vmax.xlane.f32.xlu0 %v1007
    %v1009 = vpop.xlane.xlu0 %1008
    %v1010 = vsel %vm527, %v1004, -inf
    %1011 = vmax.xlane.f32.xlu0 %v1010
    %v1012 = vpop.xlane.xlu0 %1011
    %v1013 = vsub.f32 %v999, %v1009
    %v1014 = vsub.f32 %v1004, %v1012
    %v1015 = vmul.f32 %v1013, 1.442695
    %v1016 = vpow.pop %v1015
    %v1017 = vmul.f32 %v1014, 1.442695
    %v1018 = vpow.pop %v1017
    %v1019 = vsel %vm527, %v1016, 0.0
    %1020 = vadd.xlane.f32.xlu0 %v1019
    %v1021 = vpop.xlane.xlu0 %1020
    %v1022 = vsel %vm527, %v1018, 0.0
    %1023 = vadd.xlane.f32.xlu0 %v1022
    %v1024 = vpop.xlane.xlu0 %1023
    %v1025 = vrcp.pop %v1021
    %v1026 = vrcp.pop %v1024
    %v1027 = vmul.f32 %v1016, %v1025
    %v1028 = vmul.f32 %v1018, %v1026
    %1029 = vrot.lane.b32.xlu0 %v515, 96
    %v1030 = vpop.permute.xlu0 %1029
    %1031 = vrot.lane.b32.xlu0 %v519, 96
    %v1032 = vpop.permute.xlu0 %1031
    %v1036 = vsel %vm527, %v1027, 0
    %v1039 = vsel %vm527, %v1028, 0
    %1041 = vmatprep.subr.mxu0 0.0
    %1042 = vmatpush1.msra.mxu0 0.0
    %1043 = vmatprep.subr.mxu0 0.0
    %1044 = vmatpush1.msra.mxu0 0.0
    %1045 = vmatprep.subr.mxu0 0.0
    %1046 = vmatpush1.msra.mxu0 0.0
    %1047 = vmatprep.subr.mxu0 0.0
    %1048 = vmatpush1.msra.mxu0 0.0
    %1049 = vmatprep.subr.mxu0 0.0
    %1050 = vmatpush1.msra.mxu0 0.0
    %1051 = vmatprep.subr.mxu0 0.0
    %1052 = vmatpush1.msra.mxu0 0.0
    %1053 = vmatprep.subr.mxu0 0.0
    %1054 = vmatpush1.msra.mxu0 0.0
    %1055 = vmatprep.subr.mxu0 0.0
    %1056 = vmatpush1.msra.mxu0 0.0
    %1057 = vmatprep.subr.mxu0 0.0
    %1058 = vmatpush1.msra.mxu0 0.0
    %1059 = vmatprep.subr.mxu0 0.0
    %1060 = vmatpush1.msra.mxu0 0.0
    %1061 = vmatprep.subr.mxu0 0.0
    %1062 = vmatpush1.msra.mxu0 0.0
    %1063 = vmatprep.subr.mxu0 0.0
    %1064 = vmatpush1.msra.mxu0 0.0
    %1065 = vmatprep.subr.mxu0 0.0
    %1066 = vmatpush1.msra.mxu0 0.0
    %1067 = vmatprep.subr.mxu0 0.0
    %1068 = vmatpush1.msra.mxu0 0.0
    %1069 = vmatprep.subr.mxu0 0.0
    %1070 = vmatpush1.msra.mxu0 %v1032
    %1071 = vmatprep.subr.mxu0 0.0
    %1072 = vmatpush1.msra.mxu0 %v1030
    %1073 = vmatprep.subr.mxu0 0.0
    %1074 = vmatpush2.msra.mxu0 0.0
    %1075 = vmatprep.subr.mxu0 0.0
    %1076 = vmatpush2.msra.mxu0 0.0
    %1077 = vmatprep.subr.mxu0 0.0
    %1078 = vmatpush2.msra.mxu0 0.0
    %1079 = vmatprep.subr.mxu0 0.0
    %1080 = vmatpush2.msra.mxu0 0.0
    %1081 = vmatprep.subr.mxu0 0.0
    %1082 = vmatpush2.msra.mxu0 0.0
    %1083 = vmatprep.subr.mxu0 0.0
    %1084 = vmatpush2.msra.mxu0 0.0
    %1085 = vmatprep.subr.mxu0 0.0
    %1086 = vmatpush2.msra.mxu0 0.0
    %1087 = vmatprep.subr.mxu0 0.0
    %1088 = vmatpush2.msra.mxu0 0.0
    %1089 = vmatprep.subr.mxu0 0.0
    %1090 = vmatpush2.msra.mxu0 0.0
    %1091 = vmatprep.subr.mxu0 0.0
    %1092 = vmatpush2.msra.mxu0 0.0
    %1093 = vmatprep.subr.mxu0 0.0
    %1094 = vmatpush2.msra.mxu0 0.0
    %1095 = vmatprep.subr.mxu0 0.0
    %1096 = vmatpush2.msra.mxu0 0.0
    %1097 = vmatprep.subr.mxu0 0.0
    %1098 = vmatpush2.msra.mxu0 0.0
    %1099 = vmatprep.subr.mxu0 0.0
    %1100 = vmatpush2.msra.mxu0 0.0
    %1101 = vmatprep.subr.mxu0 0.0
    %1102 = vmatpush2.msra.mxu0 0.0
    %1103 = vmatprep.subr.mxu0 0.0
    %1104 = vmatpush2.msra.mxu0 0.0
    %1105 = vmatprep.mubr.f32.mxu0 0.0
    %1106 = vmatmul.mubr.f32.gmra.mxu0 %v1036
    %v1107 = vpop.f32.mrf.mxu0
    %v1108 = vadd.f32 0.0, %v1107
    %v1109 = vpop.f32.mrf.mxu0
    %1110 = vmatprep.mubr.f32.mxu0 0.0
    %1111 = vmatmul.mubr.f32.gmra.mxu0 %v1039
    %v1112 = vpop.f32.mrf.mxu0
    %v1113 = vadd.f32 0.0, %v1112
    %v1114 = vpop.f32.mrf.mxu0
    %1115 = vdwg.mxu0
    %1116 = vrot.lane.b32.xlu0 %v513, 80
    %v1117 = vpop.permute.xlu0 %1116
    %1118 = vrot.lane.b32.xlu0 %v517, 80
    %v1119 = vpop.permute.xlu0 %1118
    %1120 = vrot.lane.b32.xlu0 %v513, 16
    %v1121 = vpop.permute.xlu0 %1120
    %1122 = vrot.lane.b32.xlu0 %v517, 16
    %v1123 = vpop.permute.xlu0 %1122
    %v1124 = vsel %vm527, %v1117, 0
    %v1126 = vsel %vm527, %v1119, 0
    %v1128 = vsel %vm527, %v1121, 0
    %v1130 = vsel %vm527, %v1123, 0
    %1132 = vmatprep.subr.mxu0 0.0
    %1133 = vmatpush1.xpose.msra.mxu0 0.0
    %1134 = vmatprep.subr.mxu0 0.0
    %1135 = vmatpush1.xpose.msra.mxu0 0.0
    %1136 = vmatprep.subr.mxu0 0.0
    %1137 = vmatpush1.xpose.msra.mxu0 0.0
    %1138 = vmatprep.subr.mxu0 0.0
    %1139 = vmatpush1.xpose.msra.mxu0 0.0
    %1140 = vmatprep.subr.mxu0 0.0
    %1141 = vmatpush1.xpose.msra.mxu0 0.0
    %1142 = vmatprep.subr.mxu0 0.0
    %1143 = vmatpush1.xpose.msra.mxu0 0.0
    %1144 = vmatprep.subr.mxu0 0.0
    %1145 = vmatpush1.xpose.msra.mxu0 0.0
    %1146 = vmatprep.subr.mxu0 0.0
    %1147 = vmatpush1.xpose.msra.mxu0 0.0
    %1148 = vmatprep.subr.mxu0 0.0
    %1149 = vmatpush1.xpose.msra.mxu0 0.0
    %1150 = vmatprep.subr.mxu0 0.0
    %1151 = vmatpush1.xpose.msra.mxu0 0.0
    %1152 = vmatprep.subr.mxu0 0.0
    %1153 = vmatpush1.xpose.msra.mxu0 0.0
    %1154 = vmatprep.subr.mxu0 0.0
    %1155 = vmatpush1.xpose.msra.mxu0 0.0
    %1156 = vmatprep.subr.mxu0 0.0
    %1157 = vmatpush1.xpose.msra.mxu0 0.0
    %1158 = vmatprep.subr.mxu0 0.0
    %1159 = vmatpush1.xpose.msra.mxu0 0.0
    %1160 = vmatprep.subr.mxu0 0.0
    %1161 = vmatpush1.xpose.msra.mxu0 %v1130
    %1162 = vmatprep.subr.mxu0 0.0
    %1163 = vmatpush1.xpose.msra.mxu0 %v1128
    %1164 = vmatprep.subr.mxu0 0.0
    %1165 = vmatpush2.xpose.msra.mxu0 0.0
    %1166 = vmatprep.subr.mxu0 0.0
    %1167 = vmatpush2.xpose.msra.mxu0 0.0
    %1168 = vmatprep.subr.mxu0 0.0
    %1169 = vmatpush2.xpose.msra.mxu0 0.0
    %1170 = vmatprep.subr.mxu0 0.0
    %1171 = vmatpush2.xpose.msra.mxu0 0.0
    %1172 = vmatprep.subr.mxu0 0.0
    %1173 = vmatpush2.xpose.msra.mxu0 0.0
    %1174 = vmatprep.subr.mxu0 0.0
    %1175 = vmatpush2.xpose.msra.mxu0 0.0
    %1176 = vmatprep.subr.mxu0 0.0
    %1177 = vmatpush2.xpose.msra.mxu0 0.0
    %1178 = vmatprep.subr.mxu0 0.0
    %1179 = vmatpush2.xpose.msra.mxu0 0.0
    %1180 = vmatprep.subr.mxu0 0.0
    %1181 = vmatpush2.xpose.msra.mxu0 0.0
    %1182 = vmatprep.subr.mxu0 0.0
    %1183 = vmatpush2.xpose.msra.mxu0 0.0
    %1184 = vmatprep.subr.mxu0 0.0
    %1185 = vmatpush2.xpose.msra.mxu0 0.0
    %1186 = vmatprep.subr.mxu0 0.0
    %1187 = vmatpush2.xpose.msra.mxu0 0.0
    %1188 = vmatprep.subr.mxu0 0.0
    %1189 = vmatpush2.xpose.msra.mxu0 0.0
    %1190 = vmatprep.subr.mxu0 0.0
    %1191 = vmatpush2.xpose.msra.mxu0 0.0
    %1192 = vmatprep.subr.mxu0 0.0
    %1193 = vmatpush2.xpose.msra.mxu0 0.0
    %1194 = vmatprep.subr.mxu0 0.0
    %1195 = vmatpush2.xpose.msra.mxu0 0.0
    %1196 = vmatprep.mubr.f32.mxu0 0.0
    %1197 = vmatmul.mubr.f32.gmra.mxu0 %v1124
    %v1198 = vpop.f32.mrf.mxu0
    %v1199 = vadd.f32 %v375, %v1198
    %v1200 = vpop.f32.mrf.mxu0
    %1201 = vmatprep.mubr.f32.mxu0 0.0
    %1202 = vmatmul.mubr.f32.gmra.mxu0 %v1126
    %v1203 = vpop.f32.mrf.mxu0
    %v1204 = vadd.f32 %v376, %v1203
    %v1205 = vpop.f32.mrf.mxu0
    %1206 = vdwg.mxu0
    %v1207 = vsel %vm527, %v1199, -inf
    %1208 = vmax.xlane.f32.xlu0 %v1207
    %v1209 = vpop.xlane.xlu0 %1208
    %v1210 = vsel %vm527, %v1204, -inf
    %1211 = vmax.xlane.f32.xlu0 %v1210
    %v1212 = vpop.xlane.xlu0 %1211
    %v1213 = vsub.f32 %v1199, %v1209
    %v1214 = vsub.f32 %v1204, %v1212
    %v1215 = vmul.f32 %v1213, 1.442695
    %v1216 = vpow.pop %v1215
    %v1217 = vmul.f32 %v1214, 1.442695
    %v1218 = vpow.pop %v1217
    %v1219 = vsel %vm527, %v1216, 0.0
    %1220 = vadd.xlane.f32.xlu0 %v1219
    %v1221 = vpop.xlane.xlu0 %1220
    %v1222 = vsel %vm527, %v1218, 0.0
    %1223 = vadd.xlane.f32.xlu0 %v1222
    %v1224 = vpop.xlane.xlu0 %1223
    %v1225 = vrcp.pop %v1221
    %v1226 = vrcp.pop %v1224
    %v1227 = vmul.f32 %v1216, %v1225
    %v1228 = vmul.f32 %v1218, %v1226
    %1229 = vrot.lane.b32.xlu0 %v515, 80
    %v1230 = vpop.permute.xlu0 %1229
    %1231 = vrot.lane.b32.xlu0 %v519, 80
    %v1232 = vpop.permute.xlu0 %1231
    %v1236 = vsel %vm527, %v1227, 0
    %v1239 = vsel %vm527, %v1228, 0
    %1241 = vmatprep.subr.mxu0 0.0
    %1242 = vmatpush1.msra.mxu0 0.0
    %1243 = vmatprep.subr.mxu0 0.0
    %1244 = vmatpush1.msra.mxu0 0.0
    %1245 = vmatprep.subr.mxu0 0.0
    %1246 = vmatpush1.msra.mxu0 0.0
    %1247 = vmatprep.subr.mxu0 0.0
    %1248 = vmatpush1.msra.mxu0 0.0
    %1249 = vmatprep.subr.mxu0 0.0
    %1250 = vmatpush1.msra.mxu0 0.0
    %1251 = vmatprep.subr.mxu0 0.0
    %1252 = vmatpush1.msra.mxu0 0.0
    %1253 = vmatprep.subr.mxu0 0.0
    %1254 = vmatpush1.msra.mxu0 0.0
    %1255 = vmatprep.subr.mxu0 0.0
    %1256 = vmatpush1.msra.mxu0 0.0
    %1257 = vmatprep.subr.mxu0 0.0
    %1258 = vmatpush1.msra.mxu0 0.0
    %1259 = vmatprep.subr.mxu0 0.0
    %1260 = vmatpush1.msra.mxu0 0.0
    %1261 = vmatprep.subr.mxu0 0.0
    %1262 = vmatpush1.msra.mxu0 0.0
    %1263 = vmatprep.subr.mxu0 0.0
    %1264 = vmatpush1.msra.mxu0 0.0
    %1265 = vmatprep.subr.mxu0 0.0
    %1266 = vmatpush1.msra.mxu0 0.0
    %1267 = vmatprep.subr.mxu0 0.0
    %1268 = vmatpush1.msra.mxu0 0.0
    %1269 = vmatprep.subr.mxu0 0.0
    %1270 = vmatpush1.msra.mxu0 %v1232
    %1271 = vmatprep.subr.mxu0 0.0
    %1272 = vmatpush1.msra.mxu0 %v1230
    %1273 = vmatprep.subr.mxu0 0.0
    %1274 = vmatpush2.msra.mxu0 0.0
    %1275 = vmatprep.subr.mxu0 0.0
    %1276 = vmatpush2.msra.mxu0 0.0
    %1277 = vmatprep.subr.mxu0 0.0
    %1278 = vmatpush2.msra.mxu0 0.0
    %1279 = vmatprep.subr.mxu0 0.0
    %1280 = vmatpush2.msra.mxu0 0.0
    %1281 = vmatprep.subr.mxu0 0.0
    %1282 = vmatpush2.msra.mxu0 0.0
    %1283 = vmatprep.subr.mxu0 0.0
    %1284 = vmatpush2.msra.mxu0 0.0
    %1285 = vmatprep.subr.mxu0 0.0
    %1286 = vmatpush2.msra.mxu0 0.0
    %1287 = vmatprep.subr.mxu0 0.0
    %1288 = vmatpush2.msra.mxu0 0.0
    %1289 = vmatprep.subr.mxu0 0.0
    %1290 = vmatpush2.msra.mxu0 0.0
    %1291 = vmatprep.subr.mxu0 0.0
    %1292 = vmatpush2.msra.mxu0 0.0
    %1293 = vmatprep.subr.mxu0 0.0
    %1294 = vmatpush2.msra.mxu0 0.0
    %1295 = vmatprep.subr.mxu0 0.0
    %1296 = vmatpush2.msra.mxu0 0.0
    %1297 = vmatprep.subr.mxu0 0.0
    %1298 = vmatpush2.msra.mxu0 0.0
    %1299 = vmatprep.subr.mxu0 0.0
    %1300 = vmatpush2.msra.mxu0 0.0
    %1301 = vmatprep.subr.mxu0 0.0
    %1302 = vmatpush2.msra.mxu0 0.0
    %1303 = vmatprep.subr.mxu0 0.0
    %1304 = vmatpush2.msra.mxu0 0.0
    %1305 = vmatprep.mubr.f32.mxu0 0.0
    %1306 = vmatmul.mubr.f32.gmra.mxu0 %v1236
    %v1307 = vpop.f32.mrf.mxu0
    %v1308 = vadd.f32 0.0, %v1307
    %v1309 = vpop.f32.mrf.mxu0
    %1310 = vmatprep.mubr.f32.mxu0 0.0
    %1311 = vmatmul.mubr.f32.gmra.mxu0 %v1239
    %v1312 = vpop.f32.mrf.mxu0
    %v1313 = vadd.f32 0.0, %v1312
    %v1314 = vpop.f32.mrf.mxu0
    %1315 = vdwg.mxu0
    %1318 = vrot.lane.b32.xlu0 %v908, 16
    %v1319 = vpop.permute.xlu0 %1318
    %1320 = vrot.lane.b32.xlu0 %v913, 16
    %v1321 = vpop.permute.xlu0 %1320
    %1326 = vrot.lane.b32.xlu0 %v1108, 32
    %v1327 = vpop.permute.xlu0 %1326
    %1328 = vrot.lane.b32.xlu0 %v1113, 32
    %v1329 = vpop.permute.xlu0 %1328
    %1334 = vrot.lane.b32.xlu0 %v1308, 48
    %v1335 = vpop.permute.xlu0 %1334
    %1336 = vrot.lane.b32.xlu0 %v1313, 48
    %v1337 = vpop.permute.xlu0 %1336
    %v1340 = vsel %vm527, %v706, %v1319
    %v1341 = vsel %vm527, %v711, %v1321
    %vm1342 = vcmask 261120
    %v1343 = vsel %vm1342, %v1340, %v1327
    %v1344 = vsel %vm1342, %v1341, %v1329
    %vm1345 = vcmask 392192
    %v1346 = vsel %vm1345, %v1343, %v1335
    %v1347 = vsel %vm1345, %v1344, %v1337
    %v1348 = vpack.c.bf16 %v1347, %v1346
    %v1350 = vlaneseq
    %v1351 = vshrl.u32 %v1350, 7
    %v1352 = vsub.s32 0, %v1351
    %v1353 = vrot.slane %v394, %v1352
    %v1363 = vunpack.c.l.b16 %v386
    %v1364 = vunpack.c.l.b16 %v387
    %v1365 = vunpack.c.l.b16 %v388
    %v1366 = vunpack.c.l.b16 %v389
    %v1367 = vunpack.c.l.b16 %v390
    %v1368 = vunpack.c.l.b16 %v391
    %v1369 = vunpack.c.l.b16 %v392
    %v1370 = vunpack.c.l.b16 %v393
    %v1371 = vpack.c.b16 %v1364, %v1363
    %v1372 = vpack.c.b16 %v1366, %v1365
    %v1373 = vpack.c.b16 %v1368, %v1367
    %v1374 = vpack.c.b16 %v1370, %v1369
    %v1380 = vsel %vm335, %v1348, 0
    %1382 = vmatprep.subr.bf16.mxu0 0
    %1383 = vmatpush1.bf16.msra.mxu0 0
    %1384 = vmatprep.subr.bf16.mxu0 0
    %1385 = vmatpush1.bf16.msra.mxu0 0
    %1386 = vmatprep.subr.bf16.mxu0 0
    %1387 = vmatpush1.bf16.msra.mxu0 0
    %1388 = vmatprep.subr.bf16.mxu0 0
    %1389 = vmatpush1.bf16.msra.mxu0 0
    %1390 = vmatprep.subr.bf16.mxu0 0
    %1391 = vmatpush1.bf16.msra.mxu0 %v1374
    %1392 = vmatprep.subr.bf16.mxu0 0
    %1393 = vmatpush1.bf16.msra.mxu0 %v1373
    %1394 = vmatprep.subr.bf16.mxu0 0
    %1395 = vmatpush1.bf16.msra.mxu0 %v1372
    %1396 = vmatprep.subr.bf16.mxu0 0
    %1397 = vmatpush1.bf16.msra.mxu0 %v1371
    %1398 = vmatprep.subr.bf16.mxu0 0
    %1399 = vmatpush2.bf16.msra.mxu0 0
    %1400 = vmatprep.subr.bf16.mxu0 0
    %1401 = vmatpush2.bf16.msra.mxu0 0
    %1402 = vmatprep.subr.bf16.mxu0 0
    %1403 = vmatpush2.bf16.msra.mxu0 0
    %1404 = vmatprep.subr.bf16.mxu0 0
    %1405 = vmatpush2.bf16.msra.mxu0 0
    %1406 = vmatprep.subr.bf16.mxu0 0
    %1407 = vmatpush2.bf16.msra.mxu0 0
    %1408 = vmatprep.subr.bf16.mxu0 0
    %1409 = vmatpush2.bf16.msra.mxu0 0
    %1410 = vmatprep.subr.bf16.mxu0 0
    %1411 = vmatpush2.bf16.msra.mxu0 0
    %1412 = vmatprep.subr.bf16.mxu0 0
    %1413 = vmatpush2.bf16.msra.mxu0 0
    %1414 = vmatprep.mubr.bf16.mxu0 0
    %1415 = vmatmul.mubr.bf16.gmra.mxu0 %v1380
    %v1416 = vpop.f32.mrf.mxu0
    %v1417 = vadd.f32 %v1353, %v1416
    %v1418 = vpop.f32.mrf.mxu0
    %v1419 = vpop.f32.mrf.mxu0
    %v1420 = vadd.f32 %v1353, %v1419
    %v1421 = vpop.f32.mrf.mxu0
    %1422 = vdwg.mxu0
    %v1423 = vadd.f32 %v373, %v1417
    %v1424 = vadd.f32 %v374, %v1420
    %v1425 = vsel %vm335, %v1423, 0.0
    %1426 = vadd.xlane.f32.xlu0 %v1425
    %v1427 = vpop.xlane.xlu0 %1426
    %v1428 = vsel %vm335, %v1424, 0.0
    %1429 = vadd.xlane.f32.xlu0 %v1428
    %v1430 = vpop.xlane.xlu0 %1429
    %v1431 = vmul.f32 %v1427, %v342
    %v1432 = vmul.f32 %v1430, %v342
    %v1433 = vsub.f32 %v1423, %v1431
    %v1434 = vsub.f32 %v1424, %v1432
    %v1435 = vmul.f32 %v1433, %v1433
    %v1436 = vmul.f32 %v1434, %v1434
    %v1437 = vsel %vm335, %v1435, 0.0
    %1438 = vadd.xlane.f32.xlu0 %v1437
    %v1439 = vpop.xlane.xlu0 %1438
    %v1440 = vsel %vm335, %v1436, 0.0
    %1441 = vadd.xlane.f32.xlu0 %v1440
    %v1442 = vpop.xlane.xlu0 %1441
    %v1443 = vmul.f32 %v1439, %v342
    %v1444 = vmul.f32 %v1442, %v342
    %v1445 = vadd.f32 %v1443, 1e-05
    %v1446 = vadd.f32 %v1444, 1e-05
    %v1447 = vrsqrt.pop %v1445
    %v1448 = vrsqrt.pop %v1446
    %v1449 = vmul.f32 %v1433, %v1447
    %v1450 = vmul.f32 %v1434, %v1448
    %v1451 = vlaneseq
    %v1452 = vshrl.u32 %v1451, 7
    %v1453 = vsub.s32 0, %v1452
    %v1454 = vrot.slane %v395, %v1453
    %v1455 = vmul.f32 %v1449, %v1454
    %v1456 = vmul.f32 %v1450, %v1454
    %v1457 = vlaneseq
    %v1458 = vshrl.u32 %v1457, 7
    %v1459 = vsub.s32 1, %v1458
    %v1460 = vrot.slane %v395, %v1459
    %v1461 = vadd.f32 %v1455, %v1460
    %v1462 = vadd.f32 %v1456, %v1460
    %v1463 = vpack.c.bf16 %v1462, %v1461
    %v1465 = vlaneseq
    %v1466 = vshrl.u32 %v1465, 7
    %v1467 = vsub.s32 0, %v1466
    %v1468 = vrot.slane %v404, %v1467
    %v1478 = vunpack.c.l.b16 %v396
    %v1479 = vunpack.c.l.b16 %v397
    %v1480 = vunpack.c.l.b16 %v398
    %v1481 = vunpack.c.l.b16 %v399
    %v1482 = vunpack.c.l.b16 %v400
    %v1483 = vunpack.c.l.b16 %v401
    %v1484 = vunpack.c.l.b16 %v402
    %v1485 = vunpack.c.l.b16 %v403
    %v1486 = vpack.c.b16 %v1479, %v1478
    %v1487 = vpack.c.b16 %v1481, %v1480
    %v1488 = vpack.c.b16 %v1483, %v1482
    %v1489 = vpack.c.b16 %v1485, %v1484
    %v1495 = vsel %vm335, %v1463, 0
    %1497 = vmatprep.subr.bf16.mxu0 0
    %1498 = vmatpush1.bf16.msra.mxu0 0
    %1499 = vmatprep.subr.bf16.mxu0 0
    %1500 = vmatpush1.bf16.msra.mxu0 0
    %1501 = vmatprep.subr.bf16.mxu0 0
    %1502 = vmatpush1.bf16.msra.mxu0 0
    %1503 = vmatprep.subr.bf16.mxu0 0
    %1504 = vmatpush1.bf16.msra.mxu0 0
    %1505 = vmatprep.subr.bf16.mxu0 0
    %1506 = vmatpush1.bf16.msra.mxu0 %v1489
    %1507 = vmatprep.subr.bf16.mxu0 0
    %1508 = vmatpush1.bf16.msra.mxu0 %v1488
    %1509 = vmatprep.subr.bf16.mxu0 0
    %1510 = vmatpush1.bf16.msra.mxu0 %v1487
    %1511 = vmatprep.subr.bf16.mxu0 0
    %1512 = vmatpush1.bf16.msra.mxu0 %v1486
    %1513 = vmatprep.subr.bf16.mxu0 0
    %1514 = vmatpush2.bf16.msra.mxu0 0
    %1515 = vmatprep.subr.bf16.mxu0 0
    %1516 = vmatpush2.bf16.msra.mxu0 0
    %1517 = vmatprep.subr.bf16.mxu0 0
    %1518 = vmatpush2.bf16.msra.mxu0 0
    %1519 = vmatprep.subr.bf16.mxu0 0
    %1520 = vmatpush2.bf16.msra.mxu0 0
    %1521 = vmatprep.subr.bf16.mxu0 0
    %1522 = vmatpush2.bf16.msra.mxu0 0
    %1523 = vmatprep.subr.bf16.mxu0 0
    %1524 = vmatpush2.bf16.msra.mxu0 0
    %1525 = vmatprep.subr.bf16.mxu0 0
    %1526 = vmatpush2.bf16.msra.mxu0 0
    %1527 = vmatprep.subr.bf16.mxu0 0
    %1528 = vmatpush2.bf16.msra.mxu0 0
    %1529 = vmatprep.mubr.bf16.mxu0 0
    %1530 = vmatmul.mubr.bf16.gmra.mxu0 %v1495
    %v1531 = vpop.f32.mrf.mxu0
    %v1532 = vadd.f32 %v1468, %v1531
    %v1533 = vpop.f32.mrf.mxu0
    %v1534 = vpop.f32.mrf.mxu0
    %v1535 = vadd.f32 %v1468, %v1534
    %v1536 = vpop.f32.mrf.mxu0
    %1537 = vdwg.mxu0
    %v1538 = vmul.f32 %v1532, 0.5
    %v1539 = vmul.f32 %v1535, 0.5
    %v1540 = vmul.f32 %v1532, 0.044715
    %v1541 = vmul.f32 %v1535, 0.044715
    %v1542 = vmul.f32 %v1540, %v1532
    %v1543 = vmul.f32 %v1541, %v1535
    %v1544 = vmul.f32 %v1542, %v1532
    %v1545 = vmul.f32 %v1543, %v1535
    %v1546 = vadd.f32 %v1532, %v1544
    %v1547 = vadd.f32 %v1535, %v1545
    %v1548 = vmul.f32 %v1546, 0.7978846
    %v1549 = vmul.f32 %v1547, 0.7978846
    %v1550 = vtanh.pop %v1548
    %v1551 = vtanh.pop %v1549
    %v1552 = vadd.f32 %v1550, 1.0
    %v1553 = vadd.f32 %v1551, 1.0
    %v1554 = vmul.f32 %v1538, %v1552
    %v1555 = vmul.f32 %v1539, %v1553
    %v1556 = vpack.c.bf16 %v1555, %v1554
    %v1558 = vlaneseq
    %v1559 = vshrl.u32 %v1558, 7
    %v1560 = vsub.s32 0, %v1559
    %v1561 = vrot.slane %v421, %v1560
    %v1579 = vunpack.c.l.b16 %v405
    %v1580 = vunpack.c.l.b16 %v406
    %v1581 = vunpack.c.l.b16 %v407
    %v1582 = vunpack.c.l.b16 %v408
    %v1583 = vunpack.c.l.b16 %v409
    %v1584 = vunpack.c.l.b16 %v410
    %v1585 = vunpack.c.l.b16 %v411
    %v1586 = vunpack.c.l.b16 %v412
    %v1587 = vunpack.c.l.b16 %v413
    %v1588 = vunpack.c.l.b16 %v414
    %v1589 = vunpack.c.l.b16 %v415
    %v1590 = vunpack.c.l.b16 %v416
    %v1591 = vunpack.c.l.b16 %v417
    %v1592 = vunpack.c.l.b16 %v418
    %v1593 = vunpack.c.l.b16 %v419
    %v1594 = vunpack.c.l.b16 %v420
    %v1595 = vpack.c.b16 %v1580, %v1579
    %v1596 = vpack.c.b16 %v1582, %v1581
    %v1597 = vpack.c.b16 %v1584, %v1583
    %v1598 = vpack.c.b16 %v1586, %v1585
    %v1599 = vpack.c.b16 %v1588, %v1587
    %v1600 = vpack.c.b16 %v1590, %v1589
    %v1601 = vpack.c.b16 %v1592, %v1591
    %v1602 = vpack.c.b16 %v1594, %v1593
    %1611 = vmatprep.subr.bf16.mxu0 0
    %1612 = vmatpush1.bf16.msra.mxu0 %v1602
    %1613 = vmatprep.subr.bf16.mxu0 0
    %1614 = vmatpush1.bf16.msra.mxu0 %v1601
    %1615 = vmatprep.subr.bf16.mxu0 0
    %1616 = vmatpush1.bf16.msra.mxu0 %v1600
    %1617 = vmatprep.subr.bf16.mxu0 0
    %1618 = vmatpush1.bf16.msra.mxu0 %v1599
    %1619 = vmatprep.subr.bf16.mxu0 0
    %1620 = vmatpush1.bf16.msra.mxu0 %v1598
    %1621 = vmatprep.subr.bf16.mxu0 0
    %1622 = vmatpush1.bf16.msra.mxu0 %v1597
    %1623 = vmatprep.subr.bf16.mxu0 0
    %1624 = vmatpush1.bf16.msra.mxu0 %v1596
    %1625 = vmatprep.subr.bf16.mxu0 0
    %1626 = vmatpush1.bf16.msra.mxu0 %v1595
    %1627 = vmatprep.subr.bf16.mxu0 0
    %1628 = vmatpush2.bf16.msra.mxu0 0
    %1629 = vmatprep.subr.bf16.mxu0 0
    %1630 = vmatpush2.bf16.msra.mxu0 0
    %1631 = vmatprep.subr.bf16.mxu0 0
    %1632 = vmatpush2.bf16.msra.mxu0 0
    %1633 = vmatprep.subr.bf16.mxu0 0
    %1634 = vmatpush2.bf16.msra.mxu0 0
    %1635 = vmatprep.subr.bf16.mxu0 0
    %1636 = vmatpush2.bf16.msra.mxu0 0
    %1637 = vmatprep.subr.bf16.mxu0 0
    %1638 = vmatpush2.bf16.msra.mxu0 0
    %1639 = vmatprep.subr.bf16.mxu0 0
    %1640 = vmatpush2.bf16.msra.mxu0 0
    %1641 = vmatprep.subr.bf16.mxu0 0
    %1642 = vmatpush2.bf16.msra.mxu0 0
    %1643 = vmatprep.mubr.bf16.mxu0 0
    %1644 = vmatmul.mubr.bf16.gmra.mxu0 %v1556
    %v1645 = vpop.f32.mrf.mxu0
    %v1646 = vadd.f32 %v1561, %v1645
    %v1647 = vpop.f32.mrf.mxu0
    %v1648 = vpop.f32.mrf.mxu0
    %v1649 = vadd.f32 %v1561, %v1648
    %v1650 = vpop.f32.mrf.mxu0
    %1651 = vdwg.mxu0
    %v1652 = vadd.f32 %v1461, %v1646
    %v1653 = vadd.f32 %v1462, %v1649
    %v1654 = vsel %vm335, %v1652, 0.0
    %1655 = vadd.xlane.f32.xlu0 %v1654
    %v1656 = vpop.xlane.xlu0 %1655
    %v1657 = vsel %vm335, %v1653, 0.0
    %1658 = vadd.xlane.f32.xlu0 %v1657
    %v1659 = vpop.xlane.xlu0 %1658
    %v1660 = vmul.f32 %v1656, %v342
    %v1661 = vmul.f32 %v1659, %v342
    %v1662 = vsub.f32 %v1652, %v1660
    %v1663 = vsub.f32 %v1653, %v1661
    %v1664 = vmul.f32 %v1662, %v1662
    %v1665 = vmul.f32 %v1663, %v1663
    %v1666 = vsel %vm335, %v1664, 0.0
    %1667 = vadd.xlane.f32.xlu0 %v1666
    %v1668 = vpop.xlane.xlu0 %1667
    %v1669 = vsel %vm335, %v1665, 0.0
    %1670 = vadd.xlane.f32.xlu0 %v1669
    %v1671 = vpop.xlane.xlu0 %1670
    %v1672 = vmul.f32 %v1668, %v342
    %v1673 = vmul.f32 %v1671, %v342
    %v1674 = vadd.f32 %v1672, 1e-05
    %v1675 = vadd.f32 %v1673, 1e-05
    %v1676 = vrsqrt.pop %v1674
    %v1677 = vrsqrt.pop %v1675
    %v1678 = vmul.f32 %v1662, %v1676
    %v1679 = vmul.f32 %v1663, %v1677
    %v1680 = vlaneseq
    %v1681 = vshrl.u32 %v1680, 7
    %v1682 = vsub.s32 0, %v1681
    %v1683 = vrot.slane %v422, %v1682
    %v1684 = vmul.f32 %v1678, %v1683
    %v1685 = vmul.f32 %v1679, %v1683
    %v1686 = vlaneseq
    %v1687 = vshrl.u32 %v1686, 7
    %v1688 = vsub.s32 1, %v1687
    %v1689 = vrot.slane %v422, %v1688
    %v1690 = vadd.f32 %v1684, %v1689
    %v1691 = vadd.f32 %v1685, %v1689
    %s1692 = scalar_lea.vmem %s5, 64
    %v1693 = vld [vmem:[%s1692] sm:$0xff]
    %v1694 = vld [vmem:[%s1692 + $0x8] sm:$0xff]
    %v1695 = vld [vmem:[%s1692 + $0x10] sm:$0xff]
    %v1696 = vld [vmem:[%s1692 + $0x18] sm:$0xff]
    %v1697 = vld [vmem:[%s1692 + $0x20] sm:$0xff]
    %v1698 = vld [vmem:[%s1692 + $0x28] sm:$0xff]
    %v1699 = vld [vmem:[%s1692 + $0x30] sm:$0xff]
    %v1700 = vld [vmem:[%s1692 + $0x38] sm:$0xff]
    %s1701 = scalar_lea.vmem [#allocation7], 2
    %v1702 = vld [vmem:[%s1701] sm:$0x3]
    %s1703 = scalar_lea.vmem %s7, 32
    %v1704 = vld [vmem:[%s1703] sm:$0xf]
    %v1705 = vld [vmem:[%s1703 + $0x4] sm:$0xf]
    %v1706 = vld [vmem:[%s1703 + $0x8] sm:$0xf]
    %v1707 = vld [vmem:[%s1703 + $0xc] sm:$0xf]
    %v1708 = vld [vmem:[%s1703 + $0x10] sm:$0xf]
    %v1709 = vld [vmem:[%s1703 + $0x14] sm:$0xf]
    %v1710 = vld [vmem:[%s1703 + $0x18] sm:$0xf]
    %v1711 = vld [vmem:[%s1703 + $0x1c] sm:$0xf]
    %s1712 = scalar_lea.vmem [#allocation9], 1
    %v1713 = vld [vmem:[%s1712] sm:$0x1]
    %s1714 = scalar_lea.vmem %s9, 2
    %v1715 = vld [vmem:[%s1714] sm:$0x3]
    %s1716 = scalar_lea.vmem %s10, 32
    %v1717 = vld [vmem:[%s1716] sm:$0xf]
    %v1718 = vld [vmem:[%s1716 + $0x4] sm:$0xf]
    %v1719 = vld [vmem:[%s1716 + $0x8] sm:$0xf]
    %v1720 = vld [vmem:[%s1716 + $0xc] sm:$0xf]
    %v1721 = vld [vmem:[%s1716 + $0x10] sm:$0xf]
    %v1722 = vld [vmem:[%s1716 + $0x14] sm:$0xf]
    %v1723 = vld [vmem:[%s1716 + $0x18] sm:$0xf]
    %v1724 = vld [vmem:[%s1716 + $0x1c] sm:$0xf]
    %s1725 = scalar_lea.vmem [#allocation10], 1
    %v1726 = vld [vmem:[%s1725] sm:$0x1]
    %s1727 = scalar_lea.vmem %s12, 64
    %v1728 = vld [vmem:[%s1727] sm:$0xf]
    %v1729 = vld [vmem:[%s1727 + $0x4] sm:$0xf]
    %v1730 = vld [vmem:[%s1727 + $0x8] sm:$0xf]
    %v1731 = vld [vmem:[%s1727 + $0xc] sm:$0xf]
    %v1732 = vld [vmem:[%s1727 + $0x10] sm:$0xf]
    %v1733 = vld [vmem:[%s1727 + $0x14] sm:$0xf]
    %v1734 = vld [vmem:[%s1727 + $0x18] sm:$0xf]
    %v1735 = vld [vmem:[%s1727 + $0x1c] sm:$0xf]
    %v1736 = vld [vmem:[%s1727 + $0x20] sm:$0xf]
    %v1737 = vld [vmem:[%s1727 + $0x24] sm:$0xf]
    %v1738 = vld [vmem:[%s1727 + $0x28] sm:$0xf]
    %v1739 = vld [vmem:[%s1727 + $0x2c] sm:$0xf]
    %v1740 = vld [vmem:[%s1727 + $0x30] sm:$0xf]
    %v1741 = vld [vmem:[%s1727 + $0x34] sm:$0xf]
    %v1742 = vld [vmem:[%s1727 + $0x38] sm:$0xf]
    %v1743 = vld [vmem:[%s1727 + $0x3c] sm:$0xf]
    %s1744 = scalar_lea.vmem [#allocation12], 1
    %v1745 = vld [vmem:[%s1744] sm:$0x1]
    %s1746 = scalar_lea.vmem [#allocation13], 2
    %v1747 = vld [vmem:[%s1746] sm:$0x3]
    %v1748 = vpack.c.bf16 %v1691, %v1690
    %v1750 = vlaneseq
    %v1751 = vshrl.u32 %v1750, 7
    %v1752 = vsub.s32 0, %v1751
    %v1753 = vrot.slane %v1702, %v1752
    %v1754 = vlaneseq
    %v1755 = vshrl.u32 %v1754, 7
    %v1756 = vsub.s32 1, %v1755
    %v1757 = vrot.slane %v1702, %v1756
    %v1768 = vunpack.c.l.b16 %v1693
    %v1769 = vunpack.c.h.b16 %v1693
    %v1770 = vunpack.c.l.b16 %v1694
    %v1771 = vunpack.c.h.b16 %v1694
    %v1772 = vunpack.c.l.b16 %v1695
    %v1773 = vunpack.c.h.b16 %v1695
    %v1774 = vunpack.c.l.b16 %v1696
    %v1775 = vunpack.c.h.b16 %v1696
    %v1776 = vunpack.c.l.b16 %v1697
    %v1777 = vunpack.c.h.b16 %v1697
    %v1778 = vunpack.c.l.b16 %v1698
    %v1779 = vunpack.c.h.b16 %v1698
    %v1780 = vunpack.c.l.b16 %v1699
    %v1781 = vunpack.c.h.b16 %v1699
    %v1782 = vunpack.c.l.b16 %v1700
    %v1783 = vunpack.c.h.b16 %v1700
    %v1784 = vpack.c.b16 %v1770, %v1768
    %v1785 = vpack.c.b16 %v1771, %v1769
    %v1786 = vpack.c.b16 %v1774, %v1772
    %v1787 = vpack.c.b16 %v1775, %v1773
    %v1788 = vpack.c.b16 %v1778, %v1776
    %v1789 = vpack.c.b16 %v1779, %v1777
    %v1790 = vpack.c.b16 %v1782, %v1780
    %v1791 = vpack.c.b16 %v1783, %v1781
    %v1801 = vsel %vm335, %v1748, 0
    %1803 = vmatprep.subr.bf16.mxu0 0
    %1804 = vmatpush1.bf16.msra.mxu0 0
    %1805 = vmatprep.subr.bf16.mxu0 0
    %1806 = vmatpush1.bf16.msra.mxu0 0
    %1807 = vmatprep.subr.bf16.mxu0 0
    %1808 = vmatpush1.bf16.msra.mxu0 0
    %1809 = vmatprep.subr.bf16.mxu0 0
    %1810 = vmatpush1.bf16.msra.mxu0 0
    %1811 = vmatprep.subr.bf16.mxu0 %v1791
    %1812 = vmatpush1.bf16.msra.mxu0 %v1790
    %1813 = vmatprep.subr.bf16.mxu0 %v1789
    %1814 = vmatpush1.bf16.msra.mxu0 %v1788
    %1815 = vmatprep.subr.bf16.mxu0 %v1787
    %1816 = vmatpush1.bf16.msra.mxu0 %v1786
    %1817 = vmatprep.subr.bf16.mxu0 %v1785
    %1818 = vmatpush1.bf16.msra.mxu0 %v1784
    %1819 = vmatprep.subr.bf16.mxu0 0
    %1820 = vmatpush2.bf16.msra.mxu0 0
    %1821 = vmatprep.subr.bf16.mxu0 0
    %1822 = vmatpush2.bf16.msra.mxu0 0
    %1823 = vmatprep.subr.bf16.mxu0 0
    %1824 = vmatpush2.bf16.msra.mxu0 0
    %1825 = vmatprep.subr.bf16.mxu0 0
    %1826 = vmatpush2.bf16.msra.mxu0 0
    %1827 = vmatprep.subr.bf16.mxu0 0
    %1828 = vmatpush2.bf16.msra.mxu0 0
    %1829 = vmatprep.subr.bf16.mxu0 0
    %1830 = vmatpush2.bf16.msra.mxu0 0
    %1831 = vmatprep.subr.bf16.mxu0 0
    %1832 = vmatpush2.bf16.msra.mxu0 0
    %1833 = vmatprep.subr.bf16.mxu0 0
    %1834 = vmatpush2.bf16.msra.mxu0 0
    %1835 = vmatprep.mubr.bf16.mxu0 0
    %1836 = vmatmul.mubr.bf16.gmra.mxu0 %v1801
    %v1837 = vpop.f32.mrf.mxu0
    %v1838 = vadd.f32 %v1753, %v1837
    %v1839 = vpop.f32.mrf.mxu0
    %v1840 = vadd.f32 %v1757, %v1839
    %v1841 = vpop.f32.mrf.mxu0
    %v1842 = vadd.f32 %v1753, %v1841
    %v1843 = vpop.f32.mrf.mxu0
    %v1844 = vadd.f32 %v1757, %v1843
    %1845 = vdwg.mxu0
    %1848 = vrot.lane.b32.xlu0 %v1838, 64
    %v1849 = vpop.permute.xlu0 %1848
    %1850 = vrot.lane.b32.xlu0 %v1842, 64
    %v1851 = vpop.permute.xlu0 %1850
    %v1852 = vsel %vm527, %v1838, 0
    %v1854 = vsel %vm527, %v1842, 0
    %v1856 = vsel %vm527, %v1849, 0
    %v1858 = vsel %vm527, %v1851, 0
    %1860 = vmatprep.subr.mxu0 0.0
    %1861 = vmatpush1.xpose.msra.mxu0 0.0
    %1862 = vmatprep.subr.mxu0 0.0
    %1863 = vmatpush1.xpose.msra.mxu0 0.0
    %1864 = vmatprep.subr.mxu0 0.0
    %1865 = vmatpush1.xpose.msra.mxu0 0.0
    %1866 = vmatprep.subr.mxu0 0.0
    %1867 = vmatpush1.xpose.msra.mxu0 0.0
    %1868 = vmatprep.subr.mxu0 0.0
    %1869 = vmatpush1.xpose.msra.mxu0 0.0
    %1870 = vmatprep.subr.mxu0 0.0
    %1871 = vmatpush1.xpose.msra.mxu0 0.0
    %1872 = vmatprep.subr.mxu0 0.0
    %1873 = vmatpush1.xpose.msra.mxu0 0.0
    %1874 = vmatprep.subr.mxu0 0.0
    %1875 = vmatpush1.xpose.msra.mxu0 0.0
    %1876 = vmatprep.subr.mxu0 0.0
    %1877 = vmatpush1.xpose.msra.mxu0 0.0
    %1878 = vmatprep.subr.mxu0 0.0
    %1879 = vmatpush1.xpose.msra.mxu0 0.0
    %1880 = vmatprep.subr.mxu0 0.0
    %1881 = vmatpush1.xpose.msra.mxu0 0.0
    %1882 = vmatprep.subr.mxu0 0.0
    %1883 = vmatpush1.xpose.msra.mxu0 0.0
    %1884 = vmatprep.subr.mxu0 0.0
    %1885 = vmatpush1.xpose.msra.mxu0 0.0
    %1886 = vmatprep.subr.mxu0 0.0
    %1887 = vmatpush1.xpose.msra.mxu0 0.0
    %1888 = vmatprep.subr.mxu0 0.0
    %1889 = vmatpush1.xpose.msra.mxu0 %v1858
    %1890 = vmatprep.subr.mxu0 0.0
    %1891 = vmatpush1.xpose.msra.mxu0 %v1856
    %1892 = vmatprep.subr.mxu0 0.0
    %1893 = vmatpush2.xpose.msra.mxu0 0.0
    %1894 = vmatprep.subr.mxu0 0.0
    %1895 = vmatpush2.xpose.msra.mxu0 0.0
    %1896 = vmatprep.subr.mxu0 0.0
    %1897 = vmatpush2.xpose.msra.mxu0 0.0
    %1898 = vmatprep.subr.mxu0 0.0
    %1899 = vmatpush2.xpose.msra.mxu0 0.0
    %1900 = vmatprep.subr.mxu0 0.0
    %1901 = vmatpush2.xpose.msra.mxu0 0.0
    %1902 = vmatprep.subr.mxu0 0.0
    %1903 = vmatpush2.xpose.msra.mxu0 0.0
    %1904 = vmatprep.subr.mxu0 0.0
    %1905 = vmatpush2.xpose.msra.mxu0 0.0
    %1906 = vmatprep.subr.mxu0 0.0
    %1907 = vmatpush2.xpose.msra.mxu0 0.0
    %1908 = vmatprep.subr.mxu0 0.0
    %1909 = vmatpush2.xpose.msra.mxu0 0.0
    %1910 = vmatprep.subr.mxu0 0.0
    %1911 = vmatpush2.xpose.msra.mxu0 0.0
    %1912 = vmatprep.subr.mxu0 0.0
    %1913 = vmatpush2.xpose.msra.mxu0 0.0
    %1914 = vmatprep.subr.mxu0 0.0
    %1915 = vmatpush2.xpose.msra.mxu0 0.0
    %1916 = vmatprep.subr.mxu0 0.0
    %1917 = vmatpush2.xpose.msra.mxu0 0.0
    %1918 = vmatprep.subr.mxu0 0.0
    %1919 = vmatpush2.xpose.msra.mxu0 0.0
    %1920 = vmatprep.subr.mxu0 0.0
    %1921 = vmatpush2.xpose.msra.mxu0 0.0
    %1922 = vmatprep.subr.mxu0 0.0
    %1923 = vmatpush2.xpose.msra.mxu0 0.0
    %1924 = vmatprep.mubr.f32.mxu0 0.0
    %1925 = vmatmul.mubr.f32.gmra.mxu0 %v1852
    %v1926 = vpop.f32.mrf.mxu0
    %v1927 = vadd.f32 %v375, %v1926
    %v1928 = vpop.f32.mrf.mxu0
    %1929 = vmatprep.mubr.f32.mxu0 0.0
    %1930 = vmatmul.mubr.f32.gmra.mxu0 %v1854
    %v1931 = vpop.f32.mrf.mxu0
    %v1932 = vadd.f32 %v376, %v1931
    %v1933 = vpop.f32.mrf.mxu0
    %1934 = vdwg.mxu0
    %v1935 = vsel %vm527, %v1927, -inf
    %1936 = vmax.xlane.f32.xlu0 %v1935
    %v1937 = vpop.xlane.xlu0 %1936
    %v1938 = vsel %vm527, %v1932, -inf
    %1939 = vmax.xlane.f32.xlu0 %v1938
    %v1940 = vpop.xlane.xlu0 %1939
    %v1941 = vsub.f32 %v1927, %v1937
    %v1942 = vsub.f32 %v1932, %v1940
    %v1943 = vmul.f32 %v1941, 1.442695
    %v1944 = vpow.pop %v1943
    %v1945 = vmul.f32 %v1942, 1.442695
    %v1946 = vpow.pop %v1945
    %v1947 = vsel %vm527, %v1944, 0.0
    %1948 = vadd.xlane.f32.xlu0 %v1947
    %v1949 = vpop.xlane.xlu0 %1948
    %v1950 = vsel %vm527, %v1946, 0.0
    %1951 = vadd.xlane.f32.xlu0 %v1950
    %v1952 = vpop.xlane.xlu0 %1951
    %v1953 = vrcp.pop %v1949
    %v1954 = vrcp.pop %v1952
    %v1955 = vmul.f32 %v1944, %v1953
    %v1956 = vmul.f32 %v1946, %v1954
    %v1958 = vsel %vm527, %v1955, 0
    %v1961 = vsel %vm527, %v1956, 0
    %1963 = vmatprep.subr.mxu0 0.0
    %1964 = vmatpush1.msra.mxu0 0.0
    %1965 = vmatprep.subr.mxu0 0.0
    %1966 = vmatpush1.msra.mxu0 0.0
    %1967 = vmatprep.subr.mxu0 0.0
    %1968 = vmatpush1.msra.mxu0 0.0
    %1969 = vmatprep.subr.mxu0 0.0
    %1970 = vmatpush1.msra.mxu0 0.0
    %1971 = vmatprep.subr.mxu0 0.0
    %1972 = vmatpush1.msra.mxu0 0.0
    %1973 = vmatprep.subr.mxu0 0.0
    %1974 = vmatpush1.msra.mxu0 0.0
    %1975 = vmatprep.subr.mxu0 0.0
    %1976 = vmatpush1.msra.mxu0 0.0
    %1977 = vmatprep.subr.mxu0 0.0
    %1978 = vmatpush1.msra.mxu0 0.0
    %1979 = vmatprep.subr.mxu0 0.0
    %1980 = vmatpush1.msra.mxu0 0.0
    %1981 = vmatprep.subr.mxu0 0.0
    %1982 = vmatpush1.msra.mxu0 0.0
    %1983 = vmatprep.subr.mxu0 0.0
    %1984 = vmatpush1.msra.mxu0 0.0
    %1985 = vmatprep.subr.mxu0 0.0
    %1986 = vmatpush1.msra.mxu0 0.0
    %1987 = vmatprep.subr.mxu0 0.0
    %1988 = vmatpush1.msra.mxu0 0.0
    %1989 = vmatprep.subr.mxu0 0.0
    %1990 = vmatpush1.msra.mxu0 0.0
    %1991 = vmatprep.subr.mxu0 0.0
    %1992 = vmatpush1.msra.mxu0 %v1844
    %1993 = vmatprep.subr.mxu0 0.0
    %1994 = vmatpush1.msra.mxu0 %v1840
    %1995 = vmatprep.subr.mxu0 0.0
    %1996 = vmatpush2.msra.mxu0 0.0
    %1997 = vmatprep.subr.mxu0 0.0
    %1998 = vmatpush2.msra.mxu0 0.0
    %1999 = vmatprep.subr.mxu0 0.0
    %2000 = vmatpush2.msra.mxu0 0.0
    %2001 = vmatprep.subr.mxu0 0.0
    %2002 = vmatpush2.msra.mxu0 0.0
    %2003 = vmatprep.subr.mxu0 0.0
    %2004 = vmatpush2.msra.mxu0 0.0
    %2005 = vmatprep.subr.mxu0 0.0
    %2006 = vmatpush2.msra.mxu0 0.0
    %2007 = vmatprep.subr.mxu0 0.0
    %2008 = vmatpush2.msra.mxu0 0.0
    %2009 = vmatprep.subr.mxu0 0.0
    %2010 = vmatpush2.msra.mxu0 0.0
    %2011 = vmatprep.subr.mxu0 0.0
    %2012 = vmatpush2.msra.mxu0 0.0
    %2013 = vmatprep.subr.mxu0 0.0
    %2014 = vmatpush2.msra.mxu0 0.0
    %2015 = vmatprep.subr.mxu0 0.0
    %2016 = vmatpush2.msra.mxu0 0.0
    %2017 = vmatprep.subr.mxu0 0.0
    %2018 = vmatpush2.msra.mxu0 0.0
    %2019 = vmatprep.subr.mxu0 0.0
    %2020 = vmatpush2.msra.mxu0 0.0
    %2021 = vmatprep.subr.mxu0 0.0
    %2022 = vmatpush2.msra.mxu0 0.0
    %2023 = vmatprep.subr.mxu0 0.0
    %2024 = vmatpush2.msra.mxu0 0.0
    %2025 = vmatprep.subr.mxu0 0.0
    %2026 = vmatpush2.msra.mxu0 0.0
    %2027 = vmatprep.mubr.f32.mxu0 0.0
    %2028 = vmatmul.mubr.f32.gmra.mxu0 %v1958
    %v2029 = vpop.f32.mrf.mxu0
    %v2030 = vadd.f32 0.0, %v2029
    %v2031 = vpop.f32.mrf.mxu0
    %2032 = vmatprep.mubr.f32.mxu0 0.0
    %2033 = vmatmul.mubr.f32.gmra.mxu0 %v1961
    %v2034 = vpop.f32.mrf.mxu0
    %v2035 = vadd.f32 0.0, %v2034
    %v2036 = vpop.f32.mrf.mxu0
    %2037 = vdwg.mxu0
    %2038 = vrot.lane.b32.xlu0 %v1838, 112
    %v2039 = vpop.permute.xlu0 %2038
    %2040 = vrot.lane.b32.xlu0 %v1842, 112
    %v2041 = vpop.permute.xlu0 %2040
    %2042 = vrot.lane.b32.xlu0 %v1838, 48
    %v2043 = vpop.permute.xlu0 %2042
    %2044 = vrot.lane.b32.xlu0 %v1842, 48
    %v2045 = vpop.permute.xlu0 %2044
    %v2046 = vsel %vm527, %v2039, 0
    %v2048 = vsel %vm527, %v2041, 0
    %v2050 = vsel %vm527, %v2043, 0
    %v2052 = vsel %vm527, %v2045, 0
    %2054 = vmatprep.subr.mxu0 0.0
    %2055 = vmatpush1.xpose.msra.mxu0 0.0
    %2056 = vmatprep.subr.mxu0 0.0
    %2057 = vmatpush1.xpose.msra.mxu0 0.0
    %2058 = vmatprep.subr.mxu0 0.0
    %2059 = vmatpush1.xpose.msra.mxu0 0.0
    %2060 = vmatprep.subr.mxu0 0.0
    %2061 = vmatpush1.xpose.msra.mxu0 0.0
    %2062 = vmatprep.subr.mxu0 0.0
    %2063 = vmatpush1.xpose.msra.mxu0 0.0
    %2064 = vmatprep.subr.mxu0 0.0
    %2065 = vmatpush1.xpose.msra.mxu0 0.0
    %2066 = vmatprep.subr.mxu0 0.0
    %2067 = vmatpush1.xpose.msra.mxu0 0.0
    %2068 = vmatprep.subr.mxu0 0.0
    %2069 = vmatpush1.xpose.msra.mxu0 0.0
    %2070 = vmatprep.subr.mxu0 0.0
    %2071 = vmatpush1.xpose.msra.mxu0 0.0
    %2072 = vmatprep.subr.mxu0 0.0
    %2073 = vmatpush1.xpose.msra.mxu0 0.0
    %2074 = vmatprep.subr.mxu0 0.0
    %2075 = vmatpush1.xpose.msra.mxu0 0.0
    %2076 = vmatprep.subr.mxu0 0.0
    %2077 = vmatpush1.xpose.msra.mxu0 0.0
    %2078 = vmatprep.subr.mxu0 0.0
    %2079 = vmatpush1.xpose.msra.mxu0 0.0
    %2080 = vmatprep.subr.mxu0 0.0
    %2081 = vmatpush1.xpose.msra.mxu0 0.0
    %2082 = vmatprep.subr.mxu0 0.0
    %2083 = vmatpush1.xpose.msra.mxu0 %v2052
    %2084 = vmatprep.subr.mxu0 0.0
    %2085 = vmatpush1.xpose.msra.mxu0 %v2050
    %2086 = vmatprep.subr.mxu0 0.0
    %2087 = vmatpush2.xpose.msra.mxu0 0.0
    %2088 = vmatprep.subr.mxu0 0.0
    %2089 = vmatpush2.xpose.msra.mxu0 0.0
    %2090 = vmatprep.subr.mxu0 0.0
    %2091 = vmatpush2.xpose.msra.mxu0 0.0
    %2092 = vmatprep.subr.mxu0 0.0
    %2093 = vmatpush2.xpose.msra.mxu0 0.0
    %2094 = vmatprep.subr.mxu0 0.0
    %2095 = vmatpush2.xpose.msra.mxu0 0.0
    %2096 = vmatprep.subr.mxu0 0.0
    %2097 = vmatpush2.xpose.msra.mxu0 0.0
    %2098 = vmatprep.subr.mxu0 0.0
    %2099 = vmatpush2.xpose.msra.mxu0 0.0
    %2100 = vmatprep.subr.mxu0 0.0
    %2101 = vmatpush2.xpose.msra.mxu0 0.0
    %2102 = vmatprep.subr.mxu0 0.0
    %2103 = vmatpush2.xpose.msra.mxu0 0.0
    %2104 = vmatprep.subr.mxu0 0.0
    %2105 = vmatpush2.xpose.msra.mxu0 0.0
    %2106 = vmatprep.subr.mxu0 0.0
    %2107 = vmatpush2.xpose.msra.mxu0 0.0
    %2108 = vmatprep.subr.mxu0 0.0
    %2109 = vmatpush2.xpose.msra.mxu0 0.0
    %2110 = vmatprep.subr.mxu0 0.0
    %2111 = vmatpush2.xpose.msra.mxu0 0.0
    %2112 = vmatprep.subr.mxu0 0.0
    %2113 = vmatpush2.xpose.msra.mxu0 0.0
    %2114 = vmatprep.subr.mxu0 0.0
    %2115 = vmatpush2.xpose.msra.mxu0 0.0
    %2116 = vmatprep.subr.mxu0 0.0
    %2117 = vmatpush2.xpose.msra.mxu0 0.0
    %2118 = vmatprep.mubr.f32.mxu0 0.0
    %2119 = vmatmul.mubr.f32.gmra.mxu0 %v2046
    %v2120 = vpop.f32.mrf.mxu0
    %v2121 = vadd.f32 %v375, %v2120
    %v2122 = vpop.f32.mrf.mxu0
    %2123 = vmatprep.mubr.f32.mxu0 0.0
    %2124 = vmatmul.mubr.f32.gmra.mxu0 %v2048
    %v2125 = vpop.f32.mrf.mxu0
    %v2126 = vadd.f32 %v376, %v2125
    %v2127 = vpop.f32.mrf.mxu0
    %2128 = vdwg.mxu0
    %v2129 = vsel %vm527, %v2121, -inf
    %2130 = vmax.xlane.f32.xlu0 %v2129
    %v2131 = vpop.xlane.xlu0 %2130
    %v2132 = vsel %vm527, %v2126, -inf
    %2133 = vmax.xlane.f32.xlu0 %v2132
    %v2134 = vpop.xlane.xlu0 %2133
    %v2135 = vsub.f32 %v2121, %v2131
    %v2136 = vsub.f32 %v2126, %v2134
    %v2137 = vmul.f32 %v2135, 1.442695
    %v2138 = vpow.pop %v2137
    %v2139 = vmul.f32 %v2136, 1.442695
    %v2140 = vpow.pop %v2139
    %v2141 = vsel %vm527, %v2138, 0.0
    %2142 = vadd.xlane.f32.xlu0 %v2141
    %v2143 = vpop.xlane.xlu0 %2142
    %v2144 = vsel %vm527, %v2140, 0.0
    %2145 = vadd.xlane.f32.xlu0 %v2144
    %v2146 = vpop.xlane.xlu0 %2145
    %v2147 = vrcp.pop %v2143
    %v2148 = vrcp.pop %v2146
    %v2149 = vmul.f32 %v2138, %v2147
    %v2150 = vmul.f32 %v2140, %v2148
    %2153 = vrot.lane.b32.xlu0 %v1840, 112
    %v2154 = vpop.permute.xlu0 %2153
    %2155 = vrot.lane.b32.xlu0 %v1844, 112
    %v2156 = vpop.permute.xlu0 %2155
    %v2160 = vsel %vm527, %v2149, 0
    %v2163 = vsel %vm527, %v2150, 0
    %2165 = vmatprep.subr.mxu0 0.0
    %2166 = vmatpush1.msra.mxu0 0.0
    %2167 = vmatprep.subr.mxu0 0.0
    %2168 = vmatpush1.msra.mxu0 0.0
    %2169 = vmatprep.subr.mxu0 0.0
    %2170 = vmatpush1.msra.mxu0 0.0
    %2171 = vmatprep.subr.mxu0 0.0
    %2172 = vmatpush1.msra.mxu0 0.0
    %2173 = vmatprep.subr.mxu0 0.0
    %2174 = vmatpush1.msra.mxu0 0.0
    %2175 = vmatprep.subr.mxu0 0.0
    %2176 = vmatpush1.msra.mxu0 0.0
    %2177 = vmatprep.subr.mxu0 0.0
    %2178 = vmatpush1.msra.mxu0 0.0
    %2179 = vmatprep.subr.mxu0 0.0
    %2180 = vmatpush1.msra.mxu0 0.0
    %2181 = vmatprep.subr.mxu0 0.0
    %2182 = vmatpush1.msra.mxu0 0.0
    %2183 = vmatprep.subr.mxu0 0.0
    %2184 = vmatpush1.msra.mxu0 0.0
    %2185 = vmatprep.subr.mxu0 0.0
    %2186 = vmatpush1.msra.mxu0 0.0
    %2187 = vmatprep.subr.mxu0 0.0
    %2188 = vmatpush1.msra.mxu0 0.0
    %2189 = vmatprep.subr.mxu0 0.0
    %2190 = vmatpush1.msra.mxu0 0.0
    %2191 = vmatprep.subr.mxu0 0.0
    %2192 = vmatpush1.msra.mxu0 0.0
    %2193 = vmatprep.subr.mxu0 0.0
    %2194 = vmatpush1.msra.mxu0 %v2156
    %2195 = vmatprep.subr.mxu0 0.0
    %2196 = vmatpush1.msra.mxu0 %v2154
    %2197 = vmatprep.subr.mxu0 0.0
    %2198 = vmatpush2.msra.mxu0 0.0
    %2199 = vmatprep.subr.mxu0 0.0
    %2200 = vmatpush2.msra.mxu0 0.0
    %2201 = vmatprep.subr.mxu0 0.0
    %2202 = vmatpush2.msra.mxu0 0.0
    %2203 = vmatprep.subr.mxu0 0.0
    %2204 = vmatpush2.msra.mxu0 0.0
    %2205 = vmatprep.subr.mxu0 0.0
    %2206 = vmatpush2.msra.mxu0 0.0
    %2207 = vmatprep.subr.mxu0 0.0
    %2208 = vmatpush2.msra.mxu0 0.0
    %2209 = vmatprep.subr.mxu0 0.0
    %2210 = vmatpush2.msra.mxu0 0.0
    %2211 = vmatprep.subr.mxu0 0.0
    %2212 = vmatpush2.msra.mxu0 0.0
    %2213 = vmatprep.subr.mxu0 0.0
    %2214 = vmatpush2.msra.mxu0 0.0
    %2215 = vmatprep.subr.mxu0 0.0
    %2216 = vmatpush2.msra.mxu0 0.0
    %2217 = vmatprep.subr.mxu0 0.0
    %2218 = vmatpush2.msra.mxu0 0.0
    %2219 = vmatprep.subr.mxu0 0.0
    %2220 = vmatpush2.msra.mxu0 0.0
    %2221 = vmatprep.subr.mxu0 0.0
    %2222 = vmatpush2.msra.mxu0 0.0
    %2223 = vmatprep.subr.mxu0 0.0
    %2224 = vmatpush2.msra.mxu0 0.0
    %2225 = vmatprep.subr.mxu0 0.0
    %2226 = vmatpush2.msra.mxu0 0.0
    %2227 = vmatprep.subr.mxu0 0.0
    %2228 = vmatpush2.msra.mxu0 0.0
    %2229 = vmatprep.mubr.f32.mxu0 0.0
    %2230 = vmatmul.mubr.f32.gmra.mxu0 %v2160
    %v2231 = vpop.f32.mrf.mxu0
    %v2232 = vadd.f32 0.0, %v2231
    %v2233 = vpop.f32.mrf.mxu0
    %2234 = vmatprep.mubr.f32.mxu0 0.0
    %2235 = vmatmul.mubr.f32.gmra.mxu0 %v2163
    %v2236 = vpop.f32.mrf.mxu0
    %v2237 = vadd.f32 0.0, %v2236
    %v2238 = vpop.f32.mrf.mxu0
    %2239 = vdwg.mxu0
    %2240 = vrot.lane.b32.xlu0 %v1838, 96
    %v2241 = vpop.permute.xlu0 %2240
    %2242 = vrot.lane.b32.xlu0 %v1842, 96
    %v2243 = vpop.permute.xlu0 %2242
    %2244 = vrot.lane.b32.xlu0 %v1838, 32
    %v2245 = vpop.permute.xlu0 %2244
    %2246 = vrot.lane.b32.xlu0 %v1842, 32
    %v2247 = vpop.permute.xlu0 %2246
    %v2248 = vsel %vm527, %v2241, 0
    %v2250 = vsel %vm527, %v2243, 0
    %v2252 = vsel %vm527, %v2245, 0
    %v2254 = vsel %vm527, %v2247, 0
    %2256 = vmatprep.subr.mxu0 0.0
    %2257 = vmatpush1.xpose.msra.mxu0 0.0
    %2258 = vmatprep.subr.mxu0 0.0
    %2259 = vmatpush1.xpose.msra.mxu0 0.0
    %2260 = vmatprep.subr.mxu0 0.0
    %2261 = vmatpush1.xpose.msra.mxu0 0.0
    %2262 = vmatprep.subr.mxu0 0.0
    %2263 = vmatpush1.xpose.msra.mxu0 0.0
    %2264 = vmatprep.subr.mxu0 0.0
    %2265 = vmatpush1.xpose.msra.mxu0 0.0
    %2266 = vmatprep.subr.mxu0 0.0
    %2267 = vmatpush1.xpose.msra.mxu0 0.0
    %2268 = vmatprep.subr.mxu0 0.0
    %2269 = vmatpush1.xpose.msra.mxu0 0.0
    %2270 = vmatprep.subr.mxu0 0.0
    %2271 = vmatpush1.xpose.msra.mxu0 0.0
    %2272 = vmatprep.subr.mxu0 0.0
    %2273 = vmatpush1.xpose.msra.mxu0 0.0
    %2274 = vmatprep.subr.mxu0 0.0
    %2275 = vmatpush1.xpose.msra.mxu0 0.0
    %2276 = vmatprep.subr.mxu0 0.0
    %2277 = vmatpush1.xpose.msra.mxu0 0.0
    %2278 = vmatprep.subr.mxu0 0.0
    %2279 = vmatpush1.xpose.msra.mxu0 0.0
    %2280 = vmatprep.subr.mxu0 0.0
    %2281 = vmatpush1.xpose.msra.mxu0 0.0
    %2282 = vmatprep.subr.mxu0 0.0
    %2283 = vmatpush1.xpose.msra.mxu0 0.0
    %2284 = vmatprep.subr.mxu0 0.0
    %2285 = vmatpush1.xpose.msra.mxu0 %v2254
    %2286 = vmatprep.subr.mxu0 0.0
    %2287 = vmatpush1.xpose.msra.mxu0 %v2252
    %2288 = vmatprep.subr.mxu0 0.0
    %2289 = vmatpush2.xpose.msra.mxu0 0.0
    %2290 = vmatprep.subr.mxu0 0.0
    %2291 = vmatpush2.xpose.msra.mxu0 0.0
    %2292 = vmatprep.subr.mxu0 0.0
    %2293 = vmatpush2.xpose.msra.mxu0 0.0
    %2294 = vmatprep.subr.mxu0 0.0
    %2295 = vmatpush2.xpose.msra.mxu0 0.0
    %2296 = vmatprep.subr.mxu0 0.0
    %2297 = vmatpush2.xpose.msra.mxu0 0.0
    %2298 = vmatprep.subr.mxu0 0.0
    %2299 = vmatpush2.xpose.msra.mxu0 0.0
    %2300 = vmatprep.subr.mxu0 0.0
    %2301 = vmatpush2.xpose.msra.mxu0 0.0
    %2302 = vmatprep.subr.mxu0 0.0
    %2303 = vmatpush2.xpose.msra.mxu0 0.0
    %2304 = vmatprep.subr.mxu0 0.0
    %2305 = vmatpush2.xpose.msra.mxu0 0.0
    %2306 = vmatprep.subr.mxu0 0.0
    %2307 = vmatpush2.xpose.msra.mxu0 0.0
    %2308 = vmatprep.subr.mxu0 0.0
    %2309 = vmatpush2.xpose.msra.mxu0 0.0
    %2310 = vmatprep.subr.mxu0 0.0
    %2311 = vmatpush2.xpose.msra.mxu0 0.0
    %2312 = vmatprep.subr.mxu0 0.0
    %2313 = vmatpush2.xpose.msra.mxu0 0.0
    %2314 = vmatprep.subr.mxu0 0.0
    %2315 = vmatpush2.xpose.msra.mxu0 0.0
    %2316 = vmatprep.subr.mxu0 0.0
    %2317 = vmatpush2.xpose.msra.mxu0 0.0
    %2318 = vmatprep.subr.mxu0 0.0
    %2319 = vmatpush2.xpose.msra.mxu0 0.0
    %2320 = vmatprep.mubr.f32.mxu0 0.0
    %2321 = vmatmul.mubr.f32.gmra.mxu0 %v2248
    %v2322 = vpop.f32.mrf.mxu0
    %v2323 = vadd.f32 %v375, %v2322
    %v2324 = vpop.f32.mrf.mxu0
    %2325 = vmatprep.mubr.f32.mxu0 0.0
    %2326 = vmatmul.mubr.f32.gmra.mxu0 %v2250
    %v2327 = vpop.f32.mrf.mxu0
    %v2328 = vadd.f32 %v376, %v2327
    %v2329 = vpop.f32.mrf.mxu0
    %2330 = vdwg.mxu0
    %v2331 = vsel %vm527, %v2323, -inf
    %2332 = vmax.xlane.f32.xlu0 %v2331
    %v2333 = vpop.xlane.xlu0 %2332
    %v2334 = vsel %vm527, %v2328, -inf
    %2335 = vmax.xlane.f32.xlu0 %v2334
    %v2336 = vpop.xlane.xlu0 %2335
    %v2337 = vsub.f32 %v2323, %v2333
    %v2338 = vsub.f32 %v2328, %v2336
    %v2339 = vmul.f32 %v2337, 1.442695
    %v2340 = vpow.pop %v2339
    %v2341 = vmul.f32 %v2338, 1.442695
    %v2342 = vpow.pop %v2341
    %v2343 = vsel %vm527, %v2340, 0.0
    %2344 = vadd.xlane.f32.xlu0 %v2343
    %v2345 = vpop.xlane.xlu0 %2344
    %v2346 = vsel %vm527, %v2342, 0.0
    %2347 = vadd.xlane.f32.xlu0 %v2346
    %v2348 = vpop.xlane.xlu0 %2347
    %v2349 = vrcp.pop %v2345
    %v2350 = vrcp.pop %v2348
    %v2351 = vmul.f32 %v2340, %v2349
    %v2352 = vmul.f32 %v2342, %v2350
    %2353 = vrot.lane.b32.xlu0 %v1840, 96
    %v2354 = vpop.permute.xlu0 %2353
    %2355 = vrot.lane.b32.xlu0 %v1844, 96
    %v2356 = vpop.permute.xlu0 %2355
    %v2360 = vsel %vm527, %v2351, 0
    %v2363 = vsel %vm527, %v2352, 0
    %2365 = vmatprep.subr.mxu0 0.0
    %2366 = vmatpush1.msra.mxu0 0.0
    %2367 = vmatprep.subr.mxu0 0.0
    %2368 = vmatpush1.msra.mxu0 0.0
    %2369 = vmatprep.subr.mxu0 0.0
    %2370 = vmatpush1.msra.mxu0 0.0
    %2371 = vmatprep.subr.mxu0 0.0
    %2372 = vmatpush1.msra.mxu0 0.0
    %2373 = vmatprep.subr.mxu0 0.0
    %2374 = vmatpush1.msra.mxu0 0.0
    %2375 = vmatprep.subr.mxu0 0.0
    %2376 = vmatpush1.msra.mxu0 0.0
    %2377 = vmatprep.subr.mxu0 0.0
    %2378 = vmatpush1.msra.mxu0 0.0
    %2379 = vmatprep.subr.mxu0 0.0
    %2380 = vmatpush1.msra.mxu0 0.0
    %2381 = vmatprep.subr.mxu0 0.0
    %2382 = vmatpush1.msra.mxu0 0.0
    %2383 = vmatprep.subr.mxu0 0.0
    %2384 = vmatpush1.msra.mxu0 0.0
    %2385 = vmatprep.subr.mxu0 0.0
    %2386 = vmatpush1.msra.mxu0 0.0
    %2387 = vmatprep.subr.mxu0 0.0
    %2388 = vmatpush1.msra.mxu0 0.0
    %2389 = vmatprep.subr.mxu0 0.0
    %2390 = vmatpush1.msra.mxu0 0.0
    %2391 = vmatprep.subr.mxu0 0.0
    %2392 = vmatpush1.msra.mxu0 0.0
    %2393 = vmatprep.subr.mxu0 0.0
    %2394 = vmatpush1.msra.mxu0 %v2356
    %2395 = vmatprep.subr.mxu0 0.0
    %2396 = vmatpush1.msra.mxu0 %v2354
    %2397 = vmatprep.subr.mxu0 0.0
    %2398 = vmatpush2.msra.mxu0 0.0
    %2399 = vmatprep.subr.mxu0 0.0
    %2400 = vmatpush2.msra.mxu0 0.0
    %2401 = vmatprep.subr.mxu0 0.0
    %2402 = vmatpush2.msra.mxu0 0.0
    %2403 = vmatprep.subr.mxu0 0.0
    %2404 = vmatpush2.msra.mxu0 0.0
    %2405 = vmatprep.subr.mxu0 0.0
    %2406 = vmatpush2.msra.mxu0 0.0
    %2407 = vmatprep.subr.mxu0 0.0
    %2408 = vmatpush2.msra.mxu0 0.0
    %2409 = vmatprep.subr.mxu0 0.0
    %2410 = vmatpush2.msra.mxu0 0.0
    %2411 = vmatprep.subr.mxu0 0.0
    %2412 = vmatpush2.msra.mxu0 0.0
    %2413 = vmatprep.subr.mxu0 0.0
    %2414 = vmatpush2.msra.mxu0 0.0
    %2415 = vmatprep.subr.mxu0 0.0
    %2416 = vmatpush2.msra.mxu0 0.0
    %2417 = vmatprep.subr.mxu0 0.0
    %2418 = vmatpush2.msra.mxu0 0.0
    %2419 = vmatprep.subr.mxu0 0.0
    %2420 = vmatpush2.msra.mxu0 0.0
    %2421 = vmatprep.subr.mxu0 0.0
    %2422 = vmatpush2.msra.mxu0 0.0
    %2423 = vmatprep.subr.mxu0 0.0
    %2424 = vmatpush2.msra.mxu0 0.0
    %2425 = vmatprep.subr.mxu0 0.0
    %2426 = vmatpush2.msra.mxu0 0.0
    %2427 = vmatprep.subr.mxu0 0.0
    %2428 = vmatpush2.msra.mxu0 0.0
    %2429 = vmatprep.mubr.f32.mxu0 0.0
    %2430 = vmatmul.mubr.f32.gmra.mxu0 %v2360
    %v2431 = vpop.f32.mrf.mxu0
    %v2432 = vadd.f32 0.0, %v2431
    %v2433 = vpop.f32.mrf.mxu0
    %2434 = vmatprep.mubr.f32.mxu0 0.0
    %2435 = vmatmul.mubr.f32.gmra.mxu0 %v2363
    %v2436 = vpop.f32.mrf.mxu0
    %v2437 = vadd.f32 0.0, %v2436
    %v2438 = vpop.f32.mrf.mxu0
    %2439 = vdwg.mxu0
    %2440 = vrot.lane.b32.xlu0 %v1838, 80
    %v2441 = vpop.permute.xlu0 %2440
    %2442 = vrot.lane.b32.xlu0 %v1842, 80
    %v2443 = vpop.permute.xlu0 %2442
    %2444 = vrot.lane.b32.xlu0 %v1838, 16
    %v2445 = vpop.permute.xlu0 %2444
    %2446 = vrot.lane.b32.xlu0 %v1842, 16
    %v2447 = vpop.permute.xlu0 %2446
    %v2448 = vsel %vm527, %v2441, 0
    %v2450 = vsel %vm527, %v2443, 0
    %v2452 = vsel %vm527, %v2445, 0
    %v2454 = vsel %vm527, %v2447, 0
    %2456 = vmatprep.subr.mxu0 0.0
    %2457 = vmatpush1.xpose.msra.mxu0 0.0
    %2458 = vmatprep.subr.mxu0 0.0
    %2459 = vmatpush1.xpose.msra.mxu0 0.0
    %2460 = vmatprep.subr.mxu0 0.0
    %2461 = vmatpush1.xpose.msra.mxu0 0.0
    %2462 = vmatprep.subr.mxu0 0.0
    %2463 = vmatpush1.xpose.msra.mxu0 0.0
    %2464 = vmatprep.subr.mxu0 0.0
    %2465 = vmatpush1.xpose.msra.mxu0 0.0
    %2466 = vmatprep.subr.mxu0 0.0
    %2467 = vmatpush1.xpose.msra.mxu0 0.0
    %2468 = vmatprep.subr.mxu0 0.0
    %2469 = vmatpush1.xpose.msra.mxu0 0.0
    %2470 = vmatprep.subr.mxu0 0.0
    %2471 = vmatpush1.xpose.msra.mxu0 0.0
    %2472 = vmatprep.subr.mxu0 0.0
    %2473 = vmatpush1.xpose.msra.mxu0 0.0
    %2474 = vmatprep.subr.mxu0 0.0
    %2475 = vmatpush1.xpose.msra.mxu0 0.0
    %2476 = vmatprep.subr.mxu0 0.0
    %2477 = vmatpush1.xpose.msra.mxu0 0.0
    %2478 = vmatprep.subr.mxu0 0.0
    %2479 = vmatpush1.xpose.msra.mxu0 0.0
    %2480 = vmatprep.subr.mxu0 0.0
    %2481 = vmatpush1.xpose.msra.mxu0 0.0
    %2482 = vmatprep.subr.mxu0 0.0
    %2483 = vmatpush1.xpose.msra.mxu0 0.0
    %2484 = vmatprep.subr.mxu0 0.0
    %2485 = vmatpush1.xpose.msra.mxu0 %v2454
    %2486 = vmatprep.subr.mxu0 0.0
    %2487 = vmatpush1.xpose.msra.mxu0 %v2452
    %2488 = vmatprep.subr.mxu0 0.0
    %2489 = vmatpush2.xpose.msra.mxu0 0.0
    %2490 = vmatprep.subr.mxu0 0.0
    %2491 = vmatpush2.xpose.msra.mxu0 0.0
    %2492 = vmatprep.subr.mxu0 0.0
    %2493 = vmatpush2.xpose.msra.mxu0 0.0
    %2494 = vmatprep.subr.mxu0 0.0
    %2495 = vmatpush2.xpose.msra.mxu0 0.0
    %2496 = vmatprep.subr.mxu0 0.0
    %2497 = vmatpush2.xpose.msra.mxu0 0.0
    %2498 = vmatprep.subr.mxu0 0.0
    %2499 = vmatpush2.xpose.msra.mxu0 0.0
    %2500 = vmatprep.subr.mxu0 0.0
    %2501 = vmatpush2.xpose.msra.mxu0 0.0
    %2502 = vmatprep.subr.mxu0 0.0
    %2503 = vmatpush2.xpose.msra.mxu0 0.0
    %2504 = vmatprep.subr.mxu0 0.0
    %2505 = vmatpush2.xpose.msra.mxu0 0.0
    %2506 = vmatprep.subr.mxu0 0.0
    %2507 = vmatpush2.xpose.msra.mxu0 0.0
    %2508 = vmatprep.subr.mxu0 0.0
    %2509 = vmatpush2.xpose.msra.mxu0 0.0
    %2510 = vmatprep.subr.mxu0 0.0
    %2511 = vmatpush2.xpose.msra.mxu0 0.0
    %2512 = vmatprep.subr.mxu0 0.0
    %2513 = vmatpush2.xpose.msra.mxu0 0.0
    %2514 = vmatprep.subr.mxu0 0.0
    %2515 = vmatpush2.xpose.msra.mxu0 0.0
    %2516 = vmatprep.subr.mxu0 0.0
    %2517 = vmatpush2.xpose.msra.mxu0 0.0
    %2518 = vmatprep.subr.mxu0 0.0
    %2519 = vmatpush2.xpose.msra.mxu0 0.0
    %2520 = vmatprep.mubr.f32.mxu0 0.0
    %2521 = vmatmul.mubr.f32.gmra.mxu0 %v2448
    %v2522 = vpop.f32.mrf.mxu0
    %v2523 = vadd.f32 %v375, %v2522
    %v2524 = vpop.f32.mrf.mxu0
    %2525 = vmatprep.mubr.f32.mxu0 0.0
    %2526 = vmatmul.mubr.f32.gmra.mxu0 %v2450
    %v2527 = vpop.f32.mrf.mxu0
    %v2528 = vadd.f32 %v376, %v2527
    %v2529 = vpop.f32.mrf.mxu0
    %2530 = vdwg.mxu0
    %v2531 = vsel %vm527, %v2523, -inf
    %2532 = vmax.xlane.f32.xlu0 %v2531
    %v2533 = vpop.xlane.xlu0 %2532
    %v2534 = vsel %vm527, %v2528, -inf
    %2535 = vmax.xlane.f32.xlu0 %v2534
    %v2536 = vpop.xlane.xlu0 %2535
    %v2537 = vsub.f32 %v2523, %v2533
    %v2538 = vsub.f32 %v2528, %v2536
    %v2539 = vmul.f32 %v2537, 1.442695
    %v2540 = vpow.pop %v2539
    %v2541 = vmul.f32 %v2538, 1.442695
    %v2542 = vpow.pop %v2541
    %v2543 = vsel %vm527, %v2540, 0.0
    %2544 = vadd.xlane.f32.xlu0 %v2543
    %v2545 = vpop.xlane.xlu0 %2544
    %v2546 = vsel %vm527, %v2542, 0.0
    %2547 = vadd.xlane.f32.xlu0 %v2546
    %v2548 = vpop.xlane.xlu0 %2547
    %v2549 = vrcp.pop %v2545
    %v2550 = vrcp.pop %v2548
    %v2551 = vmul.f32 %v2540, %v2549
    %v2552 = vmul.f32 %v2542, %v2550
    %2553 = vrot.lane.b32.xlu0 %v1840, 80
    %v2554 = vpop.permute.xlu0 %2553
    %2555 = vrot.lane.b32.xlu0 %v1844, 80
    %v2556 = vpop.permute.xlu0 %2555
    %v2560 = vsel %vm527, %v2551, 0
    %v2563 = vsel %vm527, %v2552, 0
    %2565 = vmatprep.subr.mxu0 0.0
    %2566 = vmatpush1.msra.mxu0 0.0
    %2567 = vmatprep.subr.mxu0 0.0
    %2568 = vmatpush1.msra.mxu0 0.0
    %2569 = vmatprep.subr.mxu0 0.0
    %2570 = vmatpush1.msra.mxu0 0.0
    %2571 = vmatprep.subr.mxu0 0.0
    %2572 = vmatpush1.msra.mxu0 0.0
    %2573 = vmatprep.subr.mxu0 0.0
    %2574 = vmatpush1.msra.mxu0 0.0
    %2575 = vmatprep.subr.mxu0 0.0
    %2576 = vmatpush1.msra.mxu0 0.0
    %2577 = vmatprep.subr.mxu0 0.0
    %2578 = vmatpush1.msra.mxu0 0.0
    %2579 = vmatprep.subr.mxu0 0.0
    %2580 = vmatpush1.msra.mxu0 0.0
    %2581 = vmatprep.subr.mxu0 0.0
    %2582 = vmatpush1.msra.mxu0 0.0
    %2583 = vmatprep.subr.mxu0 0.0
    %2584 = vmatpush1.msra.mxu0 0.0
    %2585 = vmatprep.subr.mxu0 0.0
    %2586 = vmatpush1.msra.mxu0 0.0
    %2587 = vmatprep.subr.mxu0 0.0
    %2588 = vmatpush1.msra.mxu0 0.0
    %2589 = vmatprep.subr.mxu0 0.0
    %2590 = vmatpush1.msra.mxu0 0.0
    %2591 = vmatprep.subr.mxu0 0.0
    %2592 = vmatpush1.msra.mxu0 0.0
    %2593 = vmatprep.subr.mxu0 0.0
    %2594 = vmatpush1.msra.mxu0 %v2556
    %2595 = vmatprep.subr.mxu0 0.0
    %2596 = vmatpush1.msra.mxu0 %v2554
    %2597 = vmatprep.subr.mxu0 0.0
    %2598 = vmatpush2.msra.mxu0 0.0
    %2599 = vmatprep.subr.mxu0 0.0
    %2600 = vmatpush2.msra.mxu0 0.0
    %2601 = vmatprep.subr.mxu0 0.0
    %2602 = vmatpush2.msra.mxu0 0.0
    %2603 = vmatprep.subr.mxu0 0.0
    %2604 = vmatpush2.msra.mxu0 0.0
    %2605 = vmatprep.subr.mxu0 0.0
    %2606 = vmatpush2.msra.mxu0 0.0
    %2607 = vmatprep.subr.mxu0 0.0
    %2608 = vmatpush2.msra.mxu0 0.0
    %2609 = vmatprep.subr.mxu0 0.0
    %2610 = vmatpush2.msra.mxu0 0.0
    %2611 = vmatprep.subr.mxu0 0.0
    %2612 = vmatpush2.msra.mxu0 0.0
    %2613 = vmatprep.subr.mxu0 0.0
    %2614 = vmatpush2.msra.mxu0 0.0
    %2615 = vmatprep.subr.mxu0 0.0
    %2616 = vmatpush2.msra.mxu0 0.0
    %2617 = vmatprep.subr.mxu0 0.0
    %2618 = vmatpush2.msra.mxu0 0.0
    %2619 = vmatprep.subr.mxu0 0.0
    %2620 = vmatpush2.msra.mxu0 0.0
    %2621 = vmatprep.subr.mxu0 0.0
    %2622 = vmatpush2.msra.mxu0 0.0
    %2623 = vmatprep.subr.mxu0 0.0
    %2624 = vmatpush2.msra.mxu0 0.0
    %2625 = vmatprep.subr.mxu0 0.0
    %2626 = vmatpush2.msra.mxu0 0.0
    %2627 = vmatprep.subr.mxu0 0.0
    %2628 = vmatpush2.msra.mxu0 0.0
    %2629 = vmatprep.mubr.f32.mxu0 0.0
    %2630 = vmatmul.mubr.f32.gmra.mxu0 %v2560
    %v2631 = vpop.f32.mrf.mxu0
    %v2632 = vadd.f32 0.0, %v2631
    %v2633 = vpop.f32.mrf.mxu0
    %2634 = vmatprep.mubr.f32.mxu0 0.0
    %2635 = vmatmul.mubr.f32.gmra.mxu0 %v2563
    %v2636 = vpop.f32.mrf.mxu0
    %v2637 = vadd.f32 0.0, %v2636
    %v2638 = vpop.f32.mrf.mxu0
    %2639 = vdwg.mxu0
    %2642 = vrot.lane.b32.xlu0 %v2232, 16
    %v2643 = vpop.permute.xlu0 %2642
    %2644 = vrot.lane.b32.xlu0 %v2237, 16
    %v2645 = vpop.permute.xlu0 %2644
    %2650 = vrot.lane.b32.xlu0 %v2432, 32
    %v2651 = vpop.permute.xlu0 %2650
    %2652 = vrot.lane.b32.xlu0 %v2437, 32
    %v2653 = vpop.permute.xlu0 %2652
    %2658 = vrot.lane.b32.xlu0 %v2632, 48
    %v2659 = vpop.permute.xlu0 %2658
    %2660 = vrot.lane.b32.xlu0 %v2637, 48
    %v2661 = vpop.permute.xlu0 %2660
    %v2664 = vsel %vm527, %v2030, %v2643
    %v2665 = vsel %vm527, %v2035, %v2645
    %v2666 = vsel %vm1342, %v2664, %v2651
    %v2667 = vsel %vm1342, %v2665, %v2653
    %v2668 = vsel %vm1345, %v2666, %v2659
    %v2669 = vsel %vm1345, %v2667, %v2661
    %v2670 = vpack.c.bf16 %v2669, %v2668
    %v2672 = vlaneseq
    %v2673 = vshrl.u32 %v2672, 7
    %v2674 = vsub.s32 0, %v2673
    %v2675 = vrot.slane %v1713, %v2674
    %v2685 = vunpack.c.l.b16 %v1704
    %v2686 = vunpack.c.l.b16 %v1705
    %v2687 = vunpack.c.l.b16 %v1706
    %v2688 = vunpack.c.l.b16 %v1707
    %v2689 = vunpack.c.l.b16 %v1708
    %v2690 = vunpack.c.l.b16 %v1709
    %v2691 = vunpack.c.l.b16 %v1710
    %v2692 = vunpack.c.l.b16 %v1711
    %v2693 = vpack.c.b16 %v2686, %v2685
    %v2694 = vpack.c.b16 %v2688, %v2687
    %v2695 = vpack.c.b16 %v2690, %v2689
    %v2696 = vpack.c.b16 %v2692, %v2691
    %v2702 = vsel %vm335, %v2670, 0
    %2704 = vmatprep.subr.bf16.mxu0 0
    %2705 = vmatpush1.bf16.msra.mxu0 0
    %2706 = vmatprep.subr.bf16.mxu0 0
    %2707 = vmatpush1.bf16.msra.mxu0 0
    %2708 = vmatprep.subr.bf16.mxu0 0
    %2709 = vmatpush1.bf16.msra.mxu0 0
    %2710 = vmatprep.subr.bf16.mxu0 0
    %2711 = vmatpush1.bf16.msra.mxu0 0
    %2712 = vmatprep.subr.bf16.mxu0 0
    %2713 = vmatpush1.bf16.msra.mxu0 %v2696
    %2714 = vmatprep.subr.bf16.mxu0 0
    %2715 = vmatpush1.bf16.msra.mxu0 %v2695
    %2716 = vmatprep.subr.bf16.mxu0 0
    %2717 = vmatpush1.bf16.msra.mxu0 %v2694
    %2718 = vmatprep.subr.bf16.mxu0 0
    %2719 = vmatpush1.bf16.msra.mxu0 %v2693
    %2720 = vmatprep.subr.bf16.mxu0 0
    %2721 = vmatpush2.bf16.msra.mxu0 0
    %2722 = vmatprep.subr.bf16.mxu0 0
    %2723 = vmatpush2.bf16.msra.mxu0 0
    %2724 = vmatprep.subr.bf16.mxu0 0
    %2725 = vmatpush2.bf16.msra.mxu0 0
    %2726 = vmatprep.subr.bf16.mxu0 0
    %2727 = vmatpush2.bf16.msra.mxu0 0
    %2728 = vmatprep.subr.bf16.mxu0 0
    %2729 = vmatpush2.bf16.msra.mxu0 0
    %2730 = vmatprep.subr.bf16.mxu0 0
    %2731 = vmatpush2.bf16.msra.mxu0 0
    %2732 = vmatprep.subr.bf16.mxu0 0
    %2733 = vmatpush2.bf16.msra.mxu0 0
    %2734 = vmatprep.subr.bf16.mxu0 0
    %2735 = vmatpush2.bf16.msra.mxu0 0
    %2736 = vmatprep.mubr.bf16.mxu0 0
    %2737 = vmatmul.mubr.bf16.gmra.mxu0 %v2702
    %v2738 = vpop.f32.mrf.mxu0
    %v2739 = vadd.f32 %v2675, %v2738
    %v2740 = vpop.f32.mrf.mxu0
    %v2741 = vpop.f32.mrf.mxu0
    %v2742 = vadd.f32 %v2675, %v2741
    %v2743 = vpop.f32.mrf.mxu0
    %2744 = vdwg.mxu0
    %v2745 = vadd.f32 %v1690, %v2739
    %v2746 = vadd.f32 %v1691, %v2742
    %v2747 = vsel %vm335, %v2745, 0.0
    %2748 = vadd.xlane.f32.xlu0 %v2747
    %v2749 = vpop.xlane.xlu0 %2748
    %v2750 = vsel %vm335, %v2746, 0.0
    %2751 = vadd.xlane.f32.xlu0 %v2750
    %v2752 = vpop.xlane.xlu0 %2751
    %v2753 = vmul.f32 %v2749, %v342
    %v2754 = vmul.f32 %v2752, %v342
    %v2755 = vsub.f32 %v2745, %v2753
    %v2756 = vsub.f32 %v2746, %v2754
    %v2757 = vmul.f32 %v2755, %v2755
    %v2758 = vmul.f32 %v2756, %v2756
    %v2759 = vsel %vm335, %v2757, 0.0
    %2760 = vadd.xlane.f32.xlu0 %v2759
    %v2761 = vpop.xlane.xlu0 %2760
    %v2762 = vsel %vm335, %v2758, 0.0
    %2763 = vadd.xlane.f32.xlu0 %v2762
    %v2764 = vpop.xlane.xlu0 %2763
    %v2765 = vmul.f32 %v2761, %v342
    %v2766 = vmul.f32 %v2764, %v342
    %v2767 = vadd.f32 %v2765, 1e-05
    %v2768 = vadd.f32 %v2766, 1e-05
    %v2769 = vrsqrt.pop %v2767
    %v2770 = vrsqrt.pop %v2768
    %v2771 = vmul.f32 %v2755, %v2769
    %v2772 = vmul.f32 %v2756, %v2770
    %v2773 = vlaneseq
    %v2774 = vshrl.u32 %v2773, 7
    %v2775 = vsub.s32 0, %v2774
    %v2776 = vrot.slane %v1715, %v2775
    %v2777 = vmul.f32 %v2771, %v2776
    %v2778 = vmul.f32 %v2772, %v2776
    %v2779 = vlaneseq
    %v2780 = vshrl.u32 %v2779, 7
    %v2781 = vsub.s32 1, %v2780
    %v2782 = vrot.slane %v1715, %v2781
    %v2783 = vadd.f32 %v2777, %v2782
    %v2784 = vadd.f32 %v2778, %v2782
    %v2785 = vpack.c.bf16 %v2784, %v2783
    %v2787 = vlaneseq
    %v2788 = vshrl.u32 %v2787, 7
    %v2789 = vsub.s32 0, %v2788
    %v2790 = vrot.slane %v1726, %v2789
    %v2800 = vunpack.c.l.b16 %v1717
    %v2801 = vunpack.c.l.b16 %v1718
    %v2802 = vunpack.c.l.b16 %v1719
    %v2803 = vunpack.c.l.b16 %v1720
    %v2804 = vunpack.c.l.b16 %v1721
    %v2805 = vunpack.c.l.b16 %v1722
    %v2806 = vunpack.c.l.b16 %v1723
    %v2807 = vunpack.c.l.b16 %v1724
    %v2808 = vpack.c.b16 %v2801, %v2800
    %v2809 = vpack.c.b16 %v2803, %v2802
    %v2810 = vpack.c.b16 %v2805, %v2804
    %v2811 = vpack.c.b16 %v2807, %v2806
    %v2817 = vsel %vm335, %v2785, 0
    %2819 = vmatprep.subr.bf16.mxu0 0
    %2820 = vmatpush1.bf16.msra.mxu0 0
    %2821 = vmatprep.subr.bf16.mxu0 0
    %2822 = vmatpush1.bf16.msra.mxu0 0
    %2823 = vmatprep.subr.bf16.mxu0 0
    %2824 = vmatpush1.bf16.msra.mxu0 0
    %2825 = vmatprep.subr.bf16.mxu0 0
    %2826 = vmatpush1.bf16.msra.mxu0 0
    %2827 = vmatprep.subr.bf16.mxu0 0
    %2828 = vmatpush1.bf16.msra.mxu0 %v2811
    %2829 = vmatprep.subr.bf16.mxu0 0
    %2830 = vmatpush1.bf16.msra.mxu0 %v2810
    %2831 = vmatprep.subr.bf16.mxu0 0
    %2832 = vmatpush1.bf16.msra.mxu0 %v2809
    %2833 = vmatprep.subr.bf16.mxu0 0
    %2834 = vmatpush1.bf16.msra.mxu0 %v2808
    %2835 = vmatprep.subr.bf16.mxu0 0
    %2836 = vmatpush2.bf16.msra.mxu0 0
    %2837 = vmatprep.subr.bf16.mxu0 0
    %2838 = vmatpush2.bf16.msra.mxu0 0
    %2839 = vmatprep.subr.bf16.mxu0 0
    %2840 = vmatpush2.bf16.msra.mxu0 0
    %2841 = vmatprep.subr.bf16.mxu0 0
    %2842 = vmatpush2.bf16.msra.mxu0 0
    %2843 = vmatprep.subr.bf16.mxu0 0
    %2844 = vmatpush2.bf16.msra.mxu0 0
    %2845 = vmatprep.subr.bf16.mxu0 0
    %2846 = vmatpush2.bf16.msra.mxu0 0
    %2847 = vmatprep.subr.bf16.mxu0 0
    %2848 = vmatpush2.bf16.msra.mxu0 0
    %2849 = vmatprep.subr.bf16.mxu0 0
    %2850 = vmatpush2.bf16.msra.mxu0 0
    %2851 = vmatprep.mubr.bf16.mxu0 0
    %2852 = vmatmul.mubr.bf16.gmra.mxu0 %v2817
    %v2853 = vpop.f32.mrf.mxu0
    %v2854 = vadd.f32 %v2790, %v2853
    %v2855 = vpop.f32.mrf.mxu0
    %v2856 = vpop.f32.mrf.mxu0
    %v2857 = vadd.f32 %v2790, %v2856
    %v2858 = vpop.f32.mrf.mxu0
    %2859 = vdwg.mxu0
    %v2860 = vmul.f32 %v2854, 0.5
    %v2861 = vmul.f32 %v2857, 0.5
    %v2862 = vmul.f32 %v2854, 0.044715
    %v2863 = vmul.f32 %v2857, 0.044715
    %v2864 = vmul.f32 %v2862, %v2854
    %v2865 = vmul.f32 %v2863, %v2857
    %v2866 = vmul.f32 %v2864, %v2854
    %v2867 = vmul.f32 %v2865, %v2857
    %v2868 = vadd.f32 %v2854, %v2866
    %v2869 = vadd.f32 %v2857, %v2867
    %v2870 = vmul.f32 %v2868, 0.7978846
    %v2871 = vmul.f32 %v2869, 0.7978846
    %v2872 = vtanh.pop %v2870
    %v2873 = vtanh.pop %v2871
    %v2874 = vadd.f32 %v2872, 1.0
    %v2875 = vadd.f32 %v2873, 1.0
    %v2876 = vmul.f32 %v2860, %v2874
    %v2877 = vmul.f32 %v2861, %v2875
    %v2878 = vpack.c.bf16 %v2877, %v2876
    %v2880 = vlaneseq
    %v2881 = vshrl.u32 %v2880, 7
    %v2882 = vsub.s32 0, %v2881
    %v2883 = vrot.slane %v1745, %v2882
    %v2901 = vunpack.c.l.b16 %v1728
    %v2902 = vunpack.c.l.b16 %v1729
    %v2903 = vunpack.c.l.b16 %v1730
    %v2904 = vunpack.c.l.b16 %v1731
    %v2905 = vunpack.c.l.b16 %v1732
    %v2906 = vunpack.c.l.b16 %v1733
    %v2907 = vunpack.c.l.b16 %v1734
    %v2908 = vunpack.c.l.b16 %v1735
    %v2909 = vunpack.c.l.b16 %v1736
    %v2910 = vunpack.c.l.b16 %v1737
    %v2911 = vunpack.c.l.b16 %v1738
    %v2912 = vunpack.c.l.b16 %v1739
    %v2913 = vunpack.c.l.b16 %v1740
    %v2914 = vunpack.c.l.b16 %v1741
    %v2915 = vunpack.c.l.b16 %v1742
    %v2916 = vunpack.c.l.b16 %v1743
    %v2917 = vpack.c.b16 %v2902, %v2901
    %v2918 = vpack.c.b16 %v2904, %v2903
    %v2919 = vpack.c.b16 %v2906, %v2905
    %v2920 = vpack.c.b16 %v2908, %v2907
    %v2921 = vpack.c.b16 %v2910, %v2909
    %v2922 = vpack.c.b16 %v2912, %v2911
    %v2923 = vpack.c.b16 %v2914, %v2913
    %v2924 = vpack.c.b16 %v2916, %v2915
    %2933 = vmatprep.subr.bf16.mxu0 0
    %2934 = vmatpush1.bf16.msra.mxu0 %v2924
    %2935 = vmatprep.subr.bf16.mxu0 0
    %2936 = vmatpush1.bf16.msra.mxu0 %v2923
    %2937 = vmatprep.subr.bf16.mxu0 0
    %2938 = vmatpush1.bf16.msra.mxu0 %v2922
    %2939 = vmatprep.subr.bf16.mxu0 0
    %2940 = vmatpush1.bf16.msra.mxu0 %v2921
    %2941 = vmatprep.subr.bf16.mxu0 0
    %2942 = vmatpush1.bf16.msra.mxu0 %v2920
    %2943 = vmatprep.subr.bf16.mxu0 0
    %2944 = vmatpush1.bf16.msra.mxu0 %v2919
    %2945 = vmatprep.subr.bf16.mxu0 0
    %2946 = vmatpush1.bf16.msra.mxu0 %v2918
    %2947 = vmatprep.subr.bf16.mxu0 0
    %2948 = vmatpush1.bf16.msra.mxu0 %v2917
    %2949 = vmatprep.subr.bf16.mxu0 0
    %2950 = vmatpush2.bf16.msra.mxu0 0
    %2951 = vmatprep.subr.bf16.mxu0 0
    %2952 = vmatpush2.bf16.msra.mxu0 0
    %2953 = vmatprep.subr.bf16.mxu0 0
    %2954 = vmatpush2.bf16.msra.mxu0 0
    %2955 = vmatprep.subr.bf16.mxu0 0
    %2956 = vmatpush2.bf16.msra.mxu0 0
    %2957 = vmatprep.subr.bf16.mxu0 0
    %2958 = vmatpush2.bf16.msra.mxu0 0
    %2959 = vmatprep.subr.bf16.mxu0 0
    %2960 = vmatpush2.bf16.msra.mxu0 0
    %2961 = vmatprep.subr.bf16.mxu0 0
    %2962 = vmatpush2.bf16.msra.mxu0 0
    %2963 = vmatprep.subr.bf16.mxu0 0
    %2964 = vmatpush2.bf16.msra.mxu0 0
    %2965 = vmatprep.mubr.bf16.mxu0 0
    %2966 = vmatmul.mubr.bf16.gmra.mxu0 %v2878
    %v2967 = vpop.f32.mrf.mxu0
    %v2968 = vadd.f32 %v2883, %v2967
    %v2969 = vpop.f32.mrf.mxu0
    %v2970 = vpop.f32.mrf.mxu0
    %v2971 = vadd.f32 %v2883, %v2970
    %v2972 = vpop.f32.mrf.mxu0
    %2973 = vdwg.mxu0
    %v2974 = vadd.f32 %v2783, %v2968
    %v2975 = vadd.f32 %v2784, %v2971
    %v2976 = vsel %vm335, %v2974, 0.0
    %2977 = vadd.xlane.f32.xlu0 %v2976
    %v2978 = vpop.xlane.xlu0 %2977
    %v2979 = vsel %vm335, %v2975, 0.0
    %2980 = vadd.xlane.f32.xlu0 %v2979
    %v2981 = vpop.xlane.xlu0 %2980
    %v2982 = vmul.f32 %v2978, %v342
    %v2983 = vmul.f32 %v2981, %v342
    %v2984 = vsub.f32 %v2974, %v2982
    %v2985 = vsub.f32 %v2975, %v2983
    %v2986 = vmul.f32 %v2984, %v2984
    %v2987 = vmul.f32 %v2985, %v2985
    %v2988 = vsel %vm335, %v2986, 0.0
    %2989 = vadd.xlane.f32.xlu0 %v2988
    %v2990 = vpop.xlane.xlu0 %2989
    %v2991 = vsel %vm335, %v2987, 0.0
    %2992 = vadd.xlane.f32.xlu0 %v2991
    %v2993 = vpop.xlane.xlu0 %2992
    %v2994 = vmul.f32 %v2990, %v342
    %v2995 = vmul.f32 %v2993, %v342
    %v2996 = vadd.f32 %v2994, 1e-05
    %v2997 = vadd.f32 %v2995, 1e-05
    %v2998 = vrsqrt.pop %v2996
    %v2999 = vrsqrt.pop %v2997
    %v3000 = vmul.f32 %v2984, %v2998
    %v3001 = vmul.f32 %v2985, %v2999
    %v3002 = vlaneseq
    %v3003 = vshrl.u32 %v3002, 7
    %v3004 = vsub.s32 0, %v3003
    %v3005 = vrot.slane %v1747, %v3004
    %v3006 = vmul.f32 %v3000, %v3005
    %v3007 = vmul.f32 %v3001, %v3005
    %v3008 = vlaneseq
    %v3009 = vshrl.u32 %v3008, 7
    %v3010 = vsub.s32 1, %v3009
    %v3011 = vrot.slane %v1747, %v3010
    %v3012 = vadd.f32 %v3006, %v3011
    %v3013 = vadd.f32 %v3007, %v3011
    %v3015 = vrot.slane %v3013, 7
    %v3017 = vsel %vm310, %v3012, %v3015
    %v3018 = vpack.c.bf16 %v3017, %v3017
    %v3019 = vld [vmem:[%s15] sm:$0xff]
    %v3020 = vld [vmem:[%s15 + $0x8] sm:$0xff]
    %v3021 = vld [vmem:[%s15 + $0x10] sm:$0xff]
    %v3022 = vld [vmem:[%s15 + $0x18] sm:$0xff]
    %v3023 = vld [vmem:[%s15 + $0x20] sm:$0xff]
    %v3024 = vld [vmem:[%s15 + $0x28] sm:$0xff]
    %v3025 = vld [vmem:[%s15 + $0x30] sm:$0xff]
    %v3026 = vld [vmem:[%s15 + $0x38] sm:$0xff]
    %v3027 = vld [vmem:[%s15 + $0x40] sm:$0xff]
    %v3028 = vld [vmem:[%s15 + $0x48] sm:$0xff]
    %v3029 = vld [vmem:[%s15 + $0x50] sm:$0xff]
    %v3030 = vld [vmem:[%s15 + $0x58] sm:$0xff]
    %v3031 = vld [vmem:[%s15 + $0x60] sm:$0xff]
    %v3032 = vld [vmem:[%s15 + $0x68] sm:$0xff]
    %v3033 = vld [vmem:[%s15 + $0x70] sm:$0xff]
    %v3034 = vld [vmem:[%s15 + $0x78] sm:$0xff]
    %v3035 = vld [vmem:[#allocation15] sm:$0xf]
    %v3037 = vlaneseq
    %v3038 = vshrl.u32 %v3037, 7
    %v3039 = vsub.s32 0, %v3038
    %v3040 = vrot.slane %v3035, %v3039
    %v3041 = vlaneseq
    %v3042 = vshrl.u32 %v3041, 7
    %v3043 = vsub.s32 1, %v3042
    %v3044 = vrot.slane %v3035, %v3043
    %v3045 = vlaneseq
    %v3046 = vshrl.u32 %v3045, 7
    %v3047 = vsub.s32 2, %v3046
    %v3048 = vrot.slane %v3035, %v3047
    %v3049 = vlaneseq
    %v3050 = vshrl.u32 %v3049, 7
    %v3051 = vsub.s32 3, %v3050
    %v3052 = vrot.slane %v3035, %v3051
    %v3073 = vunpack.c.l.b16 %v3019
    %v3074 = vunpack.c.h.b16 %v3019
    %v3075 = vunpack.c.l.b16 %v3020
    %v3076 = vunpack.c.h.b16 %v3020
    %v3077 = vunpack.c.l.b16 %v3021
    %v3078 = vunpack.c.h.b16 %v3021
    %v3079 = vunpack.c.l.b16 %v3022
    %v3080 = vunpack.c.h.b16 %v3022
    %v3081 = vunpack.c.l.b16 %v3023
    %v3082 = vunpack.c.h.b16 %v3023
    %v3083 = vunpack.c.l.b16 %v3024
    %v3084 = vunpack.c.h.b16 %v3024
    %v3085 = vunpack.c.l.b16 %v3025
    %v3086 = vunpack.c.h.b16 %v3025
    %v3087 = vunpack.c.l.b16 %v3026
    %v3088 = vunpack.c.h.b16 %v3026
    %v3089 = vunpack.c.l.b16 %v3027
    %v3090 = vunpack.c.h.b16 %v3027
    %v3091 = vunpack.c.l.b16 %v3028
    %v3092 = vunpack.c.h.b16 %v3028
    %v3093 = vunpack.c.l.b16 %v3029
    %v3094 = vunpack.c.h.b16 %v3029
    %v3095 = vunpack.c.l.b16 %v3030
    %v3096 = vunpack.c.h.b16 %v3030
    %v3097 = vunpack.c.l.b16 %v3031
    %v3098 = vunpack.c.h.b16 %v3031
    %v3099 = vunpack.c.l.b16 %v3032
    %v3100 = vunpack.c.h.b16 %v3032
    %v3101 = vunpack.c.l.b16 %v3033
    %v3102 = vunpack.c.h.b16 %v3033
    %v3103 = vunpack.c.l.b16 %v3034
    %v3104 = vunpack.c.h.b16 %v3034
    %v3105 = vpack.c.b16 %v3077, %v3073
    %v3106 = vpack.c.b16 %v3078, %v3074
    %v3107 = vpack.c.b16 %v3079, %v3075
    %v3108 = vpack.c.b16 %v3080, %v3076
    %v3109 = vpack.c.b16 %v3085, %v3081
    %v3110 = vpack.c.b16 %v3086, %v3082
    %v3111 = vpack.c.b16 %v3087, %v3083
    %v3112 = vpack.c.b16 %v3088, %v3084
    %v3113 = vpack.c.b16 %v3093, %v3089
    %v3114 = vpack.c.b16 %v3094, %v3090
    %v3115 = vpack.c.b16 %v3095, %v3091
    %v3116 = vpack.c.b16 %v3096, %v3092
    %v3117 = vpack.c.b16 %v3101, %v3097
    %v3118 = vpack.c.b16 %v3102, %v3098
    %v3119 = vpack.c.b16 %v3103, %v3099
    %v3120 = vpack.c.b16 %v3104, %v3100
    %v3138 = vsel %vm335, %v3018, 0
    %3140 = vmatprep.subr.bf16.mxu0 0
    %3141 = vmatpush1.bf16.msra.mxu0 0
    %3142 = vmatprep.subr.bf16.mxu0 0
    %3143 = vmatpush1.bf16.msra.mxu0 0
    %3144 = vmatprep.subr.bf16.mxu0 0
    %3145 = vmatpush1.bf16.msra.mxu0 0
    %3146 = vmatprep.subr.bf16.mxu0 0
    %3147 = vmatpush1.bf16.msra.mxu0 0
    %3148 = vmatprep.subr.bf16.mxu0 %v3118
    %3149 = vmatpush1.bf16.msra.mxu0 %v3117
    %3150 = vmatprep.subr.bf16.mxu0 %v3114
    %3151 = vmatpush1.bf16.msra.mxu0 %v3113
    %3152 = vmatprep.subr.bf16.mxu0 %v3110
    %3153 = vmatpush1.bf16.msra.mxu0 %v3109
    %3154 = vmatprep.subr.bf16.mxu0 %v3106
    %3155 = vmatpush1.bf16.msra.mxu0 %v3105
    %3156 = vmatprep.subr.bf16.mxu0 0
    %3157 = vmatpush2.bf16.msra.mxu0 0
    %3158 = vmatprep.subr.bf16.mxu0 0
    %3159 = vmatpush2.bf16.msra.mxu0 0
    %3160 = vmatprep.subr.bf16.mxu0 0
    %3161 = vmatpush2.bf16.msra.mxu0 0
    %3162 = vmatprep.subr.bf16.mxu0 0
    %3163 = vmatpush2.bf16.msra.mxu0 0
    %3164 = vmatprep.subr.bf16.mxu0 0
    %3165 = vmatpush2.bf16.msra.mxu0 0
    %3166 = vmatprep.subr.bf16.mxu0 0
    %3167 = vmatpush2.bf16.msra.mxu0 0
    %3168 = vmatprep.subr.bf16.mxu0 0
    %3169 = vmatpush2.bf16.msra.mxu0 0
    %3170 = vmatprep.subr.bf16.mxu0 0
    %3171 = vmatpush2.bf16.msra.mxu0 0
    %3172 = vmatprep.mubr.bf16.mxu0 0
    %3173 = vmatmul.mubr.bf16.gmra.mxu0 %v3138
    %v3174 = vpop.f32.mrf.mxu0
    %v3175 = vadd.f32 %v3040, %v3174
    %v3176 = vpop.f32.mrf.mxu0
    %v3177 = vadd.f32 %v3044, %v3176
    %v3178 = vpop.f32.mrf.mxu0
    %v3179 = vpop.f32.mrf.mxu0
    %3180 = vdwg.mxu0
    %3181 = vmatprep.subr.bf16.mxu0 0
    %3182 = vmatpush1.bf16.msra.mxu0 0
    %3183 = vmatprep.subr.bf16.mxu0 0
    %3184 = vmatpush1.bf16.msra.mxu0 0
    %3185 = vmatprep.subr.bf16.mxu0 0
    %3186 = vmatpush1.bf16.msra.mxu0 0
    %3187 = vmatprep.subr.bf16.mxu0 0
    %3188 = vmatpush1.bf16.msra.mxu0 0
    %3189 = vmatprep.subr.bf16.mxu0 %v3120
    %3190 = vmatpush1.bf16.msra.mxu0 %v3119
    %3191 = vmatprep.subr.bf16.mxu0 %v3116
    %3192 = vmatpush1.bf16.msra.mxu0 %v3115
    %3193 = vmatprep.subr.bf16.mxu0 %v3112
    %3194 = vmatpush1.bf16.msra.mxu0 %v3111
    %3195 = vmatprep.subr.bf16.mxu0 %v3108
    %3196 = vmatpush1.bf16.msra.mxu0 %v3107
    %3197 = vmatprep.subr.bf16.mxu0 0
    %3198 = vmatpush2.bf16.msra.mxu0 0
    %3199 = vmatprep.subr.bf16.mxu0 0
    %3200 = vmatpush2.bf16.msra.mxu0 0
    %3201 = vmatprep.subr.bf16.mxu0 0
    %3202 = vmatpush2.bf16.msra.mxu0 0
    %3203 = vmatprep.subr.bf16.mxu0 0
    %3204 = vmatpush2.bf16.msra.mxu0 0
    %3205 = vmatprep.subr.bf16.mxu0 0
    %3206 = vmatpush2.bf16.msra.mxu0 0
    %3207 = vmatprep.subr.bf16.mxu0 0
    %3208 = vmatpush2.bf16.msra.mxu0 0
    %3209 = vmatprep.subr.bf16.mxu0 0
    %3210 = vmatpush2.bf16.msra.mxu0 0
    %3211 = vmatprep.subr.bf16.mxu0 0
    %3212 = vmatpush2.bf16.msra.mxu0 0
    %3213 = vmatprep.mubr.bf16.mxu0 0
    %3214 = vmatmul.mubr.bf16.gmra.mxu0 %v3138
    %v3215 = vpop.f32.mrf.mxu0
    %v3216 = vadd.f32 %v3048, %v3215
    %v3217 = vpop.f32.mrf.mxu0
    %v3218 = vadd.f32 %v3052, %v3217
    %v3219 = vpop.f32.mrf.mxu0
    %v3220 = vpop.f32.mrf.mxu0
    %3221 = vdwg.mxu0
    %v3222 = vld [vmem:[%s17] sm:$0xff]
    %v3223 = vsel %vm312, %v3175, 0.0
    %v3224 = vsel %vm312, %v3177, 0.0
    %v3225 = vadd.f32 %v3223, %v3224
    %v3226 = vsel %vm312, %v3216, 0.0
    %v3227 = vadd.f32 %v3225, %v3226
    %v3228 = vsel %vm312, %v3218, 0.0
    %v3229 = vadd.f32 %v3227, %v3228
    %3230 = vadd.xlane.f32.xlu0 %v3229
    %v3231 = vpop.xlane.xlu0 %3230
    %v3232 = vrcp.pop 512.0
    %v3233 = vmul.f32 %v3231, %v3232
    %v3234 = vsub.f32 %v3175, %v3233
    %v3235 = vsub.f32 %v3177, %v3233
    %v3236 = vsub.f32 %v3216, %v3233
    %v3237 = vsub.f32 %v3218, %v3233
    %v3238 = vmul.f32 %v3234, %v3234
    %v3239 = vmul.f32 %v3235, %v3235
    %v3240 = vmul.f32 %v3236, %v3236
    %v3241 = vmul.f32 %v3237, %v3237
    %v3242 = vsel %vm312, %v3238, 0.0
    %v3243 = vsel %vm312, %v3239, 0.0
    %v3244 = vadd.f32 %v3242, %v3243
    %v3245 = vsel %vm312, %v3240, 0.0
    %v3246 = vadd.f32 %v3244, %v3245
    %v3247 = vsel %vm312, %v3241, 0.0
    %v3248 = vadd.f32 %v3246, %v3247
    %3249 = vadd.xlane.f32.xlu0 %v3248
    %v3250 = vpop.xlane.xlu0 %3249
    %v3251 = vmul.f32 %v3250, %v3232
    %v3252 = vadd.f32 %v3251, 1e-05
    %v3253 = vrsqrt.pop %v3252
    %v3254 = vmul.f32 %v3234, %v3253
    %v3255 = vmul.f32 %v3235, %v3253
    %v3256 = vmul.f32 %v3236, %v3253
    %v3257 = vmul.f32 %v3237, %v3253
    %v3259 = vlaneseq
    %v3260 = vshrl.u32 %v3259, 7
    %v3261 = vsub.s32 0, %v3260
    %v3262 = vrot.slane %v3222, %v3261
    %v3263 = vlaneseq
    %v3264 = vshrl.u32 %v3263, 7
    %v3265 = vsub.s32 2, %v3264
    %v3266 = vrot.slane %v3222, %v3265
    %v3267 = vlaneseq
    %v3268 = vshrl.u32 %v3267, 7
    %v3269 = vsub.s32 4, %v3268
    %v3270 = vrot.slane %v3222, %v3269
    %v3271 = vlaneseq
    %v3272 = vshrl.u32 %v3271, 7
    %v3273 = vsub.s32 6, %v3272
    %v3274 = vrot.slane %v3222, %v3273
    %v3279 = vlaneseq
    %v3280 = vshrl.u32 %v3279, 7
    %v3281 = vsub.s32 0, %v3280
    %v3282 = vrot.slane %v3262, %v3281
    %v3283 = vlaneseq
    %v3284 = vshrl.u32 %v3283, 7
    %v3285 = vsub.s32 0, %v3284
    %v3286 = vrot.slane %v3266, %v3285
    %v3287 = vlaneseq
    %v3288 = vshrl.u32 %v3287, 7
    %v3289 = vsub.s32 0, %v3288
    %v3290 = vrot.slane %v3270, %v3289
    %v3291 = vlaneseq
    %v3292 = vshrl.u32 %v3291, 7
    %v3293 = vsub.s32 0, %v3292
    %v3294 = vrot.slane %v3274, %v3293
    %v3295 = vmul.f32 %v3254, %v3282
    %v3296 = vmul.f32 %v3255, %v3286
    %v3297 = vmul.f32 %v3256, %v3290
    %v3298 = vmul.f32 %v3257, %v3294
    %v3299 = vlaneseq
    %v3300 = vshrl.u32 %v3299, 7
    %v3301 = vsub.s32 1, %v3300
    %v3302 = vrot.slane %v3222, %v3301
    %v3303 = vlaneseq
    %v3304 = vshrl.u32 %v3303, 7
    %v3305 = vsub.s32 3, %v3304
    %v3306 = vrot.slane %v3222, %v3305
    %v3307 = vlaneseq
    %v3308 = vshrl.u32 %v3307, 7
    %v3309 = vsub.s32 5, %v3308
    %v3310 = vrot.slane %v3222, %v3309
    %v3311 = vlaneseq
    %v3312 = vshrl.u32 %v3311, 7
    %v3313 = vsub.s32 7, %v3312
    %v3314 = vrot.slane %v3222, %v3313
    %v3319 = vlaneseq
    %v3320 = vshrl.u32 %v3319, 7
    %v3321 = vsub.s32 1, %v3320
    %v3322 = vrot.slane %v3302, %v3321
    %v3323 = vlaneseq
    %v3324 = vshrl.u32 %v3323, 7
    %v3325 = vsub.s32 1, %v3324
    %v3326 = vrot.slane %v3306, %v3325
    %v3327 = vlaneseq
    %v3328 = vshrl.u32 %v3327, 7
    %v3329 = vsub.s32 1, %v3328
    %v3330 = vrot.slane %v3310, %v3329
    %v3331 = vlaneseq
    %v3332 = vshrl.u32 %v3331, 7
    %v3333 = vsub.s32 1, %v3332
    %v3334 = vrot.slane %v3314, %v3333
    %v3335 = vadd.f32 %v3295, %v3322
    %v3336 = vadd.f32 %v3296, %v3326
    %v3337 = vadd.f32 %v3297, %v3330
    %v3338 = vadd.f32 %v3298, %v3334
    %v3339 = vmul.f32 %v3335, 0.5
    %v3340 = vmul.f32 %v3336, 0.5
    %v3341 = vmul.f32 %v3337, 0.5
    %v3342 = vmul.f32 %v3338, 0.5
    %v3343 = vmul.f32 %v3335, 0.044715
    %v3344 = vmul.f32 %v3336, 0.044715
    %v3345 = vmul.f32 %v3337, 0.044715
    %v3346 = vmul.f32 %v3338, 0.044715
    %v3347 = vmul.f32 %v3343, %v3335
    %v3348 = vmul.f32 %v3344, %v3336
    %v3349 = vmul.f32 %v3345, %v3337
    %v3350 = vmul.f32 %v3346, %v3338
    %v3351 = vmul.f32 %v3347, %v3335
    %v3352 = vmul.f32 %v3348, %v3336
    %v3353 = vmul.f32 %v3349, %v3337
    %v3354 = vmul.f32 %v3350, %v3338
    %v3355 = vadd.f32 %v3335, %v3351
    %v3356 = vadd.f32 %v3336, %v3352
    %v3357 = vadd.f32 %v3337, %v3353
    %v3358 = vadd.f32 %v3338, %v3354
    %v3359 = vmul.f32 %v3355, 0.7978846
    %v3360 = vmul.f32 %v3356, 0.7978846
    %v3361 = vmul.f32 %v3357, 0.7978846
    %v3362 = vmul.f32 %v3358, 0.7978846
    %v3363 = vtanh.pop %v3359
    %v3364 = vtanh.pop %v3360
    %v3365 = vtanh.pop %v3361
    %v3366 = vtanh.pop %v3362
    %v3367 = vadd.f32 %v3363, 1.0
    %v3368 = vadd.f32 %v3364, 1.0
    %v3369 = vadd.f32 %v3365, 1.0
    %v3370 = vadd.f32 %v3366, 1.0
    %v3371 = vmul.f32 %v3339, %v3367
    %v3372 = vmul.f32 %v3340, %v3368
    %v3373 = vmul.f32 %v3341, %v3369
    %v3374 = vmul.f32 %v3342, %v3370
    %v3375 = vpack.c.bf16 %v3371, %v3371
    %v3376 = vpack.c.bf16 %v3372, %v3372
    %v3377 = vpack.c.bf16 %v3373, %v3373
    %v3378 = vpack.c.bf16 %v3374, %v3374
    %v3379 = vld [vmem:[#allocation16] sm:$0xff]
    %v3380 = vld [vmem:[#allocation16 + $0x8] sm:$0xf]
    %v3381 = vld [vmem:[#allocation16 + $0xc] sm:$0xff]
    %v3382 = vld [vmem:[#allocation16 + $0x14] sm:$0xf]
    %v3383 = vld [vmem:[#allocation16 + $0x18] sm:$0xff]
    %v3384 = vld [vmem:[#allocation16 + $0x20] sm:$0xf]
    %v3385 = vld [vmem:[#allocation16 + $0x24] sm:$0xff]
    %v3386 = vld [vmem:[#allocation16 + $0x2c] sm:$0xf]
    %v3387 = vld [vmem:[#allocation16 + $0x30] sm:$0xff]
    %v3388 = vld [vmem:[#allocation16 + $0x38] sm:$0xf]
    %v3389 = vld [vmem:[#allocation16 + $0x3c] sm:$0xff]
    %v3390 = vld [vmem:[#allocation16 + $0x44] sm:$0xf]
    %v3391 = vld [vmem:[#allocation16 + $0x48] sm:$0xff]
    %v3392 = vld [vmem:[#allocation16 + $0x50] sm:$0xf]
    %v3393 = vld [vmem:[#allocation16 + $0x54] sm:$0xff]
    %v3394 = vld [vmem:[#allocation16 + $0x5c] sm:$0xf]
    %v3395 = vld [vmem:[#allocation16 + $0x60] sm:$0xff]
    %v3396 = vld [vmem:[#allocation16 + $0x68] sm:$0xf]
    %v3397 = vld [vmem:[#allocation16 + $0x6c] sm:$0xff]
    %v3398 = vld [vmem:[#allocation16 + $0x74] sm:$0xf]
    %v3399 = vld [vmem:[#allocation16 + $0x78] sm:$0xff]
    %v3400 = vld [vmem:[#allocation16 + $0x80] sm:$0xf]
    %v3401 = vld [vmem:[#allocation16 + $0x84] sm:$0xff]
    %v3402 = vld [vmem:[#allocation16 + $0x8c] sm:$0xf]
    %v3403 = vld [vmem:[#allocation16 + $0x90] sm:$0xff]
    %v3404 = vld [vmem:[#allocation16 + $0x98] sm:$0xf]
    %v3405 = vld [vmem:[#allocation16 + $0x9c] sm:$0xff]
    %v3406 = vld [vmem:[#allocation16 + $0xa4] sm:$0xf]
    %v3407 = vld [vmem:[#allocation16 + $0xa8] sm:$0xff]
    %v3408 = vld [vmem:[#allocation16 + $0xb0] sm:$0xf]
    %v3409 = vld [vmem:[#allocation16 + $0xb4] sm:$0xff]
    %v3410 = vld [vmem:[#allocation16 + $0xbc] sm:$0xf]
    %v3411 = vld [vmem:[#allocation16 + $0xc0] sm:$0xff]
    %v3412 = vld [vmem:[#allocation16 + $0xc8] sm:$0xf]
    %v3413 = vld [vmem:[#allocation16 + $0xcc] sm:$0xff]
    %v3414 = vld [vmem:[#allocation16 + $0xd4] sm:$0xf]
    %v3415 = vld [vmem:[#allocation16 + $0xd8] sm:$0xff]
    %v3416 = vld [vmem:[#allocation16 + $0xe0] sm:$0xf]
    %v3417 = vld [vmem:[#allocation16 + $0xe4] sm:$0xff]
    %v3418 = vld [vmem:[#allocation16 + $0xec] sm:$0xf]
    %v3419 = vld [vmem:[#allocation16 + $0xf0] sm:$0xff]
    %v3420 = vld [vmem:[#allocation16 + $0xf8] sm:$0xf]
    %v3421 = vld [vmem:[#allocation16 + $0xfc] sm:$0xff]
    %v3422 = vld [vmem:[#allocation16 + $0x104] sm:$0xf]
    %v3423 = vld [vmem:[#allocation16 + $0x108] sm:$0xff]
    %v3424 = vld [vmem:[#allocation16 + $0x110] sm:$0xf]
    %v3425 = vld [vmem:[#allocation16 + $0x114] sm:$0xff]
    %v3426 = vld [vmem:[#allocation16 + $0x11c] sm:$0xf]
    %v3427 = vld [vmem:[#allocation16 + $0x120] sm:$0xff]
    %v3428 = vld [vmem:[#allocation16 + $0x128] sm:$0xf]
    %v3429 = vld [vmem:[#allocation16 + $0x12c] sm:$0xff]
    %v3430 = vld [vmem:[#allocation16 + $0x134] sm:$0xf]
    %v3431 = vld [vmem:[#allocation16 + $0x138] sm:$0xff]
    %v3432 = vld [vmem:[#allocation16 + $0x140] sm:$0xf]
    %v3433 = vld [vmem:[#allocation16 + $0x144] sm:$0xff]
    %v3434 = vld [vmem:[#allocation16 + $0x14c] sm:$0xf]
    %v3435 = vld [vmem:[#allocation16 + $0x150] sm:$0xff]
    %v3436 = vld [vmem:[#allocation16 + $0x158] sm:$0xf]
    %v3437 = vld [vmem:[#allocation16 + $0x15c] sm:$0xff]
    %v3438 = vld [vmem:[#allocation16 + $0x164] sm:$0xf]
    %v3439 = vld [vmem:[#allocation16 + $0x168] sm:$0xff]
    %v3440 = vld [vmem:[#allocation16 + $0x170] sm:$0xf]
    %v3441 = vld [vmem:[#allocation16 + $0x174] sm:$0xff]
    %v3442 = vld [vmem:[#allocation16 + $0x17c] sm:$0xf]
    %v3443 = vld [vmem:[#allocation16 + $0x180] sm:$0xff]
    %v3444 = vld [vmem:[#allocation16 + $0x188] sm:$0xf]
    %v3445 = vld [vmem:[#allocation16 + $0x18c] sm:$0xff]
    %v3446 = vld [vmem:[#allocation16 + $0x194] sm:$0xf]
    %v3447 = vld [vmem:[#allocation16 + $0x198] sm:$0xff]
    %v3448 = vld [vmem:[#allocation16 + $0x1a0] sm:$0xf]
    %v3449 = vld [vmem:[#allocation16 + $0x1a4] sm:$0xff]
    %v3450 = vld [vmem:[#allocation16 + $0x1ac] sm:$0xf]
    %v3451 = vld [vmem:[#allocation16 + $0x1b0] sm:$0xff]
    %v3452 = vld [vmem:[#allocation16 + $0x1b8] sm:$0xf]
    %v3453 = vld [vmem:[#allocation16 + $0x1bc] sm:$0xff]
    %v3454 = vld [vmem:[#allocation16 + $0x1c4] sm:$0xf]
    %v3455 = vld [vmem:[#allocation16 + $0x1c8] sm:$0xff]
    %v3456 = vld [vmem:[#allocation16 + $0x1d0] sm:$0xf]
    %v3457 = vld [vmem:[#allocation16 + $0x1d4] sm:$0xff]
    %v3458 = vld [vmem:[#allocation16 + $0x1dc] sm:$0xf]
    %v3459 = vld [vmem:[#allocation16 + $0x1e0] sm:$0xff]
    %v3460 = vld [vmem:[#allocation16 + $0x1e8] sm:$0xf]
    %v3461 = vld [vmem:[#allocation16 + $0x1ec] sm:$0xff]
    %v3462 = vld [vmem:[#allocation16 + $0x1f4] sm:$0xf]
    %v3463 = vld [vmem:[#allocation16 + $0x1f8] sm:$0xff]
    %v3464 = vld [vmem:[#allocation16 + $0x200] sm:$0xf]
    %v3465 = vld [vmem:[#allocation16 + $0x204] sm:$0xff]
    %v3466 = vld [vmem:[#allocation16 + $0x20c] sm:$0xf]
    %v3467 = vld [vmem:[#allocation16 + $0x210] sm:$0xff]
    %v3468 = vld [vmem:[#allocation16 + $0x218] sm:$0xf]
    %v3469 = vld [vmem:[#allocation16 + $0x21c] sm:$0xff]
    %v3470 = vld [vmem:[#allocation16 + $0x224] sm:$0xf]
    %v3471 = vld [vmem:[#allocation16 + $0x228] sm:$0xff]
    %v3472 = vld [vmem:[#allocation16 + $0x230] sm:$0xf]
    %v3473 = vld [vmem:[#allocation16 + $0x234] sm:$0xff]
    %v3474 = vld [vmem:[#allocation16 + $0x23c] sm:$0xf]
    %v3475 = vld [vmem:[#allocation16 + $0x240] sm:$0xff]
    %v3476 = vld [vmem:[#allocation16 + $0x248] sm:$0xf]
    %v3477 = vld [vmem:[#allocation16 + $0x24c] sm:$0xff]
    %v3478 = vld [vmem:[#allocation16 + $0x254] sm:$0xf]
    %v3479 = vld [vmem:[#allocation16 + $0x258] sm:$0xff]
    %v3480 = vld [vmem:[#allocation16 + $0x260] sm:$0xf]
    %v3481 = vld [vmem:[#allocation16 + $0x264] sm:$0xff]
    %v3482 = vld [vmem:[#allocation16 + $0x26c] sm:$0xf]
    %v3483 = vld [vmem:[#allocation16 + $0x270] sm:$0xff]
    %v3484 = vld [vmem:[#allocation16 + $0x278] sm:$0xf]
    %v3485 = vld [vmem:[#allocation16 + $0x27c] sm:$0xff]
    %v3486 = vld [vmem:[#allocation16 + $0x284] sm:$0xf]
    %v3487 = vld [vmem:[#allocation16 + $0x288] sm:$0xff]
    %v3488 = vld [vmem:[#allocation16 + $0x290] sm:$0xf]
    %v3489 = vld [vmem:[#allocation16 + $0x294] sm:$0xff]
    %v3490 = vld [vmem:[#allocation16 + $0x29c] sm:$0xf]
    %v3491 = vld [vmem:[#allocation16 + $0x2a0] sm:$0xff]
    %v3492 = vld [vmem:[#allocation16 + $0x2a8] sm:$0xf]
    %v3493 = vld [vmem:[#allocation16 + $0x2ac] sm:$0xff]
    %v3494 = vld [vmem:[#allocation16 + $0x2b4] sm:$0xf]
    %v3495 = vld [vmem:[#allocation16 + $0x2b8] sm:$0xff]
    %v3496 = vld [vmem:[#allocation16 + $0x2c0] sm:$0xf]
    %v3497 = vld [vmem:[#allocation16 + $0x2c4] sm:$0xff]
    %v3498 = vld [vmem:[#allocation16 + $0x2cc] sm:$0xf]
    %v3499 = vld [vmem:[#allocation16 + $0x2d0] sm:$0xff]
    %v3500 = vld [vmem:[#allocation16 + $0x2d8] sm:$0xf]
    %v3501 = vld [vmem:[#allocation16 + $0x2dc] sm:$0xff]
    %v3502 = vld [vmem:[#allocation16 + $0x2e4] sm:$0xf]
    %v3503 = vld [vmem:[#allocation16 + $0x2e8] sm:$0xff]
    %v3504 = vld [vmem:[#allocation16 + $0x2f0] sm:$0xf]
    %v3505 = vld [vmem:[#allocation16 + $0x2f4] sm:$0xff]
    %v3506 = vld [vmem:[#allocation16 + $0x2fc] sm:$0xf]
    %v3635 = vunpack.c.l.b16 %v3379
    %v3636 = vunpack.c.h.b16 %v3379
    %v3637 = vunpack.c.l.b16 %v3380
    %v3638 = vunpack.c.l.b16 %v3381
    %v3639 = vunpack.c.h.b16 %v3381
    %v3640 = vunpack.c.l.b16 %v3382
    %v3641 = vunpack.c.l.b16 %v3383
    %v3642 = vunpack.c.h.b16 %v3383
    %v3643 = vunpack.c.l.b16 %v3384
    %v3644 = vunpack.c.l.b16 %v3385
    %v3645 = vunpack.c.h.b16 %v3385
    %v3646 = vunpack.c.l.b16 %v3386
    %v3647 = vunpack.c.l.b16 %v3387
    %v3648 = vunpack.c.h.b16 %v3387
    %v3649 = vunpack.c.l.b16 %v3388
    %v3650 = vunpack.c.l.b16 %v3389
    %v3651 = vunpack.c.h.b16 %v3389
    %v3652 = vunpack.c.l.b16 %v3390
    %v3653 = vunpack.c.l.b16 %v3391
    %v3654 = vunpack.c.h.b16 %v3391
    %v3655 = vunpack.c.l.b16 %v3392
    %v3656 = vunpack.c.l.b16 %v3393
    %v3657 = vunpack.c.h.b16 %v3393
    %v3658 = vunpack.c.l.b16 %v3394
    %v3659 = vunpack.c.l.b16 %v3395
    %v3660 = vunpack.c.h.b16 %v3395
    %v3661 = vunpack.c.l.b16 %v3396
    %v3662 = vunpack.c.l.b16 %v3397
    %v3663 = vunpack.c.h.b16 %v3397
    %v3664 = vunpack.c.l.b16 %v3398
    %v3665 = vunpack.c.l.b16 %v3399
    %v3666 = vunpack.c.h.b16 %v3399
    %v3667 = vunpack.c.l.b16 %v3400
    %v3668 = vunpack.c.l.b16 %v3401
    %v3669 = vunpack.c.h.b16 %v3401
    %v3670 = vunpack.c.l.b16 %v3402
    %v3671 = vunpack.c.l.b16 %v3403
    %v3672 = vunpack.c.h.b16 %v3403
    %v3673 = vunpack.c.l.b16 %v3404
    %v3674 = vunpack.c.l.b16 %v3405
    %v3675 = vunpack.c.h.b16 %v3405
    %v3676 = vunpack.c.l.b16 %v3406
    %v3677 = vunpack.c.l.b16 %v3407
    %v3678 = vunpack.c.h.b16 %v3407
    %v3679 = vunpack.c.l.b16 %v3408
    %v3680 = vunpack.c.l.b16 %v3409
    %v3681 = vunpack.c.h.b16 %v3409
    %v3682 = vunpack.c.l.b16 %v3410
    %v3683 = vunpack.c.l.b16 %v3411
    %v3684 = vunpack.c.h.b16 %v3411
    %v3685 = vunpack.c.l.b16 %v3412
    %v3686 = vunpack.c.l.b16 %v3413
    %v3687 = vunpack.c.h.b16 %v3413
    %v3688 = vunpack.c.l.b16 %v3414
    %v3689 = vunpack.c.l.b16 %v3415
    %v3690 = vunpack.c.h.b16 %v3415
    %v3691 = vunpack.c.l.b16 %v3416
    %v3692 = vunpack.c.l.b16 %v3417
    %v3693 = vunpack.c.h.b16 %v3417
    %v3694 = vunpack.c.l.b16 %v3418
    %v3695 = vunpack.c.l.b16 %v3419
    %v3696 = vunpack.c.h.b16 %v3419
    %v3697 = vunpack.c.l.b16 %v3420
    %v3698 = vunpack.c.l.b16 %v3421
    %v3699 = vunpack.c.h.b16 %v3421
    %v3700 = vunpack.c.l.b16 %v3422
    %v3701 = vunpack.c.l.b16 %v3423
    %v3702 = vunpack.c.h.b16 %v3423
    %v3703 = vunpack.c.l.b16 %v3424
    %v3704 = vunpack.c.l.b16 %v3425
    %v3705 = vunpack.c.h.b16 %v3425
    %v3706 = vunpack.c.l.b16 %v3426
    %v3707 = vunpack.c.l.b16 %v3427
    %v3708 = vunpack.c.h.b16 %v3427
    %v3709 = vunpack.c.l.b16 %v3428
    %v3710 = vunpack.c.l.b16 %v3429
    %v3711 = vunpack.c.h.b16 %v3429
    %v3712 = vunpack.c.l.b16 %v3430
    %v3713 = vunpack.c.l.b16 %v3431
    %v3714 = vunpack.c.h.b16 %v3431
    %v3715 = vunpack.c.l.b16 %v3432
    %v3716 = vunpack.c.l.b16 %v3433
    %v3717 = vunpack.c.h.b16 %v3433
    %v3718 = vunpack.c.l.b16 %v3434
    %v3719 = vunpack.c.l.b16 %v3435
    %v3720 = vunpack.c.h.b16 %v3435
    %v3721 = vunpack.c.l.b16 %v3436
    %v3722 = vunpack.c.l.b16 %v3437
    %v3723 = vunpack.c.h.b16 %v3437
    %v3724 = vunpack.c.l.b16 %v3438
    %v3725 = vunpack.c.l.b16 %v3439
    %v3726 = vunpack.c.h.b16 %v3439
    %v3727 = vunpack.c.l.b16 %v3440
    %v3728 = vunpack.c.l.b16 %v3441
    %v3729 = vunpack.c.h.b16 %v3441
    %v3730 = vunpack.c.l.b16 %v3442
    %v3731 = vunpack.c.l.b16 %v3443
    %v3732 = vunpack.c.h.b16 %v3443
    %v3733 = vunpack.c.l.b16 %v3444
    %v3734 = vunpack.c.l.b16 %v3445
    %v3735 = vunpack.c.h.b16 %v3445
    %v3736 = vunpack.c.l.b16 %v3446
    %v3737 = vunpack.c.l.b16 %v3447
    %v3738 = vunpack.c.h.b16 %v3447
    %v3739 = vunpack.c.l.b16 %v3448
    %v3740 = vunpack.c.l.b16 %v3449
    %v3741 = vunpack.c.h.b16 %v3449
    %v3742 = vunpack.c.l.b16 %v3450
    %v3743 = vunpack.c.l.b16 %v3451
    %v3744 = vunpack.c.h.b16 %v3451
    %v3745 = vunpack.c.l.b16 %v3452
    %v3746 = vunpack.c.l.b16 %v3453
    %v3747 = vunpack.c.h.b16 %v3453
    %v3748 = vunpack.c.l.b16 %v3454
    %v3749 = vunpack.c.l.b16 %v3455
    %v3750 = vunpack.c.h.b16 %v3455
    %v3751 = vunpack.c.l.b16 %v3456
    %v3752 = vunpack.c.l.b16 %v3457
    %v3753 = vunpack.c.h.b16 %v3457
    %v3754 = vunpack.c.l.b16 %v3458
    %v3755 = vunpack.c.l.b16 %v3459
    %v3756 = vunpack.c.h.b16 %v3459
    %v3757 = vunpack.c.l.b16 %v3460
    %v3758 = vunpack.c.l.b16 %v3461
    %v3759 = vunpack.c.h.b16 %v3461
    %v3760 = vunpack.c.l.b16 %v3462
    %v3761 = vunpack.c.l.b16 %v3463
    %v3762 = vunpack.c.h.b16 %v3463
    %v3763 = vunpack.c.l.b16 %v3464
    %v3764 = vunpack.c.l.b16 %v3465
    %v3765 = vunpack.c.h.b16 %v3465
    %v3766 = vunpack.c.l.b16 %v3466
    %v3767 = vunpack.c.l.b16 %v3467
    %v3768 = vunpack.c.h.b16 %v3467
    %v3769 = vunpack.c.l.b16 %v3468
    %v3770 = vunpack.c.l.b16 %v3469
    %v3771 = vunpack.c.h.b16 %v3469
    %v3772 = vunpack.c.l.b16 %v3470
    %v3773 = vunpack.c.l.b16 %v3471
    %v3774 = vunpack.c.h.b16 %v3471
    %v3775 = vunpack.c.l.b16 %v3472
    %v3776 = vunpack.c.l.b16 %v3473
    %v3777 = vunpack.c.h.b16 %v3473
    %v3778 = vunpack.c.l.b16 %v3474
    %v3779 = vunpack.c.l.b16 %v3475
    %v3780 = vunpack.c.h.b16 %v3475
    %v3781 = vunpack.c.l.b16 %v3476
    %v3782 = vunpack.c.l.b16 %v3477
    %v3783 = vunpack.c.h.b16 %v3477
    %v3784 = vunpack.c.l.b16 %v3478
    %v3785 = vunpack.c.l.b16 %v3479
    %v3786 = vunpack.c.h.b16 %v3479
    %v3787 = vunpack.c.l.b16 %v3480
    %v3788 = vunpack.c.l.b16 %v3481
    %v3789 = vunpack.c.h.b16 %v3481
    %v3790 = vunpack.c.l.b16 %v3482
    %v3791 = vunpack.c.l.b16 %v3483
    %v3792 = vunpack.c.h.b16 %v3483
    %v3793 = vunpack.c.l.b16 %v3484
    %v3794 = vunpack.c.l.b16 %v3485
    %v3795 = vunpack.c.h.b16 %v3485
    %v3796 = vunpack.c.l.b16 %v3486
    %v3797 = vunpack.c.l.b16 %v3487
    %v3798 = vunpack.c.h.b16 %v3487
    %v3799 = vunpack.c.l.b16 %v3488
    %v3800 = vunpack.c.l.b16 %v3489
    %v3801 = vunpack.c.h.b16 %v3489
    %v3802 = vunpack.c.l.b16 %v3490
    %v3803 = vunpack.c.l.b16 %v3491
    %v3804 = vunpack.c.h.b16 %v3491
    %v3805 = vunpack.c.l.b16 %v3492
    %v3806 = vunpack.c.l.b16 %v3493
    %v3807 = vunpack.c.h.b16 %v3493
    %v3808 = vunpack.c.l.b16 %v3494
    %v3809 = vunpack.c.l.b16 %v3495
    %v3810 = vunpack.c.h.b16 %v3495
    %v3811 = vunpack.c.l.b16 %v3496
    %v3812 = vunpack.c.l.b16 %v3497
    %v3813 = vunpack.c.h.b16 %v3497
    %v3814 = vunpack.c.l.b16 %v3498
    %v3815 = vunpack.c.l.b16 %v3499
    %v3816 = vunpack.c.h.b16 %v3499
    %v3817 = vunpack.c.l.b16 %v3500
    %v3818 = vunpack.c.l.b16 %v3501
    %v3819 = vunpack.c.h.b16 %v3501
    %v3820 = vunpack.c.l.b16 %v3502
    %v3821 = vunpack.c.l.b16 %v3503
    %v3822 = vunpack.c.h.b16 %v3503
    %v3823 = vunpack.c.l.b16 %v3504
    %v3824 = vunpack.c.l.b16 %v3505
    %v3825 = vunpack.c.h.b16 %v3505
    %v3826 = vunpack.c.l.b16 %v3506
    %v3827 = vpack.c.b16 %v3638, %v3635
    %v3828 = vpack.c.b16 %v3639, %v3636
    %v3829 = vpack.c.b16 %v3640, %v3637
    %v3830 = vpack.c.b16 %v3644, %v3641
    %v3831 = vpack.c.b16 %v3645, %v3642
    %v3832 = vpack.c.b16 %v3646, %v3643
    %v3833 = vpack.c.b16 %v3650, %v3647
    %v3834 = vpack.c.b16 %v3651, %v3648
    %v3835 = vpack.c.b16 %v3652, %v3649
    %v3836 = vpack.c.b16 %v3656, %v3653
    %v3837 = vpack.c.b16 %v3657, %v3654
    %v3838 = vpack.c.b16 %v3658, %v3655
    %v3839 = vpack.c.b16 %v3662, %v3659
    %v3840 = vpack.c.b16 %v3663, %v3660
    %v3841 = vpack.c.b16 %v3664, %v3661
    %v3842 = vpack.c.b16 %v3668, %v3665
    %v3843 = vpack.c.b16 %v3669, %v3666
    %v3844 = vpack.c.b16 %v3670, %v3667
    %v3845 = vpack.c.b16 %v3674, %v3671
    %v3846 = vpack.c.b16 %v3675, %v3672
    %v3847 = vpack.c.b16 %v3676, %v3673
    %v3848 = vpack.c.b16 %v3680, %v3677
    %v3849 = vpack.c.b16 %v3681, %v3678
    %v3850 = vpack.c.b16 %v3682, %v3679
    %v3851 = vpack.c.b16 %v3686, %v3683
    %v3852 = vpack.c.b16 %v3687, %v3684
    %v3853 = vpack.c.b16 %v3688, %v3685
    %v3854 = vpack.c.b16 %v3692, %v3689
    %v3855 = vpack.c.b16 %v3693, %v3690
    %v3856 = vpack.c.b16 %v3694, %v3691
    %v3857 = vpack.c.b16 %v3698, %v3695
    %v3858 = vpack.c.b16 %v3699, %v3696
    %v3859 = vpack.c.b16 %v3700, %v3697
    %v3860 = vpack.c.b16 %v3704, %v3701
    %v3861 = vpack.c.b16 %v3705, %v3702
    %v3862 = vpack.c.b16 %v3706, %v3703
    %v3863 = vpack.c.b16 %v3710, %v3707
    %v3864 = vpack.c.b16 %v3711, %v3708
    %v3865 = vpack.c.b16 %v3712, %v3709
    %v3866 = vpack.c.b16 %v3716, %v3713
    %v3867 = vpack.c.b16 %v3717, %v3714
    %v3868 = vpack.c.b16 %v3718, %v3715
    %v3869 = vpack.c.b16 %v3722, %v3719
    %v3870 = vpack.c.b16 %v3723, %v3720
    %v3871 = vpack.c.b16 %v3724, %v3721
    %v3872 = vpack.c.b16 %v3728, %v3725
    %v3873 = vpack.c.b16 %v3729, %v3726
    %v3874 = vpack.c.b16 %v3730, %v3727
    %v3875 = vpack.c.b16 %v3734, %v3731
    %v3876 = vpack.c.b16 %v3735, %v3732
    %v3877 = vpack.c.b16 %v3736, %v3733
    %v3878 = vpack.c.b16 %v3740, %v3737
    %v3879 = vpack.c.b16 %v3741, %v3738
    %v3880 = vpack.c.b16 %v3742, %v3739
    %v3881 = vpack.c.b16 %v3746, %v3743
    %v3882 = vpack.c.b16 %v3747, %v3744
    %v3883 = vpack.c.b16 %v3748, %v3745
    %v3884 = vpack.c.b16 %v3752, %v3749
    %v3885 = vpack.c.b16 %v3753, %v3750
    %v3886 = vpack.c.b16 %v3754, %v3751
    %v3887 = vpack.c.b16 %v3758, %v3755
    %v3888 = vpack.c.b16 %v3759, %v3756
    %v3889 = vpack.c.b16 %v3760, %v3757
    %v3890 = vpack.c.b16 %v3764, %v3761
    %v3891 = vpack.c.b16 %v3765, %v3762
    %v3892 = vpack.c.b16 %v3766, %v3763
    %v3893 = vpack.c.b16 %v3770, %v3767
    %v3894 = vpack.c.b16 %v3771, %v3768
    %v3895 = vpack.c.b16 %v3772, %v3769
    %v3896 = vpack.c.b16 %v3776, %v3773
    %v3897 = vpack.c.b16 %v3777, %v3774
    %v3898 = vpack.c.b16 %v3778, %v3775
    %v3899 = vpack.c.b16 %v3782, %v3779
    %v3900 = vpack.c.b16 %v3783, %v3780
    %v3901 = vpack.c.b16 %v3784, %v3781
    %v3902 = vpack.c.b16 %v3788, %v3785
    %v3903 = vpack.c.b16 %v3789, %v3786
    %v3904 = vpack.c.b16 %v3790, %v3787
    %v3905 = vpack.c.b16 %v3794, %v3791
    %v3906 = vpack.c.b16 %v3795, %v3792
    %v3907 = vpack.c.b16 %v3796, %v3793
    %v3908 = vpack.c.b16 %v3800, %v3797
    %v3909 = vpack.c.b16 %v3801, %v3798
    %v3910 = vpack.c.b16 %v3802, %v3799
    %v3911 = vpack.c.b16 %v3806, %v3803
    %v3912 = vpack.c.b16 %v3807, %v3804
    %v3913 = vpack.c.b16 %v3808, %v3805
    %v3914 = vpack.c.b16 %v3812, %v3809
    %v3915 = vpack.c.b16 %v3813, %v3810
    %v3916 = vpack.c.b16 %v3814, %v3811
    %v3917 = vpack.c.b16 %v3818, %v3815
    %v3918 = vpack.c.b16 %v3819, %v3816
    %v3919 = vpack.c.b16 %v3820, %v3817
    %v3920 = vpack.c.b16 %v3824, %v3821
    %v3921 = vpack.c.b16 %v3825, %v3822
    %v3922 = vpack.c.b16 %v3826, %v3823
    %4019 = vmatprep.subr.bf16.mxu0 %v3849
    %4020 = vmatpush1.bf16.msra.mxu0 %v3848
    %4021 = vmatprep.subr.bf16.mxu0 %v3846
    %4022 = vmatpush1.bf16.msra.mxu0 %v3845
    %4023 = vmatprep.subr.bf16.mxu0 %v3843
    %4024 = vmatpush1.bf16.msra.mxu0 %v3842
    %4025 = vmatprep.subr.bf16.mxu0 %v3840
    %4026 = vmatpush1.bf16.msra.mxu0 %v3839
    %4027 = vmatprep.subr.bf16.mxu0 %v3837
    %4028 = vmatpush1.bf16.msra.mxu0 %v3836
    %4029 = vmatprep.subr.bf16.mxu0 %v3834
    %4030 = vmatpush1.bf16.msra.mxu0 %v3833
    %4031 = vmatprep.subr.bf16.mxu0 %v3831
    %4032 = vmatpush1.bf16.msra.mxu0 %v3830
    %4033 = vmatprep.subr.bf16.mxu0 %v3828
    %4034 = vmatpush1.bf16.msra.mxu0 %v3827
    %4035 = vmatprep.subr.bf16.mxu0 %v3873
    %4036 = vmatpush2.bf16.msra.mxu0 %v3872
    %4037 = vmatprep.subr.bf16.mxu0 %v3870
    %4038 = vmatpush2.bf16.msra.mxu0 %v3869
    %4039 = vmatprep.subr.bf16.mxu0 %v3867
    %4040 = vmatpush2.bf16.msra.mxu0 %v3866
    %4041 = vmatprep.subr.bf16.mxu0 %v3864
    %4042 = vmatpush2.bf16.msra.mxu0 %v3863
    %4043 = vmatprep.subr.bf16.mxu0 %v3861
    %4044 = vmatpush2.bf16.msra.mxu0 %v3860
    %4045 = vmatprep.subr.bf16.mxu0 %v3858
    %4046 = vmatpush2.bf16.msra.mxu0 %v3857
    %4047 = vmatprep.subr.bf16.mxu0 %v3855
    %4048 = vmatpush2.bf16.msra.mxu0 %v3854
    %4049 = vmatprep.subr.bf16.mxu0 %v3852
    %4050 = vmatpush2.bf16.msra.mxu0 %v3851
    %4051 = vmatprep.mubr.bf16.mxu0 %v3376
    %4052 = vmatmul.mubr.bf16.gmra.mxu0 %v3375
    %v4053 = vpop.f32.mrf.mxu0
    %v4054 = vadd.f32 0.0, %v4053
    %v4055 = vpop.f32.mrf.mxu0
    %v4056 = vadd.f32 0.0, %v4055
    %v4057 = vpop.f32.mrf.mxu0
    %v4058 = vpop.f32.mrf.mxu0
    %4059 = vdwg.mxu0
    %4060 = vmatprep.subr.bf16.mxu0 %v3897
    %4061 = vmatpush1.bf16.msra.mxu0 %v3896
    %4062 = vmatprep.subr.bf16.mxu0 %v3894
    %4063 = vmatpush1.bf16.msra.mxu0 %v3893
    %4064 = vmatprep.subr.bf16.mxu0 %v3891
    %4065 = vmatpush1.bf16.msra.mxu0 %v3890
    %4066 = vmatprep.subr.bf16.mxu0 %v3888
    %4067 = vmatpush1.bf16.msra.mxu0 %v3887
    %4068 = vmatprep.subr.bf16.mxu0 %v3885
    %4069 = vmatpush1.bf16.msra.mxu0 %v3884
    %4070 = vmatprep.subr.bf16.mxu0 %v3882
    %4071 = vmatpush1.bf16.msra.mxu0 %v3881
    %4072 = vmatprep.subr.bf16.mxu0 %v3879
    %4073 = vmatpush1.bf16.msra.mxu0 %v3878
    %4074 = vmatprep.subr.bf16.mxu0 %v3876
    %4075 = vmatpush1.bf16.msra.mxu0 %v3875
    %4076 = vmatprep.subr.bf16.mxu0 %v3921
    %4077 = vmatpush2.bf16.msra.mxu0 %v3920
    %4078 = vmatprep.subr.bf16.mxu0 %v3918
    %4079 = vmatpush2.bf16.msra.mxu0 %v3917
    %4080 = vmatprep.subr.bf16.mxu0 %v3915
    %4081 = vmatpush2.bf16.msra.mxu0 %v3914
    %4082 = vmatprep.subr.bf16.mxu0 %v3912
    %4083 = vmatpush2.bf16.msra.mxu0 %v3911
    %4084 = vmatprep.subr.bf16.mxu0 %v3909
    %4085 = vmatpush2.bf16.msra.mxu0 %v3908
    %4086 = vmatprep.subr.bf16.mxu0 %v3906
    %4087 = vmatpush2.bf16.msra.mxu0 %v3905
    %4088 = vmatprep.subr.bf16.mxu0 %v3903
    %4089 = vmatpush2.bf16.msra.mxu0 %v3902
    %4090 = vmatprep.subr.bf16.mxu0 %v3900
    %4091 = vmatpush2.bf16.msra.mxu0 %v3899
    %4092 = vmatprep.mubr.bf16.mxu0 %v3378
    %4093 = vmatmul.mubr.bf16.gmra.mxu0 %v3377
    %v4094 = vpop.f32.mrf.mxu0
    %v4095 = vadd.f32 %v4054, %v4094
    %v4096 = vpop.f32.mrf.mxu0
    %v4097 = vadd.f32 %v4056, %v4096
    %v4098 = vpop.f32.mrf.mxu0
    %v4099 = vpop.f32.mrf.mxu0
    %4100 = vdwg.mxu0
    %4101 = vmatprep.subr.bf16.mxu0 0
    %4102 = vmatpush1.bf16.msra.mxu0 %v3850
    %4103 = vmatprep.subr.bf16.mxu0 0
    %4104 = vmatpush1.bf16.msra.mxu0 %v3847
    %4105 = vmatprep.subr.bf16.mxu0 0
    %4106 = vmatpush1.bf16.msra.mxu0 %v3844
    %4107 = vmatprep.subr.bf16.mxu0 0
    %4108 = vmatpush1.bf16.msra.mxu0 %v3841
    %4109 = vmatprep.subr.bf16.mxu0 0
    %4110 = vmatpush1.bf16.msra.mxu0 %v3838
    %4111 = vmatprep.subr.bf16.mxu0 0
    %4112 = vmatpush1.bf16.msra.mxu0 %v3835
    %4113 = vmatprep.subr.bf16.mxu0 0
    %4114 = vmatpush1.bf16.msra.mxu0 %v3832
    %4115 = vmatprep.subr.bf16.mxu0 0
    %4116 = vmatpush1.bf16.msra.mxu0 %v3829
    %4117 = vmatprep.subr.bf16.mxu0 0
    %4118 = vmatpush2.bf16.msra.mxu0 %v3874
    %4119 = vmatprep.subr.bf16.mxu0 0
    %4120 = vmatpush2.bf16.msra.mxu0 %v3871
    %4121 = vmatprep.subr.bf16.mxu0 0
    %4122 = vmatpush2.bf16.msra.mxu0 %v3868
    %4123 = vmatprep.subr.bf16.mxu0 0
    %4124 = vmatpush2.bf16.msra.mxu0 %v3865
    %4125 = vmatprep.subr.bf16.mxu0 0
    %4126 = vmatpush2.bf16.msra.mxu0 %v3862
    %4127 = vmatprep.subr.bf16.mxu0 0
    %4128 = vmatpush2.bf16.msra.mxu0 %v3859
    %4129 = vmatprep.subr.bf16.mxu0 0
    %4130 = vmatpush2.bf16.msra.mxu0 %v3856
    %4131 = vmatprep.subr.bf16.mxu0 0
    %4132 = vmatpush2.bf16.msra.mxu0 %v3853
    %4133 = vmatprep.mubr.bf16.mxu0 %v3376
    %4134 = vmatmul.mubr.bf16.gmra.mxu0 %v3375
    %v4135 = vpop.f32.mrf.mxu0
    %v4136 = vadd.f32 0.0, %v4135
    %v4137 = vpop.f32.mrf.mxu0
    %v4138 = vpop.f32.mrf.mxu0
    %v4139 = vpop.f32.mrf.mxu0
    %4140 = vdwg.mxu0
    %4141 = vmatprep.subr.bf16.mxu0 0
    %4142 = vmatpush1.bf16.msra.mxu0 %v3898
    %4143 = vmatprep.subr.bf16.mxu0 0
    %4144 = vmatpush1.bf16.msra.mxu0 %v3895
    %4145 = vmatprep.subr.bf16.mxu0 0
    %4146 = vmatpush1.bf16.msra.mxu0 %v3892
    %4147 = vmatprep.subr.bf16.mxu0 0
    %4148 = vmatpush1.bf16.msra.mxu0 %v3889
    %4149 = vmatprep.subr.bf16.mxu0 0
    %4150 = vmatpush1.bf16.msra.mxu0 %v3886
    %4151 = vmatprep.subr.bf16.mxu0 0
    %4152 = vmatpush1.bf16.msra.mxu0 %v3883
    %4153 = vmatprep.subr.bf16.mxu0 0
    %4154 = vmatpush1.bf16.msra.mxu0 %v3880
    %4155 = vmatprep.subr.bf16.mxu0 0
    %4156 = vmatpush1.bf16.msra.mxu0 %v3877
    %4157 = vmatprep.subr.bf16.mxu0 0
    %4158 = vmatpush2.bf16.msra.mxu0 %v3922
    %4159 = vmatprep.subr.bf16.mxu0 0
    %4160 = vmatpush2.bf16.msra.mxu0 %v3919
    %4161 = vmatprep.subr.bf16.mxu0 0
    %4162 = vmatpush2.bf16.msra.mxu0 %v3916
    %4163 = vmatprep.subr.bf16.mxu0 0
    %4164 = vmatpush2.bf16.msra.mxu0 %v3913
    %4165 = vmatprep.subr.bf16.mxu0 0
    %4166 = vmatpush2.bf16.msra.mxu0 %v3910
    %4167 = vmatprep.subr.bf16.mxu0 0
    %4168 = vmatpush2.bf16.msra.mxu0 %v3907
    %4169 = vmatprep.subr.bf16.mxu0 0
    %4170 = vmatpush2.bf16.msra.mxu0 %v3904
    %4171 = vmatprep.subr.bf16.mxu0 0
    %4172 = vmatpush2.bf16.msra.mxu0 %v3901
    %4173 = vmatprep.mubr.bf16.mxu0 %v3378
    %4174 = vmatmul.mubr.bf16.gmra.mxu0 %v3377
    %v4175 = vpop.f32.mrf.mxu0
    %v4176 = vadd.f32 %v4136, %v4175
    %v4177 = vpop.f32.mrf.mxu0
    %v4178 = vpop.f32.mrf.mxu0
    %v4179 = vpop.f32.mrf.mxu0
    %4180 = vdwg.mxu0
    %v4182 = vrot.slane %v4097, 6
    %v4185 = vrot.slane %v4176, 4
    %v4187 = vsel %vm312, %v4095, %v4182
    %v4188 = vsel %vm316, %v4187, %v4185
    %v4189 = vld [vmem:[#allocation18] sm:$0x3f]
    %v4190 = vadd.f32 %v4188, %v4189
    %v4191 = vld [vmem:[#allocation19] sm:$0x3f]
    %v4192 = vld [vmem:[#allocation21] sm:$0x3f]
    %v4193 = vsel %vm320, %v4190, 0.0
    %4194 = vadd.xlane.f32.xlu0 %v4193
    %v4195 = vpop.xlane.xlu0 %4194
    %v4196 = vrcp.pop 128.0
    %v4197 = vmul.f32 %v4195, %v4196
    %v4198 = vsub.f32 %v4190, %v4197
    %v4199 = vmul.f32 %v4198, %v4198
    %v4200 = vsel %vm320, %v4199, 0.0
    %4201 = vadd.xlane.f32.xlu0 %v4200
    %v4202 = vpop.xlane.xlu0 %4201
    %v4203 = vmul.f32 %v4202, %v4196
    %v4204 = vadd.f32 %v4203, 1e-05
    %v4205 = vrsqrt.pop %v4204
    %v4206 = vmul.f32 %v4198, %v4205
    %v4207 = vmul.f32 %v4206, %v4191
    %v4208 = vadd.f32 %v4207, %v4192
    %v4209 = vmul.f32 %v4208, 0.5
    %v4210 = vmul.f32 %v4208, 0.044715
    %v4211 = vmul.f32 %v4210, %v4208
    %v4212 = vmul.f32 %v4211, %v4208
    %v4213 = vadd.f32 %v4208, %v4212
    %v4214 = vmul.f32 %v4213, 0.7978846
    %v4215 = vtanh.pop %v4214
    %v4216 = vadd.f32 %v4215, 1.0
    %v4217 = vmul.f32 %v4209, %v4216
    %v4218 = vld [vmem:[%s22] sm:$0x3f]
    %v4219 = vmul.f32 %v4217, %v4218
    %v4220 = vsel %vm320, %v4219, 0.0
    %4221 = vadd.xlane.f32.xlu0 %v4220
    %v4222 = vpop.xlane.xlu0 %4221
    %v4224 = vrot.slane %v4222, 2
    %v4226 = vrot.slane %v4222, 4
    %vm4228 = vcmask 7168
    %v4229 = vsel %vm4228, %v4222, %v4224
    %vm4230 = vcmask 15360
    %v4231 = vsel %vm4230, %v4229, %v4226
    %v4232 = vld [vmem:[%s23] sm:$0x1]
    %v4234 = vlaneseq
    %v4235 = vshrl.u32 %v4234, 7
    %v4236 = vsub.s32 0, %v4235
    %v4237 = vrot.slane %v4232, %v4236
    %v4239 = vadd.f32 %v4231, %v4237
    %vm4240 = vcmask 17408
    %4241 = vst.msk [vmem:[#allocation22] sm:$0x3] %vm4240, %v4239
    // Predicated region
    $region138: #{text_vad_forward.1} parent=1 // pred_check
      _
    $region139: #{text_vad_forward.1} parent=1 // pred_check_branch
      %4243 = sbr.rel (0) target = $region141
    $region140: #{text_vad_forward.1} parent=1 // pred_region
      %s4245 = ssub.s32 32, 32
      %4246 = vsyncadd [#allocation6], %s4245
      %s4248 = sshll.u32 [#allocation22], 4
      %s4249 = int_to_ptr.vmem [resolvable:$true] %s4248
      %4251 = dma.vmem_to_hbm [thread:$0]  %s4249, 32, %s24, [#allocation6]
    $region141: #{text_vad_forward.1} parent=1 // pred_fallthru
      _
    // Predicated region
    $region142: #{text_vad_forward.1} parent=1 // pred_check
      _
    $region143: #{text_vad_forward.1} parent=1 // pred_check_branch
      %4253 = sbr.rel (0) target = $region145
    $region144: #{text_vad_forward.1} parent=1 // pred_region
      %4254 = dma.done [#allocation6], 32
    $region145: #{text_vad_forward.1} parent=1 // pred_fallthru
      _
    %4255 = vsyncpa [#allocation5], 1
    %4256 = vsyncpa [#allocation8], 1
    %4257 = vsyncpa [#allocation11], 1
    %4258 = vsyncpa [#allocation14], 1
    %4259 = vsyncpa [#allocation17], 1
    %4260 = vsyncpa [#allocation20], 1
    %4261 = vsyncpa [#allocation6], 1

</llo_original>
